<compile_context>
chip_gen: v6e
topology: v6e:2x2x1
jax: 0.10.0
libtpu: 0.0.40
codegen_flags: <defaults>
</compile_context>

<pallas_src>
import jax
import jax.numpy as jnp
from jax import lax
from jax.experimental import pallas as pl
from jax.experimental.pallas import tpu as pltpu

_PAD_ROWS = 8  # image rows live at [_PAD_ROWS, _PAD_ROWS + H); keeps stores 8-aligned


def residual_block_kernel(x_ref, m1_ref, m2_ref, b1_ref, b2_ref, o_ref, pbuf, ybuf):
    # x_ref : (1, H, WC)  bf16   — one image, W and C collapsed on the lane axis
    # m*_ref: (3, WC, WC) bf16   — banded conv weights (BN scale folded in)
    # b*_ref: (1, WC)     f32    — per-channel BN bias, tiled across W
    # o_ref : (1, H, WC)  f32
    # pbuf/ybuf: (H + 16, WC) bf16 scratch; rows [PAD-1] and [PAD+H] act as the
    #            conv's vertical zero padding.
    H = x_ref.shape[1]
    WC = x_ref.shape[2]
    PAD = _PAD_ROWS

    zero_band = jnp.zeros((8, WC), jnp.bfloat16)
    # Re-zero the border bands every step (aligned 8-row stores, ~8 KiB total):
    # no reliance on first-iteration init of per-core scratch (megacore-safe).
    pbuf[pl.ds(0, 8), :] = zero_band
    pbuf[pl.ds(PAD + H, 8), :] = zero_band
    ybuf[pl.ds(0, 8), :] = zero_band
    ybuf[pl.ds(PAD + H, 8), :] = zero_band

    x2d = x_ref[0]                                   # (H, WC) bf16
    pbuf[pl.ds(PAD, H), :] = x2d                     # aligned interior store

    # ---- conv1 (3x3, pad=1, BN1 scale folded) + BN1 bias + ReLU ----
    acc1 = jnp.zeros((H, WC), jnp.float32)
    for dh in range(3):                              # unrolled: 3 banded matmuls
        acc1 = acc1 + jnp.dot(pbuf[pl.ds(PAD - 1 + dh, H), :], m1_ref[dh],
                              preferred_element_type=jnp.float32)
    y = jnp.maximum(acc1 + b1_ref[...], 0.0).astype(jnp.bfloat16)

    ybuf[pl.ds(PAD, H), :] = y

    # ---- conv2 (3x3, pad=1, BN2 scale folded) + BN2 bias + residual + ReLU ----
    acc2 = jnp.zeros((H, WC), jnp.float32)
    for dh in range(3):
        acc2 = acc2 + jnp.dot(ybuf[pl.ds(PAD - 1 + dh, H), :], m2_ref[dh],
                              preferred_element_type=jnp.float32)
    out = jnp.maximum(acc2 + b2_ref[...] + x2d.astype(jnp.float32), 0.0)
    o_ref[...] = out.reshape(1, H, WC).astype(o_ref.dtype)   # lane-dense store


def _fold_bn(w_hwio, gamma, beta, mean, var, eps):
    """Fold eval-mode BN into the conv: scaled f32 HWIO weights + f32 bias (C,)."""
    s = gamma / jnp.sqrt(var + eps)
    w_scaled = w_hwio * s[None, None, None, :]
    b = beta - mean * s
    return w_scaled.astype(jnp.float32), b.astype(jnp.float32)


def _band_matrices(w_scaled_hwio, W):
    """Bake the 3 horizontal taps and the horizontal zero padding of a 3x3 conv
    into 3 banded matmul weights:
        M[dh][(w+dw-1)*C + ci, w*C + co] = Wfold[dh, dw, ci, co]
    (entries with w+dw-1 outside [0, W) are simply absent => zero padding).
    Returns (3, W*C, W*C) bf16."""
    C = w_scaled_hwio.shape[-1]
    mats = []
    for dh in range(3):
        m = jnp.zeros((W * C, W * C), jnp.float32)
        for dw in range(3):
            # shift[src, dst] = 1 iff src == dst + dw - 1 ; eye's k clips the borders
            shift = jnp.eye(W, k=1 - dw, dtype=jnp.float32)
            m = m + jnp.kron(shift, w_scaled_hwio[dh, dw])
        mats.append(m)
    return jnp.stack(mats).astype(jnp.bfloat16)


def residual_block(x_nchw, w1_hwio, w2_hwio,
                   gamma1, beta1, mean1, var1,
                   gamma2, beta2, mean2, var2, eps=1e-5):
    kh, kw, c_in, c_out = w1_hwio.shape
    assert (kh, kw) == (3, 3) and c_in == c_out, \
        "fused kernel assumes 3x3 convs, stride=1, no downsample (Cin == Cout)"

    x = jnp.transpose(x_nchw, (0, 2, 3, 1))            # NCHW -> NHWC (demo boundary)
    N, H, W, C = x.shape
    assert C == c_in, "channel mismatch"
    WC = W * C

    w1s, b1 = _fold_bn(w1_hwio, gamma1, beta1, mean1, var1, eps)
    w2s, b2 = _fold_bn(w2_hwio, gamma2, beta2, mean2, var2, eps)
    m1 = _band_matrices(w1s, W)                         # (3, WC, WC) bf16
    m2 = _band_matrices(w2s, W)
    bt1 = jnp.tile(b1, W).reshape(1, WC).astype(jnp.float32)
    bt2 = jnp.tile(b2, W).reshape(1, WC).astype(jnp.float32)

    x_flat = x.reshape(N, H, WC).astype(jnp.bfloat16)   # collapsed, lane-dense, no pad

    flops = int(N) * 2 * 3 * 2 * H * WC * WC            # 2 convs x 3 banded matmuls
    bytes_accessed = (x_flat.size * 2 + N * H * WC * 4
                      + 2 * 3 * WC * WC * 2 + 2 * WC * 4)
    cost = pl.CostEstimate(flops=flops, transcendentals=0,
                           bytes_accessed=bytes_accessed)

    out_flat = pl.pallas_call(
        residual_block_kernel,
        out_shape=jax.ShapeDtypeStruct((N, H, WC), x_nchw.dtype),
        grid=(N,),
        in_specs=[
            pl.BlockSpec((1, H, WC), lambda n: (n, 0, 0)),      # image (auto-prefetched)
            pl.BlockSpec((3, WC, WC), lambda n: (0, 0, 0)),     # conv1 banded weights
            pl.BlockSpec((3, WC, WC), lambda n: (0, 0, 0)),     # conv2 banded weights
            pl.BlockSpec((1, WC), lambda n: (0, 0)),            # bias1
            pl.BlockSpec((1, WC), lambda n: (0, 0)),            # bias2
        ],
        out_specs=pl.BlockSpec((1, H, WC), lambda n: (n, 0, 0)),
        scratch_shapes=[
            pltpu.VMEM((H + 2 * _PAD_ROWS, WC), jnp.bfloat16),  # padded input rows
            pltpu.VMEM((H + 2 * _PAD_ROWS, WC), jnp.bfloat16),  # padded conv1 output
        ],
        compiler_params=pltpu.CompilerParams(
            dimension_semantics=("parallel",),
        ),
        cost_estimate=cost,
    )(x_flat, m1, m2, bt1, bt2)

    out = out_flat.reshape(N, H, W, C)
    return jnp.transpose(out, (0, 3, 1, 2))             # NHWC -> NCHW


def _reference(x_nchw, w1_hwio, w2_hwio,
               gamma1, beta1, mean1, var1,
               gamma2, beta2, mean2, var2, eps=1e-5):
    """Pure-JAX reference with the same folded bf16 weights / f32 accumulation."""
    C = w1_hwio.shape[3]
    w1s, b1 = _fold_bn(w1_hwio, gamma1, beta1, mean1, var1, eps)
    w2s, b2 = _fold_bn(w2_hwio, gamma2, beta2, mean2, var2, eps)
    w1 = w1s.astype(jnp.bfloat16)
    w2 = w2s.astype(jnp.bfloat16)

    x = jnp.transpose(x_nchw, (0, 2, 3, 1)).astype(jnp.bfloat16)
    dn = lax.conv_dimension_numbers(x.shape, w1.shape, ('NHWC', 'HWIO', 'NHWC'))
    y = lax.conv_general_dilated(x, w1, (1, 1), [(1, 1), (1, 1)],
                                 dimension_numbers=dn,
                                 preferred_element_type=jnp.float32)
    y = jnp.maximum(y + b1.reshape(1, 1, 1, C), 0.0)
    y = lax.conv_general_dilated(y.astype(jnp.bfloat16), w2, (1, 1), [(1, 1), (1, 1)],
                                 dimension_numbers=dn,
                                 preferred_element_type=jnp.float32)
    y = jnp.maximum(y + b2.reshape(1, 1, 1, C) + x.astype(jnp.float32), 0.0)
    return jnp.transpose(y, (0, 3, 1, 2)).astype(x_nchw.dtype)


if __name__ == "__main__":
    N, C, H, W = 2, 32, 16, 16          # in_channels == out_channels == 32
    key = jax.random.PRNGKey(0)
    ks = jax.random.split(key, 9)

    x = jax.random.normal(ks[0], (N, C, H, W), jnp.float32)          # NCHW, like PyTorch
    w1 = jax.random.normal(ks[1], (3, 3, C, C), jnp.float32) * 0.05  # HWIO
    w2 = jax.random.normal(ks[2], (3, 3, C, C), jnp.float32) * 0.05  # HWIO

    gamma1 = jax.random.uniform(ks[3], (C,), jnp.float32, 0.5, 1.5)
    beta1  = jax.random.normal(ks[4], (C,), jnp.float32) * 0.1
    mean1  = jax.random.normal(ks[5], (C,), jnp.float32) * 0.1
    var1   = jax.random.uniform(ks[6], (C,), jnp.float32, 0.5, 1.5)
    gamma2 = jax.random.uniform(ks[7], (C,), jnp.float32, 0.5, 1.5)
    beta2  = jax.random.normal(ks[8], (C,), jnp.float32) * 0.1
    mean2  = jnp.zeros((C,), jnp.float32)
    var2   = jnp.ones((C,), jnp.float32)

    out = residual_block(x, w1, w2, gamma1, beta1, mean1, var1,
                         gamma2, beta2, mean2, var2)
    out = jax.block_until_ready(out)

    ref = _reference(x, w1, w2, gamma1, beta1, mean1, var1,
                     gamma2, beta2, mean2, var2)
    assert out.shape == (N, C, H, W)
    # bf16 matmul operands on both sides, f32 accumulation -> tight tolerance.
    assert jnp.allclose(out, ref, rtol=2e-3, atol=2e-3), "mismatch vs reference"

    print("KERNEL_OK")
</pallas_src>

<mosaic_0001>
module attributes {stable_mosaic.version = 11 : i64} {
  func.func @residual_block_kernel(%arg0: i32, %arg1: memref<1x16x512xbf16, #tpu.memory_space<vmem>>, %arg2: memref<3x512x512xbf16, #tpu.memory_space<vmem>>, %arg3: memref<3x512x512xbf16, #tpu.memory_space<vmem>>, %arg4: memref<1x512xf32, #tpu.memory_space<vmem>>, %arg5: memref<1x512xf32, #tpu.memory_space<vmem>>, %arg6: memref<1x16x512xf32, #tpu.memory_space<vmem>>, %arg7: memref<32x512xbf16, #tpu.memory_space<vmem>>, %arg8: memref<32x512xbf16, #tpu.memory_space<vmem>>) attributes {dimension_semantics = [#tpu.dimension_semantics<parallel>], iteration_bounds = array<i64: 2>, scalar_prefetch = 0 : i64, scratch_operands = 2 : i64, tpu.core_type = #tpu.core_type<tc>, window_params = [{transform_indices = @transform_0, window_bounds = array<i64: 1, 16, 512>}, {pipeline_mode = #tpu.pipeline_mode<synchronous>, transform_indices = @transform_1, window_bounds = array<i64: 3, 512, 512>}, {pipeline_mode = #tpu.pipeline_mode<synchronous>, transform_indices = @transform_2, window_bounds = array<i64: 3, 512, 512>}, {pipeline_mode = #tpu.pipeline_mode<synchronous>, transform_indices = @transform_3, window_bounds = array<i64: 1, 512>}, {pipeline_mode = #tpu.pipeline_mode<synchronous>, transform_indices = @transform_4, window_bounds = array<i64: 1, 512>}, {transform_indices = @transform_5, window_bounds = array<i64: 1, 16, 512>}]} {
    %cst = arith.constant 0.000000e+00 : bf16
    %0 = vector.broadcast %cst : bf16 to vector<8x512xbf16>
    %c0 = arith.constant 0 : index
    %c0_0 = arith.constant 0 : index
    %1 = vector.load %arg7[%c0, %c0_0] : memref<32x512xbf16, #tpu.memory_space<vmem>>, vector<8x512xbf16>
    tpu.vector_store %arg7[%c0, %c0_0], %0 {strides = array<i32>} : memref<32x512xbf16, #tpu.memory_space<vmem>>, vector<8x512xbf16>,
    %c24 = arith.constant 24 : index
    %c0_1 = arith.constant 0 : index
    %2 = vector.load %arg7[%c24, %c0_1] : memref<32x512xbf16, #tpu.memory_space<vmem>>, vector<8x512xbf16>
    tpu.vector_store %arg7[%c24, %c0_1], %0 {strides = array<i32>} : memref<32x512xbf16, #tpu.memory_space<vmem>>, vector<8x512xbf16>,
    %c0_2 = arith.constant 0 : index
    %c0_3 = arith.constant 0 : index
    %3 = vector.load %arg8[%c0_2, %c0_3] : memref<32x512xbf16, #tpu.memory_space<vmem>>, vector<8x512xbf16>
    tpu.vector_store %arg8[%c0_2, %c0_3], %0 {strides = array<i32>} : memref<32x512xbf16, #tpu.memory_space<vmem>>, vector<8x512xbf16>,
    %c24_4 = arith.constant 24 : index
    %c0_5 = arith.constant 0 : index
    %4 = vector.load %arg8[%c24_4, %c0_5] : memref<32x512xbf16, #tpu.memory_space<vmem>>, vector<8x512xbf16>
    tpu.vector_store %arg8[%c24_4, %c0_5], %0 {strides = array<i32>} : memref<32x512xbf16, #tpu.memory_space<vmem>>, vector<8x512xbf16>,
    %c0_6 = arith.constant 0 : index
    %c0_7 = arith.constant 0 : index
    %c0_8 = arith.constant 0 : index
    %5 = vector.load %arg1[%c0_6, %c0_7, %c0_8] : memref<1x16x512xbf16, #tpu.memory_space<vmem>>, vector<1x16x512xbf16>
    %6 = vector.shape_cast %5 : vector<1x16x512xbf16> to vector<16x512xbf16>
    %c8 = arith.constant 8 : index
    %c0_9 = arith.constant 0 : index
    %7 = vector.load %arg7[%c8, %c0_9] : memref<32x512xbf16, #tpu.memory_space<vmem>>, vector<16x512xbf16>
    tpu.vector_store %arg7[%c8, %c0_9], %6 {strides = array<i32>} : memref<32x512xbf16, #tpu.memory_space<vmem>>, vector<16x512xbf16>,
    %cst_10 = arith.constant 0.000000e+00 : f32
    %8 = vector.broadcast %cst_10 : f32 to vector<16x512xf32>
    %c7 = arith.constant 7 : index
    %c0_11 = arith.constant 0 : index
    %9 = vector.load %arg7[%c7, %c0_11] : memref<32x512xbf16, #tpu.memory_space<vmem>>, vector<16x512xbf16>
    %c0_12 = arith.constant 0 : index
    %c0_13 = arith.constant 0 : index
    %c0_14 = arith.constant 0 : index
    %10 = vector.load %arg2[%c0_12, %c0_13, %c0_14] : memref<3x512x512xbf16, #tpu.memory_space<vmem>>, vector<1x512x512xbf16>
    %11 = vector.shape_cast %10 : vector<1x512x512xbf16> to vector<512x512xbf16>
    %cst_15 = arith.constant dense<0.000000e+00> : vector<16x512xf32>
    %12 = tpu.matmul %9, %11, %cst_15 {dimension_numbers = #tpu.dot_dimension_numbers<[1], [0], [0], [1], [0, 0, 1, 1], [], []>} : vector<16x512xbf16>, vector<512x512xbf16>, vector<16x512xf32> -> vector<16x512xf32>
    %13 = arith.addf %8, %12 : vector<16x512xf32>
    %c8_16 = arith.constant 8 : index
    %c0_17 = arith.constant 0 : index
    %14 = vector.load %arg7[%c8_16, %c0_17] : memref<32x512xbf16, #tpu.memory_space<vmem>>, vector<16x512xbf16>
    %c1 = arith.constant 1 : index
    %c0_18 = arith.constant 0 : index
    %c0_19 = arith.constant 0 : index
    %15 = vector.load %arg2[%c1, %c0_18, %c0_19] : memref<3x512x512xbf16, #tpu.memory_space<vmem>>, vector<1x512x512xbf16>
    %16 = vector.shape_cast %15 : vector<1x512x512xbf16> to vector<512x512xbf16>
    %cst_20 = arith.constant dense<0.000000e+00> : vector<16x512xf32>
    %17 = tpu.matmul %14, %16, %cst_20 {dimension_numbers = #tpu.dot_dimension_numbers<[1], [0], [0], [1], [0, 0, 1, 1], [], []>} : vector<16x512xbf16>, vector<512x512xbf16>, vector<16x512xf32> -> vector<16x512xf32>
    %18 = arith.addf %13, %17 : vector<16x512xf32>
    %c9 = arith.constant 9 : index
    %c0_21 = arith.constant 0 : index
    %19 = vector.load %arg7[%c9, %c0_21] : memref<32x512xbf16, #tpu.memory_space<vmem>>, vector<16x512xbf16>
    %c2 = arith.constant 2 : index
    %c0_22 = arith.constant 0 : index
    %c0_23 = arith.constant 0 : index
    %20 = vector.load %arg2[%c2, %c0_22, %c0_23] : memref<3x512x512xbf16, #tpu.memory_space<vmem>>, vector<1x512x512xbf16>
    %21 = vector.shape_cast %20 : vector<1x512x512xbf16> to vector<512x512xbf16>
    %cst_24 = arith.constant dense<0.000000e+00> : vector<16x512xf32>
    %22 = tpu.matmul %19, %21, %cst_24 {dimension_numbers = #tpu.dot_dimension_numbers<[1], [0], [0], [1], [0, 0, 1, 1], [], []>} : vector<16x512xbf16>, vector<512x512xbf16>, vector<16x512xf32> -> vector<16x512xf32>
    %23 = arith.addf %18, %22 : vector<16x512xf32>
    %c0_25 = arith.constant 0 : index
    %c0_26 = arith.constant 0 : index
    %24 = vector.load %arg4[%c0_25, %c0_26] : memref<1x512xf32, #tpu.memory_space<vmem>>, vector<1x512xf32>
    %25 = vector.broadcast %24 : vector<1x512xf32> to vector<16x512xf32>
    %26 = arith.addf %23, %25 : vector<16x512xf32>
    %cst_27 = arith.constant 0.000000e+00 : f32
    %27 = vector.broadcast %cst_27 : f32 to vector<16x512xf32>
    %28 = arith.maximumf %26, %27 : vector<16x512xf32>
    %29 = arith.truncf %28 : vector<16x512xf32> to vector<16x512xbf16>
    %c8_28 = arith.constant 8 : index
    %c0_29 = arith.constant 0 : index
    %30 = vector.load %arg8[%c8_28, %c0_29] : memref<32x512xbf16, #tpu.memory_space<vmem>>, vector<16x512xbf16>
    tpu.vector_store %arg8[%c8_28, %c0_29], %29 {strides = array<i32>} : memref<32x512xbf16, #tpu.memory_space<vmem>>, vector<16x512xbf16>,
    %cst_30 = arith.constant 0.000000e+00 : f32
    %31 = vector.broadcast %cst_30 : f32 to vector<16x512xf32>
    %c7_31 = arith.constant 7 : index
    %c0_32 = arith.constant 0 : index
    %32 = vector.load %arg8[%c7_31, %c0_32] : memref<32x512xbf16, #tpu.memory_space<vmem>>, vector<16x512xbf16>
    %c0_33 = arith.constant 0 : index
    %c0_34 = arith.constant 0 : index
    %c0_35 = arith.constant 0 : index
    %33 = vector.load %arg3[%c0_33, %c0_34, %c0_35] : memref<3x512x512xbf16, #tpu.memory_space<vmem>>, vector<1x512x512xbf16>
    %34 = vector.shape_cast %33 : vector<1x512x512xbf16> to vector<512x512xbf16>
    %cst_36 = arith.constant dense<0.000000e+00> : vector<16x512xf32>
    %35 = tpu.matmul %32, %34, %cst_36 {dimension_numbers = #tpu.dot_dimension_numbers<[1], [0], [0], [1], [0, 0, 1, 1], [], []>} : vector<16x512xbf16>, vector<512x512xbf16>, vector<16x512xf32> -> vector<16x512xf32>
    %36 = arith.addf %31, %35 : vector<16x512xf32>
    %c8_37 = arith.constant 8 : index
    %c0_38 = arith.constant 0 : index
    %37 = vector.load %arg8[%c8_37, %c0_38] : memref<32x512xbf16, #tpu.memory_space<vmem>>, vector<16x512xbf16>
    %c1_39 = arith.constant 1 : index
    %c0_40 = arith.constant 0 : index
    %c0_41 = arith.constant 0 : index
    %38 = vector.load %arg3[%c1_39, %c0_40, %c0_41] : memref<3x512x512xbf16, #tpu.memory_space<vmem>>, vector<1x512x512xbf16>
    %39 = vector.shape_cast %38 : vector<1x512x512xbf16> to vector<512x512xbf16>
    %cst_42 = arith.constant dense<0.000000e+00> : vector<16x512xf32>
    %40 = tpu.matmul %37, %39, %cst_42 {dimension_numbers = #tpu.dot_dimension_numbers<[1], [0], [0], [1], [0, 0, 1, 1], [], []>} : vector<16x512xbf16>, vector<512x512xbf16>, vector<16x512xf32> -> vector<16x512xf32>
    %41 = arith.addf %36, %40 : vector<16x512xf32>
    %c9_43 = arith.constant 9 : index
    %c0_44 = arith.constant 0 : index
    %42 = vector.load %arg8[%c9_43, %c0_44] : memref<32x512xbf16, #tpu.memory_space<vmem>>, vector<16x512xbf16>
    %c2_45 = arith.constant 2 : index
    %c0_46 = arith.constant 0 : index
    %c0_47 = arith.constant 0 : index
    %43 = vector.load %arg3[%c2_45, %c0_46, %c0_47] : memref<3x512x512xbf16, #tpu.memory_space<vmem>>, vector<1x512x512xbf16>
    %44 = vector.shape_cast %43 : vector<1x512x512xbf16> to vector<512x512xbf16>
    %cst_48 = arith.constant dense<0.000000e+00> : vector<16x512xf32>
    %45 = tpu.matmul %42, %44, %cst_48 {dimension_numbers = #tpu.dot_dimension_numbers<[1], [0], [0], [1], [0, 0, 1, 1], [], []>} : vector<16x512xbf16>, vector<512x512xbf16>, vector<16x512xf32> -> vector<16x512xf32>
    %46 = arith.addf %41, %45 : vector<16x512xf32>
    %c0_49 = arith.constant 0 : index
    %c0_50 = arith.constant 0 : index
    %47 = vector.load %arg5[%c0_49, %c0_50] : memref<1x512xf32, #tpu.memory_space<vmem>>, vector<1x512xf32>
    %48 = vector.broadcast %47 : vector<1x512xf32> to vector<16x512xf32>
    %49 = arith.addf %46, %48 : vector<16x512xf32>
    %50 = arith.extf %6 : vector<16x512xbf16> to vector<16x512xf32>
    %51 = arith.addf %49, %50 : vector<16x512xf32>
    %cst_51 = arith.constant 0.000000e+00 : f32
    %52 = vector.broadcast %cst_51 : f32 to vector<16x512xf32>
    %53 = arith.maximumf %51, %52 : vector<16x512xf32>
    %54 = vector.shape_cast %53 : vector<16x512xf32> to vector<1x16x512xf32>
    %c0_52 = arith.constant 0 : index
    %c0_53 = arith.constant 0 : index
    %c0_54 = arith.constant 0 : index
    %55 = vector.load %arg6[%c0_52, %c0_53, %c0_54] : memref<1x16x512xf32, #tpu.memory_space<vmem>>, vector<1x16x512xf32>
    tpu.vector_store %arg6[%c0_52, %c0_53, %c0_54], %54 {strides = array<i32>} : memref<1x16x512xf32, #tpu.memory_space<vmem>>, vector<1x16x512xf32>,
    return
  }
  func.func @transform_0(%arg0: i32) -> (i32, i32, i32) {
    %c0_i32 = arith.constant 0 : i32
    %c0_i32_0 = arith.constant 0 : i32
    %c0_i32_1 = arith.constant 0 : i32
    return %arg0, %c0_i32, %c0_i32_0 : i32, i32, i32
  }
  func.func @transform_1(%arg0: i32) -> (i32, i32, i32) {
    %c0_i32 = arith.constant 0 : i32
    %c0_i32_0 = arith.constant 0 : i32
    %c0_i32_1 = arith.constant 0 : i32
    %c0_i32_2 = arith.constant 0 : i32
    return %c0_i32, %c0_i32_0, %c0_i32_1 : i32, i32, i32
  }
  func.func @transform_2(%arg0: i32) -> (i32, i32, i32) {
    %c0_i32 = arith.constant 0 : i32
    %c0_i32_0 = arith.constant 0 : i32
    %c0_i32_1 = arith.constant 0 : i32
    %c0_i32_2 = arith.constant 0 : i32
    return %c0_i32, %c0_i32_0, %c0_i32_1 : i32, i32, i32
  }
  func.func @transform_3(%arg0: i32) -> (i32, i32) {
    %c0_i32 = arith.constant 0 : i32
    %c0_i32_0 = arith.constant 0 : i32
    %c0_i32_1 = arith.constant 0 : i32
    return %c0_i32, %c0_i32_0 : i32, i32
  }
  func.func @transform_4(%arg0: i32) -> (i32, i32) {
    %c0_i32 = arith.constant 0 : i32
    %c0_i32_0 = arith.constant 0 : i32
    %c0_i32_1 = arith.constant 0 : i32
    return %c0_i32, %c0_i32_0 : i32, i32
  }
  func.func @transform_5(%arg0: i32) -> (i32, i32, i32) {
    %c0_i32 = arith.constant 0 : i32
    %c0_i32_0 = arith.constant 0 : i32
    %c0_i32_1 = arith.constant 0 : i32
    return %arg0, %c0_i32, %c0_i32_0 : i32, i32, i32
  }
}

</mosaic_0001>

<llo_original>
// kernel: tpu_custom_call.1
$region0: #{tpu_custom_call.1}
  #allocation0 [shape = 'u32[]', space=smem, size = 0x4, offset = 0x4, fixed_abs, tag = 'smem constant byte address 0x4 - core index']
  #allocation1 [shape = 'u32[144,128]{1,0:T(1,128)}', space=vmem, size = 0x12000, scoped, tag = 'internal scratch']
  #allocation2 [shape = 'bf16[32,512]{1,0:T(8,128)(2,1)}', space=vmem, size = 0x8000, scoped, tag = 'scratch operand']
  #allocation3 [shape = 'bf16[32,512]{1,0:T(8,128)(2,1)}', space=vmem, size = 0x8000, scoped, tag = 'scratch operand']
  %s0 = inlined_call_operand.hbm [shape: bf16[2,16,512], index: 0, kind: input, shape index: {}]
  %s1 = inlined_call_operand.hbm [shape: bf16[3,512,512], index: 1, kind: input, shape index: {}]
  %s2 = inlined_call_operand.hbm [shape: bf16[3,512,512], index: 2, kind: input, shape index: {}]
  %s3 = inlined_call_operand.hbm [shape: f32[1,512], index: 3, kind: input, shape index: {}]
  %s4 = inlined_call_operand.hbm [shape: f32[1,512], index: 4, kind: input, shape index: {}]
  %s5 = inlined_call_operand.hbm [shape: f32[2,16,512], index: 5, kind: output, shape index: {}]
  %s6 = sld [smem:[#allocation0]]
  $region73: #{tpu_custom_call.1} parent=0
    _
  %s8 = ssub.s32 1, %s6
  %s9 = scalar_select 0, %s8, %s6
  $region1: #{tpu_custom_call.1} parent=0
    #allocation4 [shape = 'u8[32768]{0}', space=vmem, size = 0x8000, scoped, tag = 'input window, operand 0']
    #allocation5 [shape = 's32[2]{0}', space=sflag, size = 0x8, scoped, tag = 'scoped memory for tpu_custom_call.1']
    #allocation6 [shape = 's32[2]{0}', space=sflag, size = 0x8, scoped, tag = 'scoped memory for tpu_custom_call.1']
    #allocation7 [shape = 'u8[1572864]{0}', space=vmem, size = 0x180000, scoped, tag = 'input window, operand 1, single buffered']
    #allocation8 [shape = 's32[1]{0}', space=sflag, size = 0x4, scoped, tag = 'scoped memory for tpu_custom_call.1']
    #allocation9 [shape = 'u8[1572864]{0}', space=vmem, size = 0x180000, scoped, tag = 'input window, operand 2, single buffered']
    #allocation10 [shape = 'u8[2048]{0}', space=vmem, size = 0x800, scoped, tag = 'input window, operand 3, single buffered']
    #allocation11 [shape = 's32[1]{0}', space=sflag, size = 0x4, scoped, tag = 'scoped memory for tpu_custom_call.1']
    #allocation12 [shape = 'u8[2048]{0}', space=vmem, size = 0x800, scoped, tag = 'input window, operand 4, single buffered']
    #allocation13 [shape = 'u8[65536]{0}', space=vmem, size = 0x10000, scoped, tag = 'output window, operand 0']
    %10 = vsyncpa [#allocation5], 0
    %s11 = scalar_lea.sflag [#allocation5], 1
    %12 = vsyncpa %s11, 0
    %13 = vsyncpa [#allocation8], 0
    %14 = vsyncpa [#allocation11], 0
    %15 = vsyncpa [#allocation6], 0
    %s16 = scalar_lea.sflag [#allocation6], 1
    %17 = vsyncpa %s16, 0
    loop: start=0, step=1, limit=4
    $region2: #{tpu_custom_call.1} parent=1 // loop_pre_header
      _
    $region3: #{tpu_custom_call.1} parent=1 // loop_header
      %s19 = sphi 0, %s23
      %p20 = scmp.ge.s32.totalorder %s19, 4
      %s29 = sphi 0, %s31
      %s32 = sphi 0, %s29
      %s33 = sphi 0, %s32
      %s49 = sphi 0, %s33
      %s53 = sphi 0, %s53
      %s55 = sphi 0, %s53
      %s56 = sphi 0, %s55
      %s70 = sphi 0, %s56
      %s74 = sphi 0, %s74
      %s76 = sphi 0, %s74
      %s77 = sphi 0, %s76
      %s91 = sphi 0, %s77
      %s95 = sphi 0, %s95
      %s97 = sphi 0, %s95
      %s98 = sphi 0, %s97
      %s112 = sphi 0, %s98
      %s116 = sphi 0, %s116
      %s118 = sphi 0, %s116
      %s119 = sphi 0, %s118
      %s133 = sphi 0, %s119
      %s139 = sphi 0, %s141
      %s142 = sphi 0, %s139
      %s143 = sphi 0, %s142
      %s159 = sphi 0, %s143
    $region4: #{tpu_custom_call.1} parent=1 // loop_header_branch
      %22 = sbr.rel (%p20) target = $region8
    $region5: #{tpu_custom_call.1} parent=1 // loop_body
      %s24 = ssub.s32 %s19, 1
      %s25 = ssub.s32 %s19, 2
      %s26 = sadd.s32 %s19, 1
      %s27 = ssub.s32 %s19, %s26
      %p28 = scmp.eq.s32.totalorder %s27, 0
      %s30 = sadd.s32 %s29, 1
      %s31 = scalar_select %p28, %s29, %s30
      %p34 = pneg %p28
      %p35 = scmp.eq.s32.totalorder %s19, 1
      %p36 = por %p34, %p35
      %p37 = scmp.ne.s32.totalorder %s29, %s32
      %p38 = scmp.eq.s32.totalorder %s19, 0
      %p39 = por %p37, %p38
      %p40 = scmp.ne.s32.totalorder %s29, %s32
      %p41 = scmp.eq.s32.totalorder %s24, 1
      %p42 = por %p40, %p41
      %p43 = scmp.ne.s32.totalorder %s32, %s33
      %p44 = scmp.eq.s32.totalorder %s24, 0
      %p45 = por %p43, %p44
      %p46 = scmp.ne.s32.totalorder %s32, %s33
      %p47 = scmp.eq.s32.totalorder %s25, 1
      %p48 = por %p46, %p47
      %p50 = scmp.ne.s32.totalorder %s33, %s49
      %p51 = scmp.eq.s32.totalorder %s25, 0
      %p52 = por %p50, %p51
      %s54 = sadd.s32 %s53, 1
      %p57 = scmp.eq.s32.totalorder %s19, 1
      %p58 = scmp.ne.s32.totalorder %s53, %s55
      %p59 = scmp.eq.s32.totalorder %s19, 0
      %p60 = por %p58, %p59
      %p61 = scmp.ne.s32.totalorder %s53, %s55
      %p62 = scmp.eq.s32.totalorder %s24, 1
      %p63 = por %p61, %p62
      %p64 = scmp.ne.s32.totalorder %s55, %s56
      %p65 = scmp.eq.s32.totalorder %s24, 0
      %p66 = por %p64, %p65
      %p67 = scmp.ne.s32.totalorder %s55, %s56
      %p68 = scmp.eq.s32.totalorder %s25, 1
      %p69 = por %p67, %p68
      %p71 = scmp.ne.s32.totalorder %s56, %s70
      %p72 = scmp.eq.s32.totalorder %s25, 0
      %p73 = por %p71, %p72
      %s75 = sadd.s32 %s74, 1
      %p78 = scmp.eq.s32.totalorder %s19, 1
      %p79 = scmp.ne.s32.totalorder %s74, %s76
      %p80 = scmp.eq.s32.totalorder %s19, 0
      %p81 = por %p79, %p80
      %p82 = scmp.ne.s32.totalorder %s74, %s76
      %p83 = scmp.eq.s32.totalorder %s24, 1
      %p84 = por %p82, %p83
      %p85 = scmp.ne.s32.totalorder %s76, %s77
      %p86 = scmp.eq.s32.totalorder %s24, 0
      %p87 = por %p85, %p86
      %p88 = scmp.ne.s32.totalorder %s76, %s77
      %p89 = scmp.eq.s32.totalorder %s25, 1
      %p90 = por %p88, %p89
      %p92 = scmp.ne.s32.totalorder %s77, %s91
      %p93 = scmp.eq.s32.totalorder %s25, 0
      %p94 = por %p92, %p93
      %s96 = sadd.s32 %s95, 1
      %p99 = scmp.eq.s32.totalorder %s19, 1
      %p100 = scmp.ne.s32.totalorder %s95, %s97
      %p101 = scmp.eq.s32.totalorder %s19, 0
      %p102 = por %p100, %p101
      %p103 = scmp.ne.s32.totalorder %s95, %s97
      %p104 = scmp.eq.s32.totalorder %s24, 1
      %p105 = por %p103, %p104
      %p106 = scmp.ne.s32.totalorder %s97, %s98
      %p107 = scmp.eq.s32.totalorder %s24, 0
      %p108 = por %p106, %p107
      %p109 = scmp.ne.s32.totalorder %s97, %s98
      %p110 = scmp.eq.s32.totalorder %s25, 1
      %p111 = por %p109, %p110
      %p113 = scmp.ne.s32.totalorder %s98, %s112
      %p114 = scmp.eq.s32.totalorder %s25, 0
      %p115 = por %p113, %p114
      %s117 = sadd.s32 %s116, 1
      %p120 = scmp.eq.s32.totalorder %s19, 1
      %p121 = scmp.ne.s32.totalorder %s116, %s118
      %p122 = scmp.eq.s32.totalorder %s19, 0
      %p123 = por %p121, %p122
      %p124 = scmp.ne.s32.totalorder %s116, %s118
      %p125 = scmp.eq.s32.totalorder %s24, 1
      %p126 = por %p124, %p125
      %p127 = scmp.ne.s32.totalorder %s118, %s119
      %p128 = scmp.eq.s32.totalorder %s24, 0
      %p129 = por %p127, %p128
      %p130 = scmp.ne.s32.totalorder %s118, %s119
      %p131 = scmp.eq.s32.totalorder %s25, 1
      %p132 = por %p130, %p131
      %p134 = scmp.ne.s32.totalorder %s119, %s133
      %p135 = scmp.eq.s32.totalorder %s25, 0
      %p136 = por %p134, %p135
      %s137 = ssub.s32 %s19, %s26
      %p138 = scmp.eq.s32.totalorder %s137, 0
      %s140 = sadd.s32 %s139, 1
      %s141 = scalar_select %p138, %s139, %s140
      %p144 = pneg %p138
      %p145 = scmp.eq.s32.totalorder %s19, 1
      %p146 = por %p144, %p145
      %p147 = scmp.ne.s32.totalorder %s139, %s142
      %p148 = scmp.eq.s32.totalorder %s19, 0
      %p149 = por %p147, %p148
      %p150 = scmp.ne.s32.totalorder %s139, %s142
      %p151 = scmp.eq.s32.totalorder %s24, 1
      %p152 = por %p150, %p151
      %p153 = scmp.ne.s32.totalorder %s142, %s143
      %p154 = scmp.eq.s32.totalorder %s24, 0
      %p155 = por %p153, %p154
      %p156 = scmp.ne.s32.totalorder %s142, %s143
      %p157 = scmp.eq.s32.totalorder %s25, 1
      %p158 = por %p156, %p157
      %p160 = scmp.ne.s32.totalorder %s143, %s159
      %p161 = scmp.eq.s32.totalorder %s25, 0
      %p162 = por %p160, %p161
      %p163 = scmp.le.s32.totalorder 1, %s19
      %p164 = scmp.lt.s32.totalorder %s19, 3
      %p165 = pnand %p163, %p164
      %p166 = pneg %p165
      // Predicated region
      $region9: #{tpu_custom_call.1} parent=5 // pred_check
        _
      $region10: #{tpu_custom_call.1} parent=5 // pred_check_branch
        %168 = sbr.rel (%p165) target = $region12
      $region11: #{tpu_custom_call.1} parent=5 // pred_region
        %s169 = ssub.s32 %s19, 1
        // Predicated region
        $region13: #{tpu_custom_call.1} parent=11 // pred_check
          %p170 = pneg %p66
        $region14: #{tpu_custom_call.1} parent=11 // pred_check_branch
          %172 = sbr.rel (%p170) target = $region16
        $region15: #{tpu_custom_call.1} parent=11 // pred_region
          %s174 = ssub.s32 49152, 49152
          %175 = vsyncadd [#allocation8], %s174
          %s176 = sshll.u32 [#allocation7], 4
          %s177 = int_to_ptr.vmem [resolvable:$true] %s176
          %182 = dma.hbm_to_vmem [thread:$0]  %s1, 49152, %s177, [#allocation8], 256, 256, 16
        $region16: #{tpu_custom_call.1} parent=11 // pred_fallthru
          _
        // Predicated region
        $region17: #{tpu_custom_call.1} parent=11 // pred_check
          %p183 = pneg %p87
        $region18: #{tpu_custom_call.1} parent=11 // pred_check_branch
          %185 = sbr.rel (%p183) target = $region20
        $region19: #{tpu_custom_call.1} parent=11 // pred_region
          %s187 = ssub.s32 49152, 49152
          %188 = vsyncadd [#allocation8], %s187
          %s189 = sshll.u32 [#allocation9], 4
          %s190 = int_to_ptr.vmem [resolvable:$true] %s189
          %195 = dma.hbm_to_vmem [thread:$0]  %s2, 49152, %s190, [#allocation8], 256, 256, 16
        $region20: #{tpu_custom_call.1} parent=11 // pred_fallthru
          _
        // Predicated region
        $region21: #{tpu_custom_call.1} parent=11 // pred_check
          %p196 = pneg %p108
        $region22: #{tpu_custom_call.1} parent=11 // pred_check_branch
          %198 = sbr.rel (%p196) target = $region24
        $region23: #{tpu_custom_call.1} parent=11 // pred_region
          %s200 = ssub.s32 64, 64
          %201 = vsyncadd [#allocation11], %s200
          %s203 = sshll.u32 [#allocation10], 4
          %s204 = int_to_ptr.vmem [resolvable:$true] %s203
          %206 = dma.hbm_to_vmem [thread:$0]  %s3, 64, %s204, [#allocation11]
        $region24: #{tpu_custom_call.1} parent=11 // pred_fallthru
          _
        // Predicated region
        $region25: #{tpu_custom_call.1} parent=11 // pred_check
          %p207 = pneg %p129
        $region26: #{tpu_custom_call.1} parent=11 // pred_check_branch
          %209 = sbr.rel (%p207) target = $region28
        $region27: #{tpu_custom_call.1} parent=11 // pred_region
          %s211 = ssub.s32 64, 64
          %212 = vsyncadd [#allocation11], %s211
          %s214 = sshll.u32 [#allocation12], 4
          %s215 = int_to_ptr.vmem [resolvable:$true] %s214
          %217 = dma.hbm_to_vmem [thread:$0]  %s4, 64, %s215, [#allocation11]
        $region28: #{tpu_custom_call.1} parent=11 // pred_fallthru
          _
      $region12: #{tpu_custom_call.1} parent=5 // pred_fallthru
        _
      %p218 = scmp.lt.s32.totalorder %s19, 2
      // Predicated region
      $region29: #{tpu_custom_call.1} parent=5 // pred_check
        %p219 = pneg %p218
      $region30: #{tpu_custom_call.1} parent=5 // pred_check_branch
        %221 = sbr.rel (%p219) target = $region32
      $region31: #{tpu_custom_call.1} parent=5 // pred_region
        // Predicated region
        $region33: #{tpu_custom_call.1} parent=31 // pred_check
          %p222 = pneg %p39
        $region34: #{tpu_custom_call.1} parent=31 // pred_check_branch
          %224 = sbr.rel (%p222) target = $region36
        $region35: #{tpu_custom_call.1} parent=31 // pred_region
          %s225 = sand.u32 %s29, 1
          %s226 = scalar_lea.sflag [#allocation5], %s225
          %s227 = sand.u32 %s29, 1
          %s228 = smul.addr %s227, 32
          %s229 = scalar_lea.vmem [#allocation4], %s228
          %s231 = ssub.s32 512, 512
          %232 = vsyncadd %s226, %s231
          %s233 = smul.addr %s19, 8
          %s234 = smul.addr %s233, 64
          %s235 = scalar_lea.hbm %s0, %s234
          %s236 = sshll.u32 %s229, 4
          %s237 = int_to_ptr.vmem [resolvable:$true] %s236
          %242 = dma.hbm_to_vmem [thread:$0]  %s235, 512, %s237, %s226, 256, 256, 16
        $region36: #{tpu_custom_call.1} parent=31 // pred_fallthru
          _
      $region32: #{tpu_custom_call.1} parent=5 // pred_fallthru
        _
      %p243 = scmp.le.s32.totalorder 1, %s19
      %p244 = scmp.lt.s32.totalorder %s19, 3
      %p245 = pnand %p243, %p244
      %p246 = pneg %p245
      // Predicated region
      $region37: #{tpu_custom_call.1} parent=5 // pred_check
        _
      $region38: #{tpu_custom_call.1} parent=5 // pred_check_branch
        %248 = sbr.rel (%p245) target = $region40
      $region39: #{tpu_custom_call.1} parent=5 // pred_region
        %s249 = ssub.s32 %s19, 1
        %s250 = sand.u32 %s32, 1
        %s251 = scalar_lea.sflag [#allocation5], %s250
        %s252 = sand.u32 %s32, 1
        %s253 = smul.addr %s252, 32
        %s254 = scalar_lea.vmem [#allocation4], %s253
        // Predicated region
        $region41: #{tpu_custom_call.1} parent=39 // pred_check
          %p255 = pneg %p45
        $region42: #{tpu_custom_call.1} parent=39 // pred_check_branch
          %257 = sbr.rel (%p255) target = $region44
        $region43: #{tpu_custom_call.1} parent=39 // pred_region
          %258 = dma.done %s251, 512
        $region44: #{tpu_custom_call.1} parent=39 // pred_fallthru
          _
        // Predicated region
        $region45: #{tpu_custom_call.1} parent=39 // pred_check
          %p259 = pneg %p66
        $region46: #{tpu_custom_call.1} parent=39 // pred_check_branch
          %261 = sbr.rel (%p259) target = $region48
        $region47: #{tpu_custom_call.1} parent=39 // pred_region
          %262 = dma.done [#allocation8], 49152
        $region48: #{tpu_custom_call.1} parent=39 // pred_fallthru
          _
        // Predicated region
        $region49: #{tpu_custom_call.1} parent=39 // pred_check
          %p263 = pneg %p87
        $region50: #{tpu_custom_call.1} parent=39 // pred_check_branch
          %265 = sbr.rel (%p263) target = $region52
        $region51: #{tpu_custom_call.1} parent=39 // pred_region
          %266 = dma.done [#allocation8], 49152
        $region52: #{tpu_custom_call.1} parent=39 // pred_fallthru
          _
        // Predicated region
        $region53: #{tpu_custom_call.1} parent=39 // pred_check
          %p267 = pneg %p108
        $region54: #{tpu_custom_call.1} parent=39 // pred_check_branch
          %269 = sbr.rel (%p267) target = $region56
        $region55: #{tpu_custom_call.1} parent=39 // pred_region
          %270 = dma.done [#allocation11], 64
        $region56: #{tpu_custom_call.1} parent=39 // pred_fallthru
          _
        // Predicated region
        $region57: #{tpu_custom_call.1} parent=39 // pred_check
          %p271 = pneg %p129
        $region58: #{tpu_custom_call.1} parent=39 // pred_check_branch
          %273 = sbr.rel (%p271) target = $region60
        $region59: #{tpu_custom_call.1} parent=39 // pred_region
          %274 = dma.done [#allocation11], 64
        $region60: #{tpu_custom_call.1} parent=39 // pred_fallthru
          _
        %s275 = sand.u32 %s32, 1
        %s276 = scalar_lea.sflag [#allocation5], %s275
        %s277 = sand.u32 %s32, 1
        %s278 = smul.addr %s277, 32
        %s279 = scalar_lea.vmem [#allocation4], %s278
        %p280 = pneg %p45
        %p281 = pneg %p42
        %p282 = pneg %p66
        %p283 = pneg %p63
        %p284 = pneg %p87
        %p285 = pneg %p84
        %p286 = pneg %p108
        %p287 = pneg %p105
        %p288 = pneg %p129
        %p289 = pneg %p126
        %p290 = pneg %p155
        %p291 = pneg %p152
        %s292 = sand.u32 %s142, 1
        %s293 = scalar_lea.sflag [#allocation6], %s292
        %s294 = sand.u32 %s142, 1
        %s295 = smul.addr %s294, 64
        %s296 = scalar_lea.vmem [#allocation13], %s295
        %298 = vst [vmem:[#allocation2] sm:$0xff] 0
        %299 = vst [vmem:[#allocation2 + $0x8] sm:$0xff] 0
        %300 = vst [vmem:[#allocation2 + $0x30] sm:$0xff] 0
        %301 = vst [vmem:[#allocation2 + $0x38] sm:$0xff] 0
        %302 = vst [vmem:[#allocation3] sm:$0xff] 0
        %303 = vst [vmem:[#allocation3 + $0x8] sm:$0xff] 0
        %304 = vst [vmem:[#allocation3 + $0x30] sm:$0xff] 0
        %305 = vst [vmem:[#allocation3 + $0x38] sm:$0xff] 0
        %v306 = vld [vmem:[%s254] sm:$0xff]
        %v307 = vld [vmem:[%s254 + $0x8] sm:$0xff]
        %v308 = vld [vmem:[%s254 + $0x10] sm:$0xff]
        %v309 = vld [vmem:[%s254 + $0x18] sm:$0xff]
        %310 = vst [vmem:[#allocation2 + $0x10] sm:$0xff] %v306
        %311 = vst [vmem:[#allocation2 + $0x18] sm:$0xff] %v307
        %312 = vst [vmem:[#allocation2 + $0x20] sm:$0xff] %v308
        %313 = vst [vmem:[#allocation2 + $0x28] sm:$0xff] %v309
        %v314 = vld [vmem:[#allocation2] sm:$0x88]
        %v315 = vld [vmem:[#allocation2 + $0x8] sm:$0x88]
        %v316 = vld [vmem:[#allocation2 + $0x10] sm:$0xff]
        %v317 = vld [vmem:[#allocation2 + $0x18] sm:$0xff]
        %v318 = vld [vmem:[#allocation2 + $0x20] sm:$0xff]
        %v319 = vld [vmem:[#allocation2 + $0x28] sm:$0xff]
        %v320 = vld [vmem:[#allocation7] sm:$0xff]
        %v321 = vld [vmem:[#allocation7 + $0x8] sm:$0xff]
        %v322 = vld [vmem:[#allocation7 + $0x10] sm:$0xff]
        %v323 = vld [vmem:[#allocation7 + $0x18] sm:$0xff]
        %v324 = vld [vmem:[#allocation7 + $0x20] sm:$0xff]
        %v325 = vld [vmem:[#allocation7 + $0x28] sm:$0xff]
        %v326 = vld [vmem:[#allocation7 + $0x30] sm:$0xff]
        %v327 = vld [vmem:[#allocation7 + $0x38] sm:$0xff]
        %v328 = vld [vmem:[#allocation7 + $0x40] sm:$0xff]
        %v329 = vld [vmem:[#allocation7 + $0x48] sm:$0xff]
        %v330 = vld [vmem:[#allocation7 + $0x50] sm:$0xff]
        %v331 = vld [vmem:[#allocation7 + $0x58] sm:$0xff]
        %v332 = vld [vmem:[#allocation7 + $0x60] sm:$0xff]
        %v333 = vld [vmem:[#allocation7 + $0x68] sm:$0xff]
        %v334 = vld [vmem:[#allocation7 + $0x70] sm:$0xff]
        %v335 = vld [vmem:[#allocation7 + $0x78] sm:$0xff]
        %v336 = vld [vmem:[#allocation7 + $0x80] sm:$0xff]
        %v337 = vld [vmem:[#allocation7 + $0x88] sm:$0xff]
        %v338 = vld [vmem:[#allocation7 + $0x90] sm:$0xff]
        %v339 = vld [vmem:[#allocation7 + $0x98] sm:$0xff]
        %v340 = vld [vmem:[#allocation7 + $0xa0] sm:$0xff]
        %v341 = vld [vmem:[#allocation7 + $0xa8] sm:$0xff]
        %v342 = vld [vmem:[#allocation7 + $0xb0] sm:$0xff]
        %v343 = vld [vmem:[#allocation7 + $0xb8] sm:$0xff]
        %v344 = vld [vmem:[#allocation7 + $0xc0] sm:$0xff]
        %v345 = vld [vmem:[#allocation7 + $0xc8] sm:$0xff]
        %v346 = vld [vmem:[#allocation7 + $0xd0] sm:$0xff]
        %v347 = vld [vmem:[#allocation7 + $0xd8] sm:$0xff]
        %v348 = vld [vmem:[#allocation7 + $0xe0] sm:$0xff]
        %v349 = vld [vmem:[#allocation7 + $0xe8] sm:$0xff]
        %v350 = vld [vmem:[#allocation7 + $0xf0] sm:$0xff]
        %v351 = vld [vmem:[#allocation7 + $0xf8] sm:$0xff]
        %v352 = vld [vmem:[#allocation7 + $0x100] sm:$0xff]
        %v353 = vld [vmem:[#allocation7 + $0x108] sm:$0xff]
        %v354 = vld [vmem:[#allocation7 + $0x110] sm:$0xff]
        %v355 = vld [vmem:[#allocation7 + $0x118] sm:$0xff]
        %v356 = vld [vmem:[#allocation7 + $0x120] sm:$0xff]
        %v357 = vld [vmem:[#allocation7 + $0x128] sm:$0xff]
        %v358 = vld [vmem:[#allocation7 + $0x130] sm:$0xff]
        %v359 = vld [vmem:[#allocation7 + $0x138] sm:$0xff]
        %v360 = vld [vmem:[#allocation7 + $0x140] sm:$0xff]
        %v361 = vld [vmem:[#allocation7 + $0x148] sm:$0xff]
        %v362 = vld [vmem:[#allocation7 + $0x150] sm:$0xff]
        %v363 = vld [vmem:[#allocation7 + $0x158] sm:$0xff]
        %v364 = vld [vmem:[#allocation7 + $0x160] sm:$0xff]
        %v365 = vld [vmem:[#allocation7 + $0x168] sm:$0xff]
        %v366 = vld [vmem:[#allocation7 + $0x170] sm:$0xff]
        %v367 = vld [vmem:[#allocation7 + $0x178] sm:$0xff]
        %v368 = vld [vmem:[#allocation7 + $0x180] sm:$0xff]
        %v369 = vld [vmem:[#allocation7 + $0x188] sm:$0xff]
        %v370 = vld [vmem:[#allocation7 + $0x190] sm:$0xff]
        %v371 = vld [vmem:[#allocation7 + $0x198] sm:$0xff]
        %v372 = vld [vmem:[#allocation7 + $0x1a0] sm:$0xff]
        %v373 = vld [vmem:[#allocation7 + $0x1a8] sm:$0xff]
        %v374 = vld [vmem:[#allocation7 + $0x1b0] sm:$0xff]
        %v375 = vld [vmem:[#allocation7 + $0x1b8] sm:$0xff]
        %v376 = vld [vmem:[#allocation7 + $0x1c0] sm:$0xff]
        %v377 = vld [vmem:[#allocation7 + $0x1c8] sm:$0xff]
        %v378 = vld [vmem:[#allocation7 + $0x1d0] sm:$0xff]
        %v379 = vld [vmem:[#allocation7 + $0x1d8] sm:$0xff]
        %v380 = vld [vmem:[#allocation7 + $0x1e0] sm:$0xff]
        %v381 = vld [vmem:[#allocation7 + $0x1e8] sm:$0xff]
        %v382 = vld [vmem:[#allocation7 + $0x1f0] sm:$0xff]
        %v383 = vld [vmem:[#allocation7 + $0x1f8] sm:$0xff]
        %v384 = vld [vmem:[#allocation7 + $0x200] sm:$0xff]
        %v385 = vld [vmem:[#allocation7 + $0x208] sm:$0xff]
        %v386 = vld [vmem:[#allocation7 + $0x210] sm:$0xff]
        %v387 = vld [vmem:[#allocation7 + $0x218] sm:$0xff]
        %v388 = vld [vmem:[#allocation7 + $0x220] sm:$0xff]
        %v389 = vld [vmem:[#allocation7 + $0x228] sm:$0xff]
        %v390 = vld [vmem:[#allocation7 + $0x230] sm:$0xff]
        %v391 = vld [vmem:[#allocation7 + $0x238] sm:$0xff]
        %v392 = vld [vmem:[#allocation7 + $0x240] sm:$0xff]
        %v393 = vld [vmem:[#allocation7 + $0x248] sm:$0xff]
        %v394 = vld [vmem:[#allocation7 + $0x250] sm:$0xff]
        %v395 = vld [vmem:[#allocation7 + $0x258] sm:$0xff]
        %v396 = vld [vmem:[#allocation7 + $0x260] sm:$0xff]
        %v397 = vld [vmem:[#allocation7 + $0x268] sm:$0xff]
        %v398 = vld [vmem:[#allocation7 + $0x270] sm:$0xff]
        %v399 = vld [vmem:[#allocation7 + $0x278] sm:$0xff]
        %v400 = vld [vmem:[#allocation7 + $0x280] sm:$0xff]
        %v401 = vld [vmem:[#allocation7 + $0x288] sm:$0xff]
        %v402 = vld [vmem:[#allocation7 + $0x290] sm:$0xff]
        %v403 = vld [vmem:[#allocation7 + $0x298] sm:$0xff]
        %v404 = vld [vmem:[#allocation7 + $0x2a0] sm:$0xff]
        %v405 = vld [vmem:[#allocation7 + $0x2a8] sm:$0xff]
        %v406 = vld [vmem:[#allocation7 + $0x2b0] sm:$0xff]
        %v407 = vld [vmem:[#allocation7 + $0x2b8] sm:$0xff]
        %v408 = vld [vmem:[#allocation7 + $0x2c0] sm:$0xff]
        %v409 = vld [vmem:[#allocation7 + $0x2c8] sm:$0xff]
        %v410 = vld [vmem:[#allocation7 + $0x2d0] sm:$0xff]
        %v411 = vld [vmem:[#allocation7 + $0x2d8] sm:$0xff]
        %v412 = vld [vmem:[#allocation7 + $0x2e0] sm:$0xff]
        %v413 = vld [vmem:[#allocation7 + $0x2e8] sm:$0xff]
        %v414 = vld [vmem:[#allocation7 + $0x2f0] sm:$0xff]
        %v415 = vld [vmem:[#allocation7 + $0x2f8] sm:$0xff]
        %v416 = vld [vmem:[#allocation7 + $0x300] sm:$0xff]
        %v417 = vld [vmem:[#allocation7 + $0x308] sm:$0xff]
        %v418 = vld [vmem:[#allocation7 + $0x310] sm:$0xff]
        %v419 = vld [vmem:[#allocation7 + $0x318] sm:$0xff]
        %v420 = vld [vmem:[#allocation7 + $0x320] sm:$0xff]
        %v421 = vld [vmem:[#allocation7 + $0x328] sm:$0xff]
        %v422 = vld [vmem:[#allocation7 + $0x330] sm:$0xff]
        %v423 = vld [vmem:[#allocation7 + $0x338] sm:$0xff]
        %v424 = vld [vmem:[#allocation7 + $0x340] sm:$0xff]
        %v425 = vld [vmem:[#allocation7 + $0x348] sm:$0xff]
        %v426 = vld [vmem:[#allocation7 + $0x350] sm:$0xff]
        %v427 = vld [vmem:[#allocation7 + $0x358] sm:$0xff]
        %v428 = vld [vmem:[#allocation7 + $0x360] sm:$0xff]
        %v429 = vld [vmem:[#allocation7 + $0x368] sm:$0xff]
        %v430 = vld [vmem:[#allocation7 + $0x370] sm:$0xff]
        %v431 = vld [vmem:[#allocation7 + $0x378] sm:$0xff]
        %v432 = vld [vmem:[#allocation7 + $0x380] sm:$0xff]
        %v433 = vld [vmem:[#allocation7 + $0x388] sm:$0xff]
        %v434 = vld [vmem:[#allocation7 + $0x390] sm:$0xff]
        %v435 = vld [vmem:[#allocation7 + $0x398] sm:$0xff]
        %v436 = vld [vmem:[#allocation7 + $0x3a0] sm:$0xff]
        %v437 = vld [vmem:[#allocation7 + $0x3a8] sm:$0xff]
        %v438 = vld [vmem:[#allocation7 + $0x3b0] sm:$0xff]
        %v439 = vld [vmem:[#allocation7 + $0x3b8] sm:$0xff]
        %v440 = vld [vmem:[#allocation7 + $0x3c0] sm:$0xff]
        %v441 = vld [vmem:[#allocation7 + $0x3c8] sm:$0xff]
        %v442 = vld [vmem:[#allocation7 + $0x3d0] sm:$0xff]
        %v443 = vld [vmem:[#allocation7 + $0x3d8] sm:$0xff]
        %v444 = vld [vmem:[#allocation7 + $0x3e0] sm:$0xff]
        %v445 = vld [vmem:[#allocation7 + $0x3e8] sm:$0xff]
        %v446 = vld [vmem:[#allocation7 + $0x3f0] sm:$0xff]
        %v447 = vld [vmem:[#allocation7 + $0x3f8] sm:$0xff]
        %s448 = scalar_lea.vmem [#allocation7], 1024
        %v449 = vld [vmem:[%s448] sm:$0xff]
        %v450 = vld [vmem:[%s448 + $0x8] sm:$0xff]
        %v451 = vld [vmem:[%s448 + $0x10] sm:$0xff]
        %v452 = vld [vmem:[%s448 + $0x18] sm:$0xff]
        %v453 = vld [vmem:[%s448 + $0x20] sm:$0xff]
        %v454 = vld [vmem:[%s448 + $0x28] sm:$0xff]
        %v455 = vld [vmem:[%s448 + $0x30] sm:$0xff]
        %v456 = vld [vmem:[%s448 + $0x38] sm:$0xff]
        %v457 = vld [vmem:[%s448 + $0x40] sm:$0xff]
        %v458 = vld [vmem:[%s448 + $0x48] sm:$0xff]
        %v459 = vld [vmem:[%s448 + $0x50] sm:$0xff]
        %v460 = vld [vmem:[%s448 + $0x58] sm:$0xff]
        %v461 = vld [vmem:[%s448 + $0x60] sm:$0xff]
        %v462 = vld [vmem:[%s448 + $0x68] sm:$0xff]
        %v463 = vld [vmem:[%s448 + $0x70] sm:$0xff]
        %v464 = vld [vmem:[%s448 + $0x78] sm:$0xff]
        %v465 = vld [vmem:[%s448 + $0x80] sm:$0xff]
        %v466 = vld [vmem:[%s448 + $0x88] sm:$0xff]
        %v467 = vld [vmem:[%s448 + $0x90] sm:$0xff]
        %v468 = vld [vmem:[%s448 + $0x98] sm:$0xff]
        %v469 = vld [vmem:[%s448 + $0xa0] sm:$0xff]
        %v470 = vld [vmem:[%s448 + $0xa8] sm:$0xff]
        %v471 = vld [vmem:[%s448 + $0xb0] sm:$0xff]
        %v472 = vld [vmem:[%s448 + $0xb8] sm:$0xff]
        %v473 = vld [vmem:[%s448 + $0xc0] sm:$0xff]
        %v474 = vld [vmem:[%s448 + $0xc8] sm:$0xff]
        %v475 = vld [vmem:[%s448 + $0xd0] sm:$0xff]
        %v476 = vld [vmem:[%s448 + $0xd8] sm:$0xff]
        %v477 = vld [vmem:[%s448 + $0xe0] sm:$0xff]
        %v478 = vld [vmem:[%s448 + $0xe8] sm:$0xff]
        %v479 = vld [vmem:[%s448 + $0xf0] sm:$0xff]
        %v480 = vld [vmem:[%s448 + $0xf8] sm:$0xff]
        %v481 = vld [vmem:[%s448 + $0x100] sm:$0xff]
        %v482 = vld [vmem:[%s448 + $0x108] sm:$0xff]
        %v483 = vld [vmem:[%s448 + $0x110] sm:$0xff]
        %v484 = vld [vmem:[%s448 + $0x118] sm:$0xff]
        %v485 = vld [vmem:[%s448 + $0x120] sm:$0xff]
        %v486 = vld [vmem:[%s448 + $0x128] sm:$0xff]
        %v487 = vld [vmem:[%s448 + $0x130] sm:$0xff]
        %v488 = vld [vmem:[%s448 + $0x138] sm:$0xff]
        %v489 = vld [vmem:[%s448 + $0x140] sm:$0xff]
        %v490 = vld [vmem:[%s448 + $0x148] sm:$0xff]
        %v491 = vld [vmem:[%s448 + $0x150] sm:$0xff]
        %v492 = vld [vmem:[%s448 + $0x158] sm:$0xff]
        %v493 = vld [vmem:[%s448 + $0x160] sm:$0xff]
        %v494 = vld [vmem:[%s448 + $0x168] sm:$0xff]
        %v495 = vld [vmem:[%s448 + $0x170] sm:$0xff]
        %v496 = vld [vmem:[%s448 + $0x178] sm:$0xff]
        %v497 = vld [vmem:[%s448 + $0x180] sm:$0xff]
        %v498 = vld [vmem:[%s448 + $0x188] sm:$0xff]
        %v499 = vld [vmem:[%s448 + $0x190] sm:$0xff]
        %v500 = vld [vmem:[%s448 + $0x198] sm:$0xff]
        %v501 = vld [vmem:[%s448 + $0x1a0] sm:$0xff]
        %v502 = vld [vmem:[%s448 + $0x1a8] sm:$0xff]
        %v503 = vld [vmem:[%s448 + $0x1b0] sm:$0xff]
        %v504 = vld [vmem:[%s448 + $0x1b8] sm:$0xff]
        %v505 = vld [vmem:[%s448 + $0x1c0] sm:$0xff]
        %v506 = vld [vmem:[%s448 + $0x1c8] sm:$0xff]
        %v507 = vld [vmem:[%s448 + $0x1d0] sm:$0xff]
        %v508 = vld [vmem:[%s448 + $0x1d8] sm:$0xff]
        %v509 = vld [vmem:[%s448 + $0x1e0] sm:$0xff]
        %v510 = vld [vmem:[%s448 + $0x1e8] sm:$0xff]
        %v511 = vld [vmem:[%s448 + $0x1f0] sm:$0xff]
        %v512 = vld [vmem:[%s448 + $0x1f8] sm:$0xff]
        %v513 = vld [vmem:[%s448 + $0x200] sm:$0xff]
        %v514 = vld [vmem:[%s448 + $0x208] sm:$0xff]
        %v515 = vld [vmem:[%s448 + $0x210] sm:$0xff]
        %v516 = vld [vmem:[%s448 + $0x218] sm:$0xff]
        %v517 = vld [vmem:[%s448 + $0x220] sm:$0xff]
        %v518 = vld [vmem:[%s448 + $0x228] sm:$0xff]
        %v519 = vld [vmem:[%s448 + $0x230] sm:$0xff]
        %v520 = vld [vmem:[%s448 + $0x238] sm:$0xff]
        %v521 = vld [vmem:[%s448 + $0x240] sm:$0xff]
        %v522 = vld [vmem:[%s448 + $0x248] sm:$0xff]
        %v523 = vld [vmem:[%s448 + $0x250] sm:$0xff]
        %v524 = vld [vmem:[%s448 + $0x258] sm:$0xff]
        %v525 = vld [vmem:[%s448 + $0x260] sm:$0xff]
        %v526 = vld [vmem:[%s448 + $0x268] sm:$0xff]
        %v527 = vld [vmem:[%s448 + $0x270] sm:$0xff]
        %v528 = vld [vmem:[%s448 + $0x278] sm:$0xff]
        %v529 = vld [vmem:[%s448 + $0x280] sm:$0xff]
        %v530 = vld [vmem:[%s448 + $0x288] sm:$0xff]
        %v531 = vld [vmem:[%s448 + $0x290] sm:$0xff]
        %v532 = vld [vmem:[%s448 + $0x298] sm:$0xff]
        %v533 = vld [vmem:[%s448 + $0x2a0] sm:$0xff]
        %v534 = vld [vmem:[%s448 + $0x2a8] sm:$0xff]
        %v535 = vld [vmem:[%s448 + $0x2b0] sm:$0xff]
        %v536 = vld [vmem:[%s448 + $0x2b8] sm:$0xff]
        %v537 = vld [vmem:[%s448 + $0x2c0] sm:$0xff]
        %v538 = vld [vmem:[%s448 + $0x2c8] sm:$0xff]
        %v539 = vld [vmem:[%s448 + $0x2d0] sm:$0xff]
        %v540 = vld [vmem:[%s448 + $0x2d8] sm:$0xff]
        %v541 = vld [vmem:[%s448 + $0x2e0] sm:$0xff]
        %v542 = vld [vmem:[%s448 + $0x2e8] sm:$0xff]
        %v543 = vld [vmem:[%s448 + $0x2f0] sm:$0xff]
        %v544 = vld [vmem:[%s448 + $0x2f8] sm:$0xff]
        %v545 = vld [vmem:[%s448 + $0x300] sm:$0xff]
        %v546 = vld [vmem:[%s448 + $0x308] sm:$0xff]
        %v547 = vld [vmem:[%s448 + $0x310] sm:$0xff]
        %v548 = vld [vmem:[%s448 + $0x318] sm:$0xff]
        %v549 = vld [vmem:[%s448 + $0x320] sm:$0xff]
        %v550 = vld [vmem:[%s448 + $0x328] sm:$0xff]
        %v551 = vld [vmem:[%s448 + $0x330] sm:$0xff]
        %v552 = vld [vmem:[%s448 + $0x338] sm:$0xff]
        %v553 = vld [vmem:[%s448 + $0x340] sm:$0xff]
        %v554 = vld [vmem:[%s448 + $0x348] sm:$0xff]
        %v555 = vld [vmem:[%s448 + $0x350] sm:$0xff]
        %v556 = vld [vmem:[%s448 + $0x358] sm:$0xff]
        %v557 = vld [vmem:[%s448 + $0x360] sm:$0xff]
        %v558 = vld [vmem:[%s448 + $0x368] sm:$0xff]
        %v559 = vld [vmem:[%s448 + $0x370] sm:$0xff]
        %v560 = vld [vmem:[%s448 + $0x378] sm:$0xff]
        %v561 = vld [vmem:[%s448 + $0x380] sm:$0xff]
        %v562 = vld [vmem:[%s448 + $0x388] sm:$0xff]
        %v563 = vld [vmem:[%s448 + $0x390] sm:$0xff]
        %v564 = vld [vmem:[%s448 + $0x398] sm:$0xff]
        %v565 = vld [vmem:[%s448 + $0x3a0] sm:$0xff]
        %v566 = vld [vmem:[%s448 + $0x3a8] sm:$0xff]
        %v567 = vld [vmem:[%s448 + $0x3b0] sm:$0xff]
        %v568 = vld [vmem:[%s448 + $0x3b8] sm:$0xff]
        %v569 = vld [vmem:[%s448 + $0x3c0] sm:$0xff]
        %v570 = vld [vmem:[%s448 + $0x3c8] sm:$0xff]
        %v571 = vld [vmem:[%s448 + $0x3d0] sm:$0xff]
        %v572 = vld [vmem:[%s448 + $0x3d8] sm:$0xff]
        %v573 = vld [vmem:[%s448 + $0x3e0] sm:$0xff]
        %v574 = vld [vmem:[%s448 + $0x3e8] sm:$0xff]
        %v575 = vld [vmem:[%s448 + $0x3f0] sm:$0xff]
        %v576 = vld [vmem:[%s448 + $0x3f8] sm:$0xff]
        %v581 = vunpack.c.l.b16 %v316
        %v582 = vunpack.c.h.b16 %v316
        %v583 = vunpack.c.l.b16 %v317
        %v584 = vunpack.c.h.b16 %v317
        %v585 = vunpack.c.l.b16 %v318
        %v586 = vunpack.c.h.b16 %v318
        %v587 = vunpack.c.l.b16 %v319
        %v588 = vunpack.c.h.b16 %v319
        %v589 = vpack.c.b16 %v585, %v581
        %v590 = vpack.c.b16 %v586, %v582
        %v591 = vpack.c.b16 %v587, %v583
        %v592 = vpack.c.b16 %v588, %v584
        %v725 = vunpack.c.l.b16 %v449
        %v726 = vunpack.c.h.b16 %v449
        %v727 = vunpack.c.l.b16 %v450
        %v728 = vunpack.c.h.b16 %v450
        %v729 = vunpack.c.l.b16 %v451
        %v730 = vunpack.c.h.b16 %v451
        %v731 = vunpack.c.l.b16 %v452
        %v732 = vunpack.c.h.b16 %v452
        %v733 = vunpack.c.l.b16 %v453
        %v734 = vunpack.c.h.b16 %v453
        %v735 = vunpack.c.l.b16 %v454
        %v736 = vunpack.c.h.b16 %v454
        %v737 = vunpack.c.l.b16 %v455
        %v738 = vunpack.c.h.b16 %v455
        %v739 = vunpack.c.l.b16 %v456
        %v740 = vunpack.c.h.b16 %v456
        %v741 = vunpack.c.l.b16 %v457
        %v742 = vunpack.c.h.b16 %v457
        %v743 = vunpack.c.l.b16 %v458
        %v744 = vunpack.c.h.b16 %v458
        %v745 = vunpack.c.l.b16 %v459
        %v746 = vunpack.c.h.b16 %v459
        %v747 = vunpack.c.l.b16 %v460
        %v748 = vunpack.c.h.b16 %v460
        %v749 = vunpack.c.l.b16 %v461
        %v750 = vunpack.c.h.b16 %v461
        %v751 = vunpack.c.l.b16 %v462
        %v752 = vunpack.c.h.b16 %v462
        %v753 = vunpack.c.l.b16 %v463
        %v754 = vunpack.c.h.b16 %v463
        %v755 = vunpack.c.l.b16 %v464
        %v756 = vunpack.c.h.b16 %v464
        %v757 = vunpack.c.l.b16 %v465
        %v758 = vunpack.c.h.b16 %v465
        %v759 = vunpack.c.l.b16 %v466
        %v760 = vunpack.c.h.b16 %v466
        %v761 = vunpack.c.l.b16 %v467
        %v762 = vunpack.c.h.b16 %v467
        %v763 = vunpack.c.l.b16 %v468
        %v764 = vunpack.c.h.b16 %v468
        %v765 = vunpack.c.l.b16 %v469
        %v766 = vunpack.c.h.b16 %v469
        %v767 = vunpack.c.l.b16 %v470
        %v768 = vunpack.c.h.b16 %v470
        %v769 = vunpack.c.l.b16 %v471
        %v770 = vunpack.c.h.b16 %v471
        %v771 = vunpack.c.l.b16 %v472
        %v772 = vunpack.c.h.b16 %v472
        %v773 = vunpack.c.l.b16 %v473
        %v774 = vunpack.c.h.b16 %v473
        %v775 = vunpack.c.l.b16 %v474
        %v776 = vunpack.c.h.b16 %v474
        %v777 = vunpack.c.l.b16 %v475
        %v778 = vunpack.c.h.b16 %v475
        %v779 = vunpack.c.l.b16 %v476
        %v780 = vunpack.c.h.b16 %v476
        %v781 = vunpack.c.l.b16 %v477
        %v782 = vunpack.c.h.b16 %v477
        %v783 = vunpack.c.l.b16 %v478
        %v784 = vunpack.c.h.b16 %v478
        %v785 = vunpack.c.l.b16 %v479
        %v786 = vunpack.c.h.b16 %v479
        %v787 = vunpack.c.l.b16 %v480
        %v788 = vunpack.c.h.b16 %v480
        %v789 = vunpack.c.l.b16 %v481
        %v790 = vunpack.c.h.b16 %v481
        %v791 = vunpack.c.l.b16 %v482
        %v792 = vunpack.c.h.b16 %v482
        %v793 = vunpack.c.l.b16 %v483
        %v794 = vunpack.c.h.b16 %v483
        %v795 = vunpack.c.l.b16 %v484
        %v796 = vunpack.c.h.b16 %v484
        %v797 = vunpack.c.l.b16 %v485
        %v798 = vunpack.c.h.b16 %v485
        %v799 = vunpack.c.l.b16 %v486
        %v800 = vunpack.c.h.b16 %v486
        %v801 = vunpack.c.l.b16 %v487
        %v802 = vunpack.c.h.b16 %v487
        %v803 = vunpack.c.l.b16 %v488
        %v804 = vunpack.c.h.b16 %v488
        %v805 = vunpack.c.l.b16 %v489
        %v806 = vunpack.c.h.b16 %v489
        %v807 = vunpack.c.l.b16 %v490
        %v808 = vunpack.c.h.b16 %v490
        %v809 = vunpack.c.l.b16 %v491
        %v810 = vunpack.c.h.b16 %v491
        %v811 = vunpack.c.l.b16 %v492
        %v812 = vunpack.c.h.b16 %v492
        %v813 = vunpack.c.l.b16 %v493
        %v814 = vunpack.c.h.b16 %v493
        %v815 = vunpack.c.l.b16 %v494
        %v816 = vunpack.c.h.b16 %v494
        %v817 = vunpack.c.l.b16 %v495
        %v818 = vunpack.c.h.b16 %v495
        %v819 = vunpack.c.l.b16 %v496
        %v820 = vunpack.c.h.b16 %v496
        %v821 = vunpack.c.l.b16 %v497
        %v822 = vunpack.c.h.b16 %v497
        %v823 = vunpack.c.l.b16 %v498
        %v824 = vunpack.c.h.b16 %v498
        %v825 = vunpack.c.l.b16 %v499
        %v826 = vunpack.c.h.b16 %v499
        %v827 = vunpack.c.l.b16 %v500
        %v828 = vunpack.c.h.b16 %v500
        %v829 = vunpack.c.l.b16 %v501
        %v830 = vunpack.c.h.b16 %v501
        %v831 = vunpack.c.l.b16 %v502
        %v832 = vunpack.c.h.b16 %v502
        %v833 = vunpack.c.l.b16 %v503
        %v834 = vunpack.c.h.b16 %v503
        %v835 = vunpack.c.l.b16 %v504
        %v836 = vunpack.c.h.b16 %v504
        %v837 = vunpack.c.l.b16 %v505
        %v838 = vunpack.c.h.b16 %v505
        %v839 = vunpack.c.l.b16 %v506
        %v840 = vunpack.c.h.b16 %v506
        %v841 = vunpack.c.l.b16 %v507
        %v842 = vunpack.c.h.b16 %v507
        %v843 = vunpack.c.l.b16 %v508
        %v844 = vunpack.c.h.b16 %v508
        %v845 = vunpack.c.l.b16 %v509
        %v846 = vunpack.c.h.b16 %v509
        %v847 = vunpack.c.l.b16 %v510
        %v848 = vunpack.c.h.b16 %v510
        %v849 = vunpack.c.l.b16 %v511
        %v850 = vunpack.c.h.b16 %v511
        %v851 = vunpack.c.l.b16 %v512
        %v852 = vunpack.c.h.b16 %v512
        %v853 = vunpack.c.l.b16 %v513
        %v854 = vunpack.c.h.b16 %v513
        %v855 = vunpack.c.l.b16 %v514
        %v856 = vunpack.c.h.b16 %v514
        %v857 = vunpack.c.l.b16 %v515
        %v858 = vunpack.c.h.b16 %v515
        %v859 = vunpack.c.l.b16 %v516
        %v860 = vunpack.c.h.b16 %v516
        %v861 = vunpack.c.l.b16 %v517
        %v862 = vunpack.c.h.b16 %v517
        %v863 = vunpack.c.l.b16 %v518
        %v864 = vunpack.c.h.b16 %v518
        %v865 = vunpack.c.l.b16 %v519
        %v866 = vunpack.c.h.b16 %v519
        %v867 = vunpack.c.l.b16 %v520
        %v868 = vunpack.c.h.b16 %v520
        %v869 = vunpack.c.l.b16 %v521
        %v870 = vunpack.c.h.b16 %v521
        %v871 = vunpack.c.l.b16 %v522
        %v872 = vunpack.c.h.b16 %v522
        %v873 = vunpack.c.l.b16 %v523
        %v874 = vunpack.c.h.b16 %v523
        %v875 = vunpack.c.l.b16 %v524
        %v876 = vunpack.c.h.b16 %v524
        %v877 = vunpack.c.l.b16 %v525
        %v878 = vunpack.c.h.b16 %v525
        %v879 = vunpack.c.l.b16 %v526
        %v880 = vunpack.c.h.b16 %v526
        %v881 = vunpack.c.l.b16 %v527
        %v882 = vunpack.c.h.b16 %v527
        %v883 = vunpack.c.l.b16 %v528
        %v884 = vunpack.c.h.b16 %v528
        %v885 = vunpack.c.l.b16 %v529
        %v886 = vunpack.c.h.b16 %v529
        %v887 = vunpack.c.l.b16 %v530
        %v888 = vunpack.c.h.b16 %v530
        %v889 = vunpack.c.l.b16 %v531
        %v890 = vunpack.c.h.b16 %v531
        %v891 = vunpack.c.l.b16 %v532
        %v892 = vunpack.c.h.b16 %v532
        %v893 = vunpack.c.l.b16 %v533
        %v894 = vunpack.c.h.b16 %v533
        %v895 = vunpack.c.l.b16 %v534
        %v896 = vunpack.c.h.b16 %v534
        %v897 = vunpack.c.l.b16 %v535
        %v898 = vunpack.c.h.b16 %v535
        %v899 = vunpack.c.l.b16 %v536
        %v900 = vunpack.c.h.b16 %v536
        %v901 = vunpack.c.l.b16 %v537
        %v902 = vunpack.c.h.b16 %v537
        %v903 = vunpack.c.l.b16 %v538
        %v904 = vunpack.c.h.b16 %v538
        %v905 = vunpack.c.l.b16 %v539
        %v906 = vunpack.c.h.b16 %v539
        %v907 = vunpack.c.l.b16 %v540
        %v908 = vunpack.c.h.b16 %v540
        %v909 = vunpack.c.l.b16 %v541
        %v910 = vunpack.c.h.b16 %v541
        %v911 = vunpack.c.l.b16 %v542
        %v912 = vunpack.c.h.b16 %v542
        %v913 = vunpack.c.l.b16 %v543
        %v914 = vunpack.c.h.b16 %v543
        %v915 = vunpack.c.l.b16 %v544
        %v916 = vunpack.c.h.b16 %v544
        %v917 = vunpack.c.l.b16 %v545
        %v918 = vunpack.c.h.b16 %v545
        %v919 = vunpack.c.l.b16 %v546
        %v920 = vunpack.c.h.b16 %v546
        %v921 = vunpack.c.l.b16 %v547
        %v922 = vunpack.c.h.b16 %v547
        %v923 = vunpack.c.l.b16 %v548
        %v924 = vunpack.c.h.b16 %v548
        %v925 = vunpack.c.l.b16 %v549
        %v926 = vunpack.c.h.b16 %v549
        %v927 = vunpack.c.l.b16 %v550
        %v928 = vunpack.c.h.b16 %v550
        %v929 = vunpack.c.l.b16 %v551
        %v930 = vunpack.c.h.b16 %v551
        %v931 = vunpack.c.l.b16 %v552
        %v932 = vunpack.c.h.b16 %v552
        %v933 = vunpack.c.l.b16 %v553
        %v934 = vunpack.c.h.b16 %v553
        %v935 = vunpack.c.l.b16 %v554
        %v936 = vunpack.c.h.b16 %v554
        %v937 = vunpack.c.l.b16 %v555
        %v938 = vunpack.c.h.b16 %v555
        %v939 = vunpack.c.l.b16 %v556
        %v940 = vunpack.c.h.b16 %v556
        %v941 = vunpack.c.l.b16 %v557
        %v942 = vunpack.c.h.b16 %v557
        %v943 = vunpack.c.l.b16 %v558
        %v944 = vunpack.c.h.b16 %v558
        %v945 = vunpack.c.l.b16 %v559
        %v946 = vunpack.c.h.b16 %v559
        %v947 = vunpack.c.l.b16 %v560
        %v948 = vunpack.c.h.b16 %v560
        %v949 = vunpack.c.l.b16 %v561
        %v950 = vunpack.c.h.b16 %v561
        %v951 = vunpack.c.l.b16 %v562
        %v952 = vunpack.c.h.b16 %v562
        %v953 = vunpack.c.l.b16 %v563
        %v954 = vunpack.c.h.b16 %v563
        %v955 = vunpack.c.l.b16 %v564
        %v956 = vunpack.c.h.b16 %v564
        %v957 = vunpack.c.l.b16 %v565
        %v958 = vunpack.c.h.b16 %v565
        %v959 = vunpack.c.l.b16 %v566
        %v960 = vunpack.c.h.b16 %v566
        %v961 = vunpack.c.l.b16 %v567
        %v962 = vunpack.c.h.b16 %v567
        %v963 = vunpack.c.l.b16 %v568
        %v964 = vunpack.c.h.b16 %v568
        %v965 = vunpack.c.l.b16 %v569
        %v966 = vunpack.c.h.b16 %v569
        %v967 = vunpack.c.l.b16 %v570
        %v968 = vunpack.c.h.b16 %v570
        %v969 = vunpack.c.l.b16 %v571
        %v970 = vunpack.c.h.b16 %v571
        %v971 = vunpack.c.l.b16 %v572
        %v972 = vunpack.c.h.b16 %v572
        %v973 = vunpack.c.l.b16 %v573
        %v974 = vunpack.c.h.b16 %v573
        %v975 = vunpack.c.l.b16 %v574
        %v976 = vunpack.c.h.b16 %v574
        %v977 = vunpack.c.l.b16 %v575
        %v978 = vunpack.c.h.b16 %v575
        %v979 = vunpack.c.l.b16 %v576
        %v980 = vunpack.c.h.b16 %v576
        %v981 = vpack.c.b16 %v729, %v725
        %v982 = vpack.c.b16 %v730, %v726
        %v983 = vpack.c.b16 %v731, %v727
        %v984 = vpack.c.b16 %v732, %v728
        %v985 = vpack.c.b16 %v737, %v733
        %v986 = vpack.c.b16 %v738, %v734
        %v987 = vpack.c.b16 %v739, %v735
        %v988 = vpack.c.b16 %v740, %v736
        %v989 = vpack.c.b16 %v745, %v741
        %v990 = vpack.c.b16 %v746, %v742
        %v991 = vpack.c.b16 %v747, %v743
        %v992 = vpack.c.b16 %v748, %v744
        %v993 = vpack.c.b16 %v753, %v749
        %v994 = vpack.c.b16 %v754, %v750
        %v995 = vpack.c.b16 %v755, %v751
        %v996 = vpack.c.b16 %v756, %v752
        %v997 = vpack.c.b16 %v761, %v757
        %v998 = vpack.c.b16 %v762, %v758
        %v999 = vpack.c.b16 %v763, %v759
        %v1000 = vpack.c.b16 %v764, %v760
        %v1001 = vpack.c.b16 %v769, %v765
        %v1002 = vpack.c.b16 %v770, %v766
        %v1003 = vpack.c.b16 %v771, %v767
        %v1004 = vpack.c.b16 %v772, %v768
        %v1005 = vpack.c.b16 %v777, %v773
        %v1006 = vpack.c.b16 %v778, %v774
        %v1007 = vpack.c.b16 %v779, %v775
        %v1008 = vpack.c.b16 %v780, %v776
        %v1009 = vpack.c.b16 %v785, %v781
        %v1010 = vpack.c.b16 %v786, %v782
        %v1011 = vpack.c.b16 %v787, %v783
        %v1012 = vpack.c.b16 %v788, %v784
        %v1013 = vpack.c.b16 %v793, %v789
        %v1014 = vpack.c.b16 %v794, %v790
        %v1015 = vpack.c.b16 %v795, %v791
        %v1016 = vpack.c.b16 %v796, %v792
        %v1017 = vpack.c.b16 %v801, %v797
        %v1018 = vpack.c.b16 %v802, %v798
        %v1019 = vpack.c.b16 %v803, %v799
        %v1020 = vpack.c.b16 %v804, %v800
        %v1021 = vpack.c.b16 %v809, %v805
        %v1022 = vpack.c.b16 %v810, %v806
        %v1023 = vpack.c.b16 %v811, %v807
        %v1024 = vpack.c.b16 %v812, %v808
        %v1025 = vpack.c.b16 %v817, %v813
        %v1026 = vpack.c.b16 %v818, %v814
        %v1027 = vpack.c.b16 %v819, %v815
        %v1028 = vpack.c.b16 %v820, %v816
        %v1029 = vpack.c.b16 %v825, %v821
        %v1030 = vpack.c.b16 %v826, %v822
        %v1031 = vpack.c.b16 %v827, %v823
        %v1032 = vpack.c.b16 %v828, %v824
        %v1033 = vpack.c.b16 %v833, %v829
        %v1034 = vpack.c.b16 %v834, %v830
        %v1035 = vpack.c.b16 %v835, %v831
        %v1036 = vpack.c.b16 %v836, %v832
        %v1037 = vpack.c.b16 %v841, %v837
        %v1038 = vpack.c.b16 %v842, %v838
        %v1039 = vpack.c.b16 %v843, %v839
        %v1040 = vpack.c.b16 %v844, %v840
        %v1041 = vpack.c.b16 %v849, %v845
        %v1042 = vpack.c.b16 %v850, %v846
        %v1043 = vpack.c.b16 %v851, %v847
        %v1044 = vpack.c.b16 %v852, %v848
        %v1045 = vpack.c.b16 %v857, %v853
        %v1046 = vpack.c.b16 %v858, %v854
        %v1047 = vpack.c.b16 %v859, %v855
        %v1048 = vpack.c.b16 %v860, %v856
        %v1049 = vpack.c.b16 %v865, %v861
        %v1050 = vpack.c.b16 %v866, %v862
        %v1051 = vpack.c.b16 %v867, %v863
        %v1052 = vpack.c.b16 %v868, %v864
        %v1053 = vpack.c.b16 %v873, %v869
        %v1054 = vpack.c.b16 %v874, %v870
        %v1055 = vpack.c.b16 %v875, %v871
        %v1056 = vpack.c.b16 %v876, %v872
        %v1057 = vpack.c.b16 %v881, %v877
        %v1058 = vpack.c.b16 %v882, %v878
        %v1059 = vpack.c.b16 %v883, %v879
        %v1060 = vpack.c.b16 %v884, %v880
        %v1061 = vpack.c.b16 %v889, %v885
        %v1062 = vpack.c.b16 %v890, %v886
        %v1063 = vpack.c.b16 %v891, %v887
        %v1064 = vpack.c.b16 %v892, %v888
        %v1065 = vpack.c.b16 %v897, %v893
        %v1066 = vpack.c.b16 %v898, %v894
        %v1067 = vpack.c.b16 %v899, %v895
        %v1068 = vpack.c.b16 %v900, %v896
        %v1069 = vpack.c.b16 %v905, %v901
        %v1070 = vpack.c.b16 %v906, %v902
        %v1071 = vpack.c.b16 %v907, %v903
        %v1072 = vpack.c.b16 %v908, %v904
        %v1073 = vpack.c.b16 %v913, %v909
        %v1074 = vpack.c.b16 %v914, %v910
        %v1075 = vpack.c.b16 %v915, %v911
        %v1076 = vpack.c.b16 %v916, %v912
        %v1077 = vpack.c.b16 %v921, %v917
        %v1078 = vpack.c.b16 %v922, %v918
        %v1079 = vpack.c.b16 %v923, %v919
        %v1080 = vpack.c.b16 %v924, %v920
        %v1081 = vpack.c.b16 %v929, %v925
        %v1082 = vpack.c.b16 %v930, %v926
        %v1083 = vpack.c.b16 %v931, %v927
        %v1084 = vpack.c.b16 %v932, %v928
        %v1085 = vpack.c.b16 %v937, %v933
        %v1086 = vpack.c.b16 %v938, %v934
        %v1087 = vpack.c.b16 %v939, %v935
        %v1088 = vpack.c.b16 %v940, %v936
        %v1089 = vpack.c.b16 %v945, %v941
        %v1090 = vpack.c.b16 %v946, %v942
        %v1091 = vpack.c.b16 %v947, %v943
        %v1092 = vpack.c.b16 %v948, %v944
        %v1093 = vpack.c.b16 %v953, %v949
        %v1094 = vpack.c.b16 %v954, %v950
        %v1095 = vpack.c.b16 %v955, %v951
        %v1096 = vpack.c.b16 %v956, %v952
        %v1097 = vpack.c.b16 %v961, %v957
        %v1098 = vpack.c.b16 %v962, %v958
        %v1099 = vpack.c.b16 %v963, %v959
        %v1100 = vpack.c.b16 %v964, %v960
        %v1101 = vpack.c.b16 %v969, %v965
        %v1102 = vpack.c.b16 %v970, %v966
        %v1103 = vpack.c.b16 %v971, %v967
        %v1104 = vpack.c.b16 %v972, %v968
        %v1105 = vpack.c.b16 %v977, %v973
        %v1106 = vpack.c.b16 %v978, %v974
        %v1107 = vpack.c.b16 %v979, %v975
        %v1108 = vpack.c.b16 %v980, %v976
        %1237 = vmatprep.subr.bf16.mxu0 %v1010
        %1238 = vmatpush1.bf16.msra.mxu0 %v1009
        %1239 = vmatprep.subr.bf16.mxu0 %v1006
        %1240 = vmatpush1.bf16.msra.mxu0 %v1005
        %1241 = vmatprep.subr.bf16.mxu0 %v1002
        %1242 = vmatpush1.bf16.msra.mxu0 %v1001
        %1243 = vmatprep.subr.bf16.mxu0 %v998
        %1244 = vmatpush1.bf16.msra.mxu0 %v997
        %1245 = vmatprep.subr.bf16.mxu0 %v994
        %1246 = vmatpush1.bf16.msra.mxu0 %v993
        %1247 = vmatprep.subr.bf16.mxu0 %v990
        %1248 = vmatpush1.bf16.msra.mxu0 %v989
        %1249 = vmatprep.subr.bf16.mxu0 %v986
        %1250 = vmatpush1.bf16.msra.mxu0 %v985
        %1251 = vmatprep.subr.bf16.mxu0 %v982
        %1252 = vmatpush1.bf16.msra.mxu0 %v981
        %1253 = vmatprep.subr.bf16.mxu0 %v1042
        %1254 = vmatpush2.bf16.msra.mxu0 %v1041
        %1255 = vmatprep.subr.bf16.mxu0 %v1038
        %1256 = vmatpush2.bf16.msra.mxu0 %v1037
        %1257 = vmatprep.subr.bf16.mxu0 %v1034
        %1258 = vmatpush2.bf16.msra.mxu0 %v1033
        %1259 = vmatprep.subr.bf16.mxu0 %v1030
        %1260 = vmatpush2.bf16.msra.mxu0 %v1029
        %1261 = vmatprep.subr.bf16.mxu0 %v1026
        %1262 = vmatpush2.bf16.msra.mxu0 %v1025
        %1263 = vmatprep.subr.bf16.mxu0 %v1022
        %1264 = vmatpush2.bf16.msra.mxu0 %v1021
        %1265 = vmatprep.subr.bf16.mxu0 %v1018
        %1266 = vmatpush2.bf16.msra.mxu0 %v1017
        %1267 = vmatprep.subr.bf16.mxu0 %v1014
        %1268 = vmatpush2.bf16.msra.mxu0 %v1013
        %1269 = vmatprep.mubr.bf16.mxu0 %v590
        %1270 = vmatmul.mubr.bf16.gmra.mxu0 %v589
        %v1271 = vpop.f32.mrf.mxu0
        %v1272 = vadd.f32 0.0, %v1271
        %v1273 = vpop.f32.mrf.mxu0
        %v1274 = vadd.f32 0.0, %v1273
        %v1275 = vpop.f32.mrf.mxu0
        %v1276 = vadd.f32 0.0, %v1275
        %v1277 = vpop.f32.mrf.mxu0
        %v1278 = vadd.f32 0.0, %v1277
        %1279 = vdwg.mxu0
        %1280 = vmatprep.subr.bf16.mxu0 %v1074
        %1281 = vmatpush1.bf16.msra.mxu0 %v1073
        %1282 = vmatprep.subr.bf16.mxu0 %v1070
        %1283 = vmatpush1.bf16.msra.mxu0 %v1069
        %1284 = vmatprep.subr.bf16.mxu0 %v1066
        %1285 = vmatpush1.bf16.msra.mxu0 %v1065
        %1286 = vmatprep.subr.bf16.mxu0 %v1062
        %1287 = vmatpush1.bf16.msra.mxu0 %v1061
        %1288 = vmatprep.subr.bf16.mxu0 %v1058
        %1289 = vmatpush1.bf16.msra.mxu0 %v1057
        %1290 = vmatprep.subr.bf16.mxu0 %v1054
        %1291 = vmatpush1.bf16.msra.mxu0 %v1053
        %1292 = vmatprep.subr.bf16.mxu0 %v1050
        %1293 = vmatpush1.bf16.msra.mxu0 %v1049
        %1294 = vmatprep.subr.bf16.mxu0 %v1046
        %1295 = vmatpush1.bf16.msra.mxu0 %v1045
        %1296 = vmatprep.subr.bf16.mxu0 %v1106
        %1297 = vmatpush2.bf16.msra.mxu0 %v1105
        %1298 = vmatprep.subr.bf16.mxu0 %v1102
        %1299 = vmatpush2.bf16.msra.mxu0 %v1101
        %1300 = vmatprep.subr.bf16.mxu0 %v1098
        %1301 = vmatpush2.bf16.msra.mxu0 %v1097
        %1302 = vmatprep.subr.bf16.mxu0 %v1094
        %1303 = vmatpush2.bf16.msra.mxu0 %v1093
        %1304 = vmatprep.subr.bf16.mxu0 %v1090
        %1305 = vmatpush2.bf16.msra.mxu0 %v1089
        %1306 = vmatprep.subr.bf16.mxu0 %v1086
        %1307 = vmatpush2.bf16.msra.mxu0 %v1085
        %1308 = vmatprep.subr.bf16.mxu0 %v1082
        %1309 = vmatpush2.bf16.msra.mxu0 %v1081
        %1310 = vmatprep.subr.bf16.mxu0 %v1078
        %1311 = vmatpush2.bf16.msra.mxu0 %v1077
        %1312 = vmatprep.mubr.bf16.mxu0 %v592
        %1313 = vmatmul.mubr.bf16.gmra.mxu0 %v591
        %v1314 = vpop.f32.mrf.mxu0
        %v1315 = vadd.f32 %v1272, %v1314
        %v1316 = vpop.f32.mrf.mxu0
        %v1317 = vadd.f32 %v1274, %v1316
        %v1318 = vpop.f32.mrf.mxu0
        %v1319 = vadd.f32 %v1276, %v1318
        %v1320 = vpop.f32.mrf.mxu0
        %v1321 = vadd.f32 %v1278, %v1320
        %1322 = vdwg.mxu0
        %1323 = vmatprep.subr.bf16.mxu0 %v1012
        %1324 = vmatpush1.bf16.msra.mxu0 %v1011
        %1325 = vmatprep.subr.bf16.mxu0 %v1008
        %1326 = vmatpush1.bf16.msra.mxu0 %v1007
        %1327 = vmatprep.subr.bf16.mxu0 %v1004
        %1328 = vmatpush1.bf16.msra.mxu0 %v1003
        %1329 = vmatprep.subr.bf16.mxu0 %v1000
        %1330 = vmatpush1.bf16.msra.mxu0 %v999
        %1331 = vmatprep.subr.bf16.mxu0 %v996
        %1332 = vmatpush1.bf16.msra.mxu0 %v995
        %1333 = vmatprep.subr.bf16.mxu0 %v992
        %1334 = vmatpush1.bf16.msra.mxu0 %v991
        %1335 = vmatprep.subr.bf16.mxu0 %v988
        %1336 = vmatpush1.bf16.msra.mxu0 %v987
        %1337 = vmatprep.subr.bf16.mxu0 %v984
        %1338 = vmatpush1.bf16.msra.mxu0 %v983
        %1339 = vmatprep.subr.bf16.mxu0 %v1044
        %1340 = vmatpush2.bf16.msra.mxu0 %v1043
        %1341 = vmatprep.subr.bf16.mxu0 %v1040
        %1342 = vmatpush2.bf16.msra.mxu0 %v1039
        %1343 = vmatprep.subr.bf16.mxu0 %v1036
        %1344 = vmatpush2.bf16.msra.mxu0 %v1035
        %1345 = vmatprep.subr.bf16.mxu0 %v1032
        %1346 = vmatpush2.bf16.msra.mxu0 %v1031
        %1347 = vmatprep.subr.bf16.mxu0 %v1028
        %1348 = vmatpush2.bf16.msra.mxu0 %v1027
        %1349 = vmatprep.subr.bf16.mxu0 %v1024
        %1350 = vmatpush2.bf16.msra.mxu0 %v1023
        %1351 = vmatprep.subr.bf16.mxu0 %v1020
        %1352 = vmatpush2.bf16.msra.mxu0 %v1019
        %1353 = vmatprep.subr.bf16.mxu0 %v1016
        %1354 = vmatpush2.bf16.msra.mxu0 %v1015
        %1355 = vmatprep.mubr.bf16.mxu0 %v590
        %1356 = vmatmul.mubr.bf16.gmra.mxu0 %v589
        %v1357 = vpop.f32.mrf.mxu0
        %v1358 = vadd.f32 0.0, %v1357
        %v1359 = vpop.f32.mrf.mxu0
        %v1360 = vadd.f32 0.0, %v1359
        %v1361 = vpop.f32.mrf.mxu0
        %v1362 = vadd.f32 0.0, %v1361
        %v1363 = vpop.f32.mrf.mxu0
        %v1364 = vadd.f32 0.0, %v1363
        %1365 = vdwg.mxu0
        %1366 = vmatprep.subr.bf16.mxu0 %v1076
        %1367 = vmatpush1.bf16.msra.mxu0 %v1075
        %1368 = vmatprep.subr.bf16.mxu0 %v1072
        %1369 = vmatpush1.bf16.msra.mxu0 %v1071
        %1370 = vmatprep.subr.bf16.mxu0 %v1068
        %1371 = vmatpush1.bf16.msra.mxu0 %v1067
        %1372 = vmatprep.subr.bf16.mxu0 %v1064
        %1373 = vmatpush1.bf16.msra.mxu0 %v1063
        %1374 = vmatprep.subr.bf16.mxu0 %v1060
        %1375 = vmatpush1.bf16.msra.mxu0 %v1059
        %1376 = vmatprep.subr.bf16.mxu0 %v1056
        %1377 = vmatpush1.bf16.msra.mxu0 %v1055
        %1378 = vmatprep.subr.bf16.mxu0 %v1052
        %1379 = vmatpush1.bf16.msra.mxu0 %v1051
        %1380 = vmatprep.subr.bf16.mxu0 %v1048
        %1381 = vmatpush1.bf16.msra.mxu0 %v1047
        %1382 = vmatprep.subr.bf16.mxu0 %v1108
        %1383 = vmatpush2.bf16.msra.mxu0 %v1107
        %1384 = vmatprep.subr.bf16.mxu0 %v1104
        %1385 = vmatpush2.bf16.msra.mxu0 %v1103
        %1386 = vmatprep.subr.bf16.mxu0 %v1100
        %1387 = vmatpush2.bf16.msra.mxu0 %v1099
        %1388 = vmatprep.subr.bf16.mxu0 %v1096
        %1389 = vmatpush2.bf16.msra.mxu0 %v1095
        %1390 = vmatprep.subr.bf16.mxu0 %v1092
        %1391 = vmatpush2.bf16.msra.mxu0 %v1091
        %1392 = vmatprep.subr.bf16.mxu0 %v1088
        %1393 = vmatpush2.bf16.msra.mxu0 %v1087
        %1394 = vmatprep.subr.bf16.mxu0 %v1084
        %1395 = vmatpush2.bf16.msra.mxu0 %v1083
        %1396 = vmatprep.subr.bf16.mxu0 %v1080
        %1397 = vmatpush2.bf16.msra.mxu0 %v1079
        %1398 = vmatprep.mubr.bf16.mxu0 %v592
        %1399 = vmatmul.mubr.bf16.gmra.mxu0 %v591
        %v1400 = vpop.f32.mrf.mxu0
        %v1401 = vadd.f32 %v1358, %v1400
        %v1402 = vpop.f32.mrf.mxu0
        %v1403 = vadd.f32 %v1360, %v1402
        %v1404 = vpop.f32.mrf.mxu0
        %v1405 = vadd.f32 %v1362, %v1404
        %v1406 = vpop.f32.mrf.mxu0
        %v1407 = vadd.f32 %v1364, %v1406
        %1408 = vdwg.mxu0
        %v1411 = vunpack.c.l.b16 %v314
        %v1412 = vunpack.c.h.b16 %v314
        %v1413 = vunpack.c.l.b16 %v315
        %v1414 = vunpack.c.h.b16 %v315
        %v1415 = vpack.c.b16 %v581, %v1411
        %v1416 = vpack.c.b16 %v582, %v1412
        %v1417 = vpack.c.b16 %v583, %v1413
        %v1418 = vpack.c.b16 %v584, %v1414
        %v1419 = vpack.c.b16 %v585, %v585
        %v1420 = vpack.c.b16 %v586, %v586
        %v1421 = vpack.c.b16 %v587, %v587
        %v1422 = vpack.c.b16 %v588, %v588
        %vm1423 = vsmask.f32 4352
        %v1425 = vshrl.u32 %v1415, 16
        %v1427 = vrot.slane %v1425, 3
        %v1428 = vshll.u32 %v1415, 16
        %v1430 = vrot.slane %v1428, 4
        %v1431 = vor.u32 %v1427, %v1430
        %v1433 = vshrl.u32 %v1419, 16
        %v1435 = vrot.slane %v1433, 3
        %v1436 = vshll.u32 %v1419, 16
        %v1438 = vrot.slane %v1436, 4
        %v1439 = vor.u32 %v1435, %v1438
        %v1440 = vsel %vm1423, %v1431, %v1439
        %v1442 = vshrl.u32 %v1416, 16
        %v1444 = vrot.slane %v1442, 3
        %v1445 = vshll.u32 %v1416, 16
        %v1447 = vrot.slane %v1445, 4
        %v1448 = vor.u32 %v1444, %v1447
        %v1450 = vshrl.u32 %v1420, 16
        %v1452 = vrot.slane %v1450, 3
        %v1453 = vshll.u32 %v1420, 16
        %v1455 = vrot.slane %v1453, 4
        %v1456 = vor.u32 %v1452, %v1455
        %v1457 = vsel %vm1423, %v1448, %v1456
        %v1459 = vshrl.u32 %v1417, 16
        %v1461 = vrot.slane %v1459, 3
        %v1462 = vshll.u32 %v1417, 16
        %v1464 = vrot.slane %v1462, 4
        %v1465 = vor.u32 %v1461, %v1464
        %v1467 = vshrl.u32 %v1421, 16
        %v1469 = vrot.slane %v1467, 3
        %v1470 = vshll.u32 %v1421, 16
        %v1472 = vrot.slane %v1470, 4
        %v1473 = vor.u32 %v1469, %v1472
        %v1474 = vsel %vm1423, %v1465, %v1473
        %v1476 = vshrl.u32 %v1418, 16
        %v1478 = vrot.slane %v1476, 3
        %v1479 = vshll.u32 %v1418, 16
        %v1481 = vrot.slane %v1479, 4
        %v1482 = vor.u32 %v1478, %v1481
        %v1484 = vshrl.u32 %v1422, 16
        %v1486 = vrot.slane %v1484, 3
        %v1487 = vshll.u32 %v1422, 16
        %v1489 = vrot.slane %v1487, 4
        %v1490 = vor.u32 %v1486, %v1489
        %v1491 = vsel %vm1423, %v1482, %v1490
        %v1624 = vunpack.c.l.b16 %v320
        %v1625 = vunpack.c.h.b16 %v320
        %v1626 = vunpack.c.l.b16 %v321
        %v1627 = vunpack.c.h.b16 %v321
        %v1628 = vunpack.c.l.b16 %v322
        %v1629 = vunpack.c.h.b16 %v322
        %v1630 = vunpack.c.l.b16 %v323
        %v1631 = vunpack.c.h.b16 %v323
        %v1632 = vunpack.c.l.b16 %v324
        %v1633 = vunpack.c.h.b16 %v324
        %v1634 = vunpack.c.l.b16 %v325
        %v1635 = vunpack.c.h.b16 %v325
        %v1636 = vunpack.c.l.b16 %v326
        %v1637 = vunpack.c.h.b16 %v326
        %v1638 = vunpack.c.l.b16 %v327
        %v1639 = vunpack.c.h.b16 %v327
        %v1640 = vunpack.c.l.b16 %v328
        %v1641 = vunpack.c.h.b16 %v328
        %v1642 = vunpack.c.l.b16 %v329
        %v1643 = vunpack.c.h.b16 %v329
        %v1644 = vunpack.c.l.b16 %v330
        %v1645 = vunpack.c.h.b16 %v330
        %v1646 = vunpack.c.l.b16 %v331
        %v1647 = vunpack.c.h.b16 %v331
        %v1648 = vunpack.c.l.b16 %v332
        %v1649 = vunpack.c.h.b16 %v332
        %v1650 = vunpack.c.l.b16 %v333
        %v1651 = vunpack.c.h.b16 %v333
        %v1652 = vunpack.c.l.b16 %v334
        %v1653 = vunpack.c.h.b16 %v334
        %v1654 = vunpack.c.l.b16 %v335
        %v1655 = vunpack.c.h.b16 %v335
        %v1656 = vunpack.c.l.b16 %v336
        %v1657 = vunpack.c.h.b16 %v336
        %v1658 = vunpack.c.l.b16 %v337
        %v1659 = vunpack.c.h.b16 %v337
        %v1660 = vunpack.c.l.b16 %v338
        %v1661 = vunpack.c.h.b16 %v338
        %v1662 = vunpack.c.l.b16 %v339
        %v1663 = vunpack.c.h.b16 %v339
        %v1664 = vunpack.c.l.b16 %v340
        %v1665 = vunpack.c.h.b16 %v340
        %v1666 = vunpack.c.l.b16 %v341
        %v1667 = vunpack.c.h.b16 %v341
        %v1668 = vunpack.c.l.b16 %v342
        %v1669 = vunpack.c.h.b16 %v342
        %v1670 = vunpack.c.l.b16 %v343
        %v1671 = vunpack.c.h.b16 %v343
        %v1672 = vunpack.c.l.b16 %v344
        %v1673 = vunpack.c.h.b16 %v344
        %v1674 = vunpack.c.l.b16 %v345
        %v1675 = vunpack.c.h.b16 %v345
        %v1676 = vunpack.c.l.b16 %v346
        %v1677 = vunpack.c.h.b16 %v346
        %v1678 = vunpack.c.l.b16 %v347
        %v1679 = vunpack.c.h.b16 %v347
        %v1680 = vunpack.c.l.b16 %v348
        %v1681 = vunpack.c.h.b16 %v348
        %v1682 = vunpack.c.l.b16 %v349
        %v1683 = vunpack.c.h.b16 %v349
        %v1684 = vunpack.c.l.b16 %v350
        %v1685 = vunpack.c.h.b16 %v350
        %v1686 = vunpack.c.l.b16 %v351
        %v1687 = vunpack.c.h.b16 %v351
        %v1688 = vunpack.c.l.b16 %v352
        %v1689 = vunpack.c.h.b16 %v352
        %v1690 = vunpack.c.l.b16 %v353
        %v1691 = vunpack.c.h.b16 %v353
        %v1692 = vunpack.c.l.b16 %v354
        %v1693 = vunpack.c.h.b16 %v354
        %v1694 = vunpack.c.l.b16 %v355
        %v1695 = vunpack.c.h.b16 %v355
        %v1696 = vunpack.c.l.b16 %v356
        %v1697 = vunpack.c.h.b16 %v356
        %v1698 = vunpack.c.l.b16 %v357
        %v1699 = vunpack.c.h.b16 %v357
        %v1700 = vunpack.c.l.b16 %v358
        %v1701 = vunpack.c.h.b16 %v358
        %v1702 = vunpack.c.l.b16 %v359
        %v1703 = vunpack.c.h.b16 %v359
        %v1704 = vunpack.c.l.b16 %v360
        %v1705 = vunpack.c.h.b16 %v360
        %v1706 = vunpack.c.l.b16 %v361
        %v1707 = vunpack.c.h.b16 %v361
        %v1708 = vunpack.c.l.b16 %v362
        %v1709 = vunpack.c.h.b16 %v362
        %v1710 = vunpack.c.l.b16 %v363
        %v1711 = vunpack.c.h.b16 %v363
        %v1712 = vunpack.c.l.b16 %v364
        %v1713 = vunpack.c.h.b16 %v364
        %v1714 = vunpack.c.l.b16 %v365
        %v1715 = vunpack.c.h.b16 %v365
        %v1716 = vunpack.c.l.b16 %v366
        %v1717 = vunpack.c.h.b16 %v366
        %v1718 = vunpack.c.l.b16 %v367
        %v1719 = vunpack.c.h.b16 %v367
        %v1720 = vunpack.c.l.b16 %v368
        %v1721 = vunpack.c.h.b16 %v368
        %v1722 = vunpack.c.l.b16 %v369
        %v1723 = vunpack.c.h.b16 %v369
        %v1724 = vunpack.c.l.b16 %v370
        %v1725 = vunpack.c.h.b16 %v370
        %v1726 = vunpack.c.l.b16 %v371
        %v1727 = vunpack.c.h.b16 %v371
        %v1728 = vunpack.c.l.b16 %v372
        %v1729 = vunpack.c.h.b16 %v372
        %v1730 = vunpack.c.l.b16 %v373
        %v1731 = vunpack.c.h.b16 %v373
        %v1732 = vunpack.c.l.b16 %v374
        %v1733 = vunpack.c.h.b16 %v374
        %v1734 = vunpack.c.l.b16 %v375
        %v1735 = vunpack.c.h.b16 %v375
        %v1736 = vunpack.c.l.b16 %v376
        %v1737 = vunpack.c.h.b16 %v376
        %v1738 = vunpack.c.l.b16 %v377
        %v1739 = vunpack.c.h.b16 %v377
        %v1740 = vunpack.c.l.b16 %v378
        %v1741 = vunpack.c.h.b16 %v378
        %v1742 = vunpack.c.l.b16 %v379
        %v1743 = vunpack.c.h.b16 %v379
        %v1744 = vunpack.c.l.b16 %v380
        %v1745 = vunpack.c.h.b16 %v380
        %v1746 = vunpack.c.l.b16 %v381
        %v1747 = vunpack.c.h.b16 %v381
        %v1748 = vunpack.c.l.b16 %v382
        %v1749 = vunpack.c.h.b16 %v382
        %v1750 = vunpack.c.l.b16 %v383
        %v1751 = vunpack.c.h.b16 %v383
        %v1752 = vunpack.c.l.b16 %v384
        %v1753 = vunpack.c.h.b16 %v384
        %v1754 = vunpack.c.l.b16 %v385
        %v1755 = vunpack.c.h.b16 %v385
        %v1756 = vunpack.c.l.b16 %v386
        %v1757 = vunpack.c.h.b16 %v386
        %v1758 = vunpack.c.l.b16 %v387
        %v1759 = vunpack.c.h.b16 %v387
        %v1760 = vunpack.c.l.b16 %v388
        %v1761 = vunpack.c.h.b16 %v388
        %v1762 = vunpack.c.l.b16 %v389
        %v1763 = vunpack.c.h.b16 %v389
        %v1764 = vunpack.c.l.b16 %v390
        %v1765 = vunpack.c.h.b16 %v390
        %v1766 = vunpack.c.l.b16 %v391
        %v1767 = vunpack.c.h.b16 %v391
        %v1768 = vunpack.c.l.b16 %v392
        %v1769 = vunpack.c.h.b16 %v392
        %v1770 = vunpack.c.l.b16 %v393
        %v1771 = vunpack.c.h.b16 %v393
        %v1772 = vunpack.c.l.b16 %v394
        %v1773 = vunpack.c.h.b16 %v394
        %v1774 = vunpack.c.l.b16 %v395
        %v1775 = vunpack.c.h.b16 %v395
        %v1776 = vunpack.c.l.b16 %v396
        %v1777 = vunpack.c.h.b16 %v396
        %v1778 = vunpack.c.l.b16 %v397
        %v1779 = vunpack.c.h.b16 %v397
        %v1780 = vunpack.c.l.b16 %v398
        %v1781 = vunpack.c.h.b16 %v398
        %v1782 = vunpack.c.l.b16 %v399
        %v1783 = vunpack.c.h.b16 %v399
        %v1784 = vunpack.c.l.b16 %v400
        %v1785 = vunpack.c.h.b16 %v400
        %v1786 = vunpack.c.l.b16 %v401
        %v1787 = vunpack.c.h.b16 %v401
        %v1788 = vunpack.c.l.b16 %v402
        %v1789 = vunpack.c.h.b16 %v402
        %v1790 = vunpack.c.l.b16 %v403
        %v1791 = vunpack.c.h.b16 %v403
        %v1792 = vunpack.c.l.b16 %v404
        %v1793 = vunpack.c.h.b16 %v404
        %v1794 = vunpack.c.l.b16 %v405
        %v1795 = vunpack.c.h.b16 %v405
        %v1796 = vunpack.c.l.b16 %v406
        %v1797 = vunpack.c.h.b16 %v406
        %v1798 = vunpack.c.l.b16 %v407
        %v1799 = vunpack.c.h.b16 %v407
        %v1800 = vunpack.c.l.b16 %v408
        %v1801 = vunpack.c.h.b16 %v408
        %v1802 = vunpack.c.l.b16 %v409
        %v1803 = vunpack.c.h.b16 %v409
        %v1804 = vunpack.c.l.b16 %v410
        %v1805 = vunpack.c.h.b16 %v410
        %v1806 = vunpack.c.l.b16 %v411
        %v1807 = vunpack.c.h.b16 %v411
        %v1808 = vunpack.c.l.b16 %v412
        %v1809 = vunpack.c.h.b16 %v412
        %v1810 = vunpack.c.l.b16 %v413
        %v1811 = vunpack.c.h.b16 %v413
        %v1812 = vunpack.c.l.b16 %v414
        %v1813 = vunpack.c.h.b16 %v414
        %v1814 = vunpack.c.l.b16 %v415
        %v1815 = vunpack.c.h.b16 %v415
        %v1816 = vunpack.c.l.b16 %v416
        %v1817 = vunpack.c.h.b16 %v416
        %v1818 = vunpack.c.l.b16 %v417
        %v1819 = vunpack.c.h.b16 %v417
        %v1820 = vunpack.c.l.b16 %v418
        %v1821 = vunpack.c.h.b16 %v418
        %v1822 = vunpack.c.l.b16 %v419
        %v1823 = vunpack.c.h.b16 %v419
        %v1824 = vunpack.c.l.b16 %v420
        %v1825 = vunpack.c.h.b16 %v420
        %v1826 = vunpack.c.l.b16 %v421
        %v1827 = vunpack.c.h.b16 %v421
        %v1828 = vunpack.c.l.b16 %v422
        %v1829 = vunpack.c.h.b16 %v422
        %v1830 = vunpack.c.l.b16 %v423
        %v1831 = vunpack.c.h.b16 %v423
        %v1832 = vunpack.c.l.b16 %v424
        %v1833 = vunpack.c.h.b16 %v424
        %v1834 = vunpack.c.l.b16 %v425
        %v1835 = vunpack.c.h.b16 %v425
        %v1836 = vunpack.c.l.b16 %v426
        %v1837 = vunpack.c.h.b16 %v426
        %v1838 = vunpack.c.l.b16 %v427
        %v1839 = vunpack.c.h.b16 %v427
        %v1840 = vunpack.c.l.b16 %v428
        %v1841 = vunpack.c.h.b16 %v428
        %v1842 = vunpack.c.l.b16 %v429
        %v1843 = vunpack.c.h.b16 %v429
        %v1844 = vunpack.c.l.b16 %v430
        %v1845 = vunpack.c.h.b16 %v430
        %v1846 = vunpack.c.l.b16 %v431
        %v1847 = vunpack.c.h.b16 %v431
        %v1848 = vunpack.c.l.b16 %v432
        %v1849 = vunpack.c.h.b16 %v432
        %v1850 = vunpack.c.l.b16 %v433
        %v1851 = vunpack.c.h.b16 %v433
        %v1852 = vunpack.c.l.b16 %v434
        %v1853 = vunpack.c.h.b16 %v434
        %v1854 = vunpack.c.l.b16 %v435
        %v1855 = vunpack.c.h.b16 %v435
        %v1856 = vunpack.c.l.b16 %v436
        %v1857 = vunpack.c.h.b16 %v436
        %v1858 = vunpack.c.l.b16 %v437
        %v1859 = vunpack.c.h.b16 %v437
        %v1860 = vunpack.c.l.b16 %v438
        %v1861 = vunpack.c.h.b16 %v438
        %v1862 = vunpack.c.l.b16 %v439
        %v1863 = vunpack.c.h.b16 %v439
        %v1864 = vunpack.c.l.b16 %v440
        %v1865 = vunpack.c.h.b16 %v440
        %v1866 = vunpack.c.l.b16 %v441
        %v1867 = vunpack.c.h.b16 %v441
        %v1868 = vunpack.c.l.b16 %v442
        %v1869 = vunpack.c.h.b16 %v442
        %v1870 = vunpack.c.l.b16 %v443
        %v1871 = vunpack.c.h.b16 %v443
        %v1872 = vunpack.c.l.b16 %v444
        %v1873 = vunpack.c.h.b16 %v444
        %v1874 = vunpack.c.l.b16 %v445
        %v1875 = vunpack.c.h.b16 %v445
        %v1876 = vunpack.c.l.b16 %v446
        %v1877 = vunpack.c.h.b16 %v446
        %v1878 = vunpack.c.l.b16 %v447
        %v1879 = vunpack.c.h.b16 %v447
        %v1880 = vpack.c.b16 %v1628, %v1624
        %v1881 = vpack.c.b16 %v1629, %v1625
        %v1882 = vpack.c.b16 %v1630, %v1626
        %v1883 = vpack.c.b16 %v1631, %v1627
        %v1884 = vpack.c.b16 %v1636, %v1632
        %v1885 = vpack.c.b16 %v1637, %v1633
        %v1886 = vpack.c.b16 %v1638, %v1634
        %v1887 = vpack.c.b16 %v1639, %v1635
        %v1888 = vpack.c.b16 %v1644, %v1640
        %v1889 = vpack.c.b16 %v1645, %v1641
        %v1890 = vpack.c.b16 %v1646, %v1642
        %v1891 = vpack.c.b16 %v1647, %v1643
        %v1892 = vpack.c.b16 %v1652, %v1648
        %v1893 = vpack.c.b16 %v1653, %v1649
        %v1894 = vpack.c.b16 %v1654, %v1650
        %v1895 = vpack.c.b16 %v1655, %v1651
        %v1896 = vpack.c.b16 %v1660, %v1656
        %v1897 = vpack.c.b16 %v1661, %v1657
        %v1898 = vpack.c.b16 %v1662, %v1658
        %v1899 = vpack.c.b16 %v1663, %v1659
        %v1900 = vpack.c.b16 %v1668, %v1664
        %v1901 = vpack.c.b16 %v1669, %v1665
        %v1902 = vpack.c.b16 %v1670, %v1666
        %v1903 = vpack.c.b16 %v1671, %v1667
        %v1904 = vpack.c.b16 %v1676, %v1672
        %v1905 = vpack.c.b16 %v1677, %v1673
        %v1906 = vpack.c.b16 %v1678, %v1674
        %v1907 = vpack.c.b16 %v1679, %v1675
        %v1908 = vpack.c.b16 %v1684, %v1680
        %v1909 = vpack.c.b16 %v1685, %v1681
        %v1910 = vpack.c.b16 %v1686, %v1682
        %v1911 = vpack.c.b16 %v1687, %v1683
        %v1912 = vpack.c.b16 %v1692, %v1688
        %v1913 = vpack.c.b16 %v1693, %v1689
        %v1914 = vpack.c.b16 %v1694, %v1690
        %v1915 = vpack.c.b16 %v1695, %v1691
        %v1916 = vpack.c.b16 %v1700, %v1696
        %v1917 = vpack.c.b16 %v1701, %v1697
        %v1918 = vpack.c.b16 %v1702, %v1698
        %v1919 = vpack.c.b16 %v1703, %v1699
        %v1920 = vpack.c.b16 %v1708, %v1704
        %v1921 = vpack.c.b16 %v1709, %v1705
        %v1922 = vpack.c.b16 %v1710, %v1706
        %v1923 = vpack.c.b16 %v1711, %v1707
        %v1924 = vpack.c.b16 %v1716, %v1712
        %v1925 = vpack.c.b16 %v1717, %v1713
        %v1926 = vpack.c.b16 %v1718, %v1714
        %v1927 = vpack.c.b16 %v1719, %v1715
        %v1928 = vpack.c.b16 %v1724, %v1720
        %v1929 = vpack.c.b16 %v1725, %v1721
        %v1930 = vpack.c.b16 %v1726, %v1722
        %v1931 = vpack.c.b16 %v1727, %v1723
        %v1932 = vpack.c.b16 %v1732, %v1728
        %v1933 = vpack.c.b16 %v1733, %v1729
        %v1934 = vpack.c.b16 %v1734, %v1730
        %v1935 = vpack.c.b16 %v1735, %v1731
        %v1936 = vpack.c.b16 %v1740, %v1736
        %v1937 = vpack.c.b16 %v1741, %v1737
        %v1938 = vpack.c.b16 %v1742, %v1738
        %v1939 = vpack.c.b16 %v1743, %v1739
        %v1940 = vpack.c.b16 %v1748, %v1744
        %v1941 = vpack.c.b16 %v1749, %v1745
        %v1942 = vpack.c.b16 %v1750, %v1746
        %v1943 = vpack.c.b16 %v1751, %v1747
        %v1944 = vpack.c.b16 %v1756, %v1752
        %v1945 = vpack.c.b16 %v1757, %v1753
        %v1946 = vpack.c.b16 %v1758, %v1754
        %v1947 = vpack.c.b16 %v1759, %v1755
        %v1948 = vpack.c.b16 %v1764, %v1760
        %v1949 = vpack.c.b16 %v1765, %v1761
        %v1950 = vpack.c.b16 %v1766, %v1762
        %v1951 = vpack.c.b16 %v1767, %v1763
        %v1952 = vpack.c.b16 %v1772, %v1768
        %v1953 = vpack.c.b16 %v1773, %v1769
        %v1954 = vpack.c.b16 %v1774, %v1770
        %v1955 = vpack.c.b16 %v1775, %v1771
        %v1956 = vpack.c.b16 %v1780, %v1776
        %v1957 = vpack.c.b16 %v1781, %v1777
        %v1958 = vpack.c.b16 %v1782, %v1778
        %v1959 = vpack.c.b16 %v1783, %v1779
        %v1960 = vpack.c.b16 %v1788, %v1784
        %v1961 = vpack.c.b16 %v1789, %v1785
        %v1962 = vpack.c.b16 %v1790, %v1786
        %v1963 = vpack.c.b16 %v1791, %v1787
        %v1964 = vpack.c.b16 %v1796, %v1792
        %v1965 = vpack.c.b16 %v1797, %v1793
        %v1966 = vpack.c.b16 %v1798, %v1794
        %v1967 = vpack.c.b16 %v1799, %v1795
        %v1968 = vpack.c.b16 %v1804, %v1800
        %v1969 = vpack.c.b16 %v1805, %v1801
        %v1970 = vpack.c.b16 %v1806, %v1802
        %v1971 = vpack.c.b16 %v1807, %v1803
        %v1972 = vpack.c.b16 %v1812, %v1808
        %v1973 = vpack.c.b16 %v1813, %v1809
        %v1974 = vpack.c.b16 %v1814, %v1810
        %v1975 = vpack.c.b16 %v1815, %v1811
        %v1976 = vpack.c.b16 %v1820, %v1816
        %v1977 = vpack.c.b16 %v1821, %v1817
        %v1978 = vpack.c.b16 %v1822, %v1818
        %v1979 = vpack.c.b16 %v1823, %v1819
        %v1980 = vpack.c.b16 %v1828, %v1824
        %v1981 = vpack.c.b16 %v1829, %v1825
        %v1982 = vpack.c.b16 %v1830, %v1826
        %v1983 = vpack.c.b16 %v1831, %v1827
        %v1984 = vpack.c.b16 %v1836, %v1832
        %v1985 = vpack.c.b16 %v1837, %v1833
        %v1986 = vpack.c.b16 %v1838, %v1834
        %v1987 = vpack.c.b16 %v1839, %v1835
        %v1988 = vpack.c.b16 %v1844, %v1840
        %v1989 = vpack.c.b16 %v1845, %v1841
        %v1990 = vpack.c.b16 %v1846, %v1842
        %v1991 = vpack.c.b16 %v1847, %v1843
        %v1992 = vpack.c.b16 %v1852, %v1848
        %v1993 = vpack.c.b16 %v1853, %v1849
        %v1994 = vpack.c.b16 %v1854, %v1850
        %v1995 = vpack.c.b16 %v1855, %v1851
        %v1996 = vpack.c.b16 %v1860, %v1856
        %v1997 = vpack.c.b16 %v1861, %v1857
        %v1998 = vpack.c.b16 %v1862, %v1858
        %v1999 = vpack.c.b16 %v1863, %v1859
        %v2000 = vpack.c.b16 %v1868, %v1864
        %v2001 = vpack.c.b16 %v1869, %v1865
        %v2002 = vpack.c.b16 %v1870, %v1866
        %v2003 = vpack.c.b16 %v1871, %v1867
        %v2004 = vpack.c.b16 %v1876, %v1872
        %v2005 = vpack.c.b16 %v1877, %v1873
        %v2006 = vpack.c.b16 %v1878, %v1874
        %v2007 = vpack.c.b16 %v1879, %v1875
        %2136 = vmatprep.subr.bf16.mxu0 %v1909
        %2137 = vmatpush1.bf16.msra.mxu0 %v1908
        %2138 = vmatprep.subr.bf16.mxu0 %v1905
        %2139 = vmatpush1.bf16.msra.mxu0 %v1904
        %2140 = vmatprep.subr.bf16.mxu0 %v1901
        %2141 = vmatpush1.bf16.msra.mxu0 %v1900
        %2142 = vmatprep.subr.bf16.mxu0 %v1897
        %2143 = vmatpush1.bf16.msra.mxu0 %v1896
        %2144 = vmatprep.subr.bf16.mxu0 %v1893
        %2145 = vmatpush1.bf16.msra.mxu0 %v1892
        %2146 = vmatprep.subr.bf16.mxu0 %v1889
        %2147 = vmatpush1.bf16.msra.mxu0 %v1888
        %2148 = vmatprep.subr.bf16.mxu0 %v1885
        %2149 = vmatpush1.bf16.msra.mxu0 %v1884
        %2150 = vmatprep.subr.bf16.mxu0 %v1881
        %2151 = vmatpush1.bf16.msra.mxu0 %v1880
        %2152 = vmatprep.subr.bf16.mxu0 %v1941
        %2153 = vmatpush2.bf16.msra.mxu0 %v1940
        %2154 = vmatprep.subr.bf16.mxu0 %v1937
        %2155 = vmatpush2.bf16.msra.mxu0 %v1936
        %2156 = vmatprep.subr.bf16.mxu0 %v1933
        %2157 = vmatpush2.bf16.msra.mxu0 %v1932
        %2158 = vmatprep.subr.bf16.mxu0 %v1929
        %2159 = vmatpush2.bf16.msra.mxu0 %v1928
        %2160 = vmatprep.subr.bf16.mxu0 %v1925
        %2161 = vmatpush2.bf16.msra.mxu0 %v1924
        %2162 = vmatprep.subr.bf16.mxu0 %v1921
        %2163 = vmatpush2.bf16.msra.mxu0 %v1920
        %2164 = vmatprep.subr.bf16.mxu0 %v1917
        %2165 = vmatpush2.bf16.msra.mxu0 %v1916
        %2166 = vmatprep.subr.bf16.mxu0 %v1913
        %2167 = vmatpush2.bf16.msra.mxu0 %v1912
        %2168 = vmatprep.mubr.bf16.mxu0 %v1457
        %2169 = vmatmul.mubr.bf16.gmra.mxu0 %v1440
        %v2170 = vpop.f32.mrf.mxu0
        %v2171 = vadd.f32 %v1315, %v2170
        %v2172 = vpop.f32.mrf.mxu0
        %v2173 = vadd.f32 %v1317, %v2172
        %v2174 = vpop.f32.mrf.mxu0
        %v2175 = vadd.f32 %v1319, %v2174
        %v2176 = vpop.f32.mrf.mxu0
        %v2177 = vadd.f32 %v1321, %v2176
        %2178 = vdwg.mxu0
        %2179 = vmatprep.subr.bf16.mxu0 %v1973
        %2180 = vmatpush1.bf16.msra.mxu0 %v1972
        %2181 = vmatprep.subr.bf16.mxu0 %v1969
        %2182 = vmatpush1.bf16.msra.mxu0 %v1968
        %2183 = vmatprep.subr.bf16.mxu0 %v1965
        %2184 = vmatpush1.bf16.msra.mxu0 %v1964
        %2185 = vmatprep.subr.bf16.mxu0 %v1961
        %2186 = vmatpush1.bf16.msra.mxu0 %v1960
        %2187 = vmatprep.subr.bf16.mxu0 %v1957
        %2188 = vmatpush1.bf16.msra.mxu0 %v1956
        %2189 = vmatprep.subr.bf16.mxu0 %v1953
        %2190 = vmatpush1.bf16.msra.mxu0 %v1952
        %2191 = vmatprep.subr.bf16.mxu0 %v1949
        %2192 = vmatpush1.bf16.msra.mxu0 %v1948
        %2193 = vmatprep.subr.bf16.mxu0 %v1945
        %2194 = vmatpush1.bf16.msra.mxu0 %v1944
        %2195 = vmatprep.subr.bf16.mxu0 %v2005
        %2196 = vmatpush2.bf16.msra.mxu0 %v2004
        %2197 = vmatprep.subr.bf16.mxu0 %v2001
        %2198 = vmatpush2.bf16.msra.mxu0 %v2000
        %2199 = vmatprep.subr.bf16.mxu0 %v1997
        %2200 = vmatpush2.bf16.msra.mxu0 %v1996
        %2201 = vmatprep.subr.bf16.mxu0 %v1993
        %2202 = vmatpush2.bf16.msra.mxu0 %v1992
        %2203 = vmatprep.subr.bf16.mxu0 %v1989
        %2204 = vmatpush2.bf16.msra.mxu0 %v1988
        %2205 = vmatprep.subr.bf16.mxu0 %v1985
        %2206 = vmatpush2.bf16.msra.mxu0 %v1984
        %2207 = vmatprep.subr.bf16.mxu0 %v1981
        %2208 = vmatpush2.bf16.msra.mxu0 %v1980
        %2209 = vmatprep.subr.bf16.mxu0 %v1977
        %2210 = vmatpush2.bf16.msra.mxu0 %v1976
        %2211 = vmatprep.mubr.bf16.mxu0 %v1491
        %2212 = vmatmul.mubr.bf16.gmra.mxu0 %v1474
        %v2213 = vpop.f32.mrf.mxu0
        %v2214 = vadd.f32 %v2171, %v2213
        %v2215 = vpop.f32.mrf.mxu0
        %v2216 = vadd.f32 %v2173, %v2215
        %v2217 = vpop.f32.mrf.mxu0
        %v2218 = vadd.f32 %v2175, %v2217
        %v2219 = vpop.f32.mrf.mxu0
        %v2220 = vadd.f32 %v2177, %v2219
        %2221 = vdwg.mxu0
        %2222 = vmatprep.subr.bf16.mxu0 %v1911
        %2223 = vmatpush1.bf16.msra.mxu0 %v1910
        %2224 = vmatprep.subr.bf16.mxu0 %v1907
        %2225 = vmatpush1.bf16.msra.mxu0 %v1906
        %2226 = vmatprep.subr.bf16.mxu0 %v1903
        %2227 = vmatpush1.bf16.msra.mxu0 %v1902
        %2228 = vmatprep.subr.bf16.mxu0 %v1899
        %2229 = vmatpush1.bf16.msra.mxu0 %v1898
        %2230 = vmatprep.subr.bf16.mxu0 %v1895
        %2231 = vmatpush1.bf16.msra.mxu0 %v1894
        %2232 = vmatprep.subr.bf16.mxu0 %v1891
        %2233 = vmatpush1.bf16.msra.mxu0 %v1890
        %2234 = vmatprep.subr.bf16.mxu0 %v1887
        %2235 = vmatpush1.bf16.msra.mxu0 %v1886
        %2236 = vmatprep.subr.bf16.mxu0 %v1883
        %2237 = vmatpush1.bf16.msra.mxu0 %v1882
        %2238 = vmatprep.subr.bf16.mxu0 %v1943
        %2239 = vmatpush2.bf16.msra.mxu0 %v1942
        %2240 = vmatprep.subr.bf16.mxu0 %v1939
        %2241 = vmatpush2.bf16.msra.mxu0 %v1938
        %2242 = vmatprep.subr.bf16.mxu0 %v1935
        %2243 = vmatpush2.bf16.msra.mxu0 %v1934
        %2244 = vmatprep.subr.bf16.mxu0 %v1931
        %2245 = vmatpush2.bf16.msra.mxu0 %v1930
        %2246 = vmatprep.subr.bf16.mxu0 %v1927
        %2247 = vmatpush2.bf16.msra.mxu0 %v1926
        %2248 = vmatprep.subr.bf16.mxu0 %v1923
        %2249 = vmatpush2.bf16.msra.mxu0 %v1922
        %2250 = vmatprep.subr.bf16.mxu0 %v1919
        %2251 = vmatpush2.bf16.msra.mxu0 %v1918
        %2252 = vmatprep.subr.bf16.mxu0 %v1915
        %2253 = vmatpush2.bf16.msra.mxu0 %v1914
        %2254 = vmatprep.mubr.bf16.mxu0 %v1457
        %2255 = vmatmul.mubr.bf16.gmra.mxu0 %v1440
        %v2256 = vpop.f32.mrf.mxu0
        %v2257 = vadd.f32 %v1401, %v2256
        %v2258 = vpop.f32.mrf.mxu0
        %v2259 = vadd.f32 %v1403, %v2258
        %v2260 = vpop.f32.mrf.mxu0
        %v2261 = vadd.f32 %v1405, %v2260
        %v2262 = vpop.f32.mrf.mxu0
        %v2263 = vadd.f32 %v1407, %v2262
        %2264 = vdwg.mxu0
        %2265 = vmatprep.subr.bf16.mxu0 %v1975
        %2266 = vmatpush1.bf16.msra.mxu0 %v1974
        %2267 = vmatprep.subr.bf16.mxu0 %v1971
        %2268 = vmatpush1.bf16.msra.mxu0 %v1970
        %2269 = vmatprep.subr.bf16.mxu0 %v1967
        %2270 = vmatpush1.bf16.msra.mxu0 %v1966
        %2271 = vmatprep.subr.bf16.mxu0 %v1963
        %2272 = vmatpush1.bf16.msra.mxu0 %v1962
        %2273 = vmatprep.subr.bf16.mxu0 %v1959
        %2274 = vmatpush1.bf16.msra.mxu0 %v1958
        %2275 = vmatprep.subr.bf16.mxu0 %v1955
        %2276 = vmatpush1.bf16.msra.mxu0 %v1954
        %2277 = vmatprep.subr.bf16.mxu0 %v1951
        %2278 = vmatpush1.bf16.msra.mxu0 %v1950
        %2279 = vmatprep.subr.bf16.mxu0 %v1947
        %2280 = vmatpush1.bf16.msra.mxu0 %v1946
        %2281 = vmatprep.subr.bf16.mxu0 %v2007
        %2282 = vmatpush2.bf16.msra.mxu0 %v2006
        %2283 = vmatprep.subr.bf16.mxu0 %v2003
        %2284 = vmatpush2.bf16.msra.mxu0 %v2002
        %2285 = vmatprep.subr.bf16.mxu0 %v1999
        %2286 = vmatpush2.bf16.msra.mxu0 %v1998
        %2287 = vmatprep.subr.bf16.mxu0 %v1995
        %2288 = vmatpush2.bf16.msra.mxu0 %v1994
        %2289 = vmatprep.subr.bf16.mxu0 %v1991
        %2290 = vmatpush2.bf16.msra.mxu0 %v1990
        %2291 = vmatprep.subr.bf16.mxu0 %v1987
        %2292 = vmatpush2.bf16.msra.mxu0 %v1986
        %2293 = vmatprep.subr.bf16.mxu0 %v1983
        %2294 = vmatpush2.bf16.msra.mxu0 %v1982
        %2295 = vmatprep.subr.bf16.mxu0 %v1979
        %2296 = vmatpush2.bf16.msra.mxu0 %v1978
        %2297 = vmatprep.mubr.bf16.mxu0 %v1491
        %2298 = vmatmul.mubr.bf16.gmra.mxu0 %v1474
        %v2299 = vpop.f32.mrf.mxu0
        %v2300 = vadd.f32 %v2257, %v2299
        %v2301 = vpop.f32.mrf.mxu0
        %v2302 = vadd.f32 %v2259, %v2301
        %v2303 = vpop.f32.mrf.mxu0
        %v2304 = vadd.f32 %v2261, %v2303
        %v2305 = vpop.f32.mrf.mxu0
        %v2306 = vadd.f32 %v2263, %v2305
        %2307 = vdwg.mxu0
        %v2308 = vld [vmem:[#allocation2 + $0x10] sm:$0xff]
        %v2309 = vld [vmem:[#allocation2 + $0x18] sm:$0xff]
        %v2310 = vld [vmem:[#allocation2 + $0x20] sm:$0xff]
        %v2311 = vld [vmem:[#allocation2 + $0x28] sm:$0xff]
        %v2312 = vld [vmem:[#allocation2 + $0x30] sm:$0x11]
        %v2313 = vld [vmem:[#allocation2 + $0x38] sm:$0x11]
        %s2314 = scalar_lea.vmem [#allocation7], 2048
        %v2315 = vld [vmem:[%s2314] sm:$0xff]
        %v2316 = vld [vmem:[%s2314 + $0x8] sm:$0xff]
        %v2317 = vld [vmem:[%s2314 + $0x10] sm:$0xff]
        %v2318 = vld [vmem:[%s2314 + $0x18] sm:$0xff]
        %v2319 = vld [vmem:[%s2314 + $0x20] sm:$0xff]
        %v2320 = vld [vmem:[%s2314 + $0x28] sm:$0xff]
        %v2321 = vld [vmem:[%s2314 + $0x30] sm:$0xff]
        %v2322 = vld [vmem:[%s2314 + $0x38] sm:$0xff]
        %v2323 = vld [vmem:[%s2314 + $0x40] sm:$0xff]
        %v2324 = vld [vmem:[%s2314 + $0x48] sm:$0xff]
        %v2325 = vld [vmem:[%s2314 + $0x50] sm:$0xff]
        %v2326 = vld [vmem:[%s2314 + $0x58] sm:$0xff]
        %v2327 = vld [vmem:[%s2314 + $0x60] sm:$0xff]
        %v2328 = vld [vmem:[%s2314 + $0x68] sm:$0xff]
        %v2329 = vld [vmem:[%s2314 + $0x70] sm:$0xff]
        %v2330 = vld [vmem:[%s2314 + $0x78] sm:$0xff]
        %v2331 = vld [vmem:[%s2314 + $0x80] sm:$0xff]
        %v2332 = vld [vmem:[%s2314 + $0x88] sm:$0xff]
        %v2333 = vld [vmem:[%s2314 + $0x90] sm:$0xff]
        %v2334 = vld [vmem:[%s2314 + $0x98] sm:$0xff]
        %v2335 = vld [vmem:[%s2314 + $0xa0] sm:$0xff]
        %v2336 = vld [vmem:[%s2314 + $0xa8] sm:$0xff]
        %v2337 = vld [vmem:[%s2314 + $0xb0] sm:$0xff]
        %v2338 = vld [vmem:[%s2314 + $0xb8] sm:$0xff]
        %v2339 = vld [vmem:[%s2314 + $0xc0] sm:$0xff]
        %v2340 = vld [vmem:[%s2314 + $0xc8] sm:$0xff]
        %v2341 = vld [vmem:[%s2314 + $0xd0] sm:$0xff]
        %v2342 = vld [vmem:[%s2314 + $0xd8] sm:$0xff]
        %v2343 = vld [vmem:[%s2314 + $0xe0] sm:$0xff]
        %v2344 = vld [vmem:[%s2314 + $0xe8] sm:$0xff]
        %v2345 = vld [vmem:[%s2314 + $0xf0] sm:$0xff]
        %v2346 = vld [vmem:[%s2314 + $0xf8] sm:$0xff]
        %v2347 = vld [vmem:[%s2314 + $0x100] sm:$0xff]
        %v2348 = vld [vmem:[%s2314 + $0x108] sm:$0xff]
        %v2349 = vld [vmem:[%s2314 + $0x110] sm:$0xff]
        %v2350 = vld [vmem:[%s2314 + $0x118] sm:$0xff]
        %v2351 = vld [vmem:[%s2314 + $0x120] sm:$0xff]
        %v2352 = vld [vmem:[%s2314 + $0x128] sm:$0xff]
        %v2353 = vld [vmem:[%s2314 + $0x130] sm:$0xff]
        %v2354 = vld [vmem:[%s2314 + $0x138] sm:$0xff]
        %v2355 = vld [vmem:[%s2314 + $0x140] sm:$0xff]
        %v2356 = vld [vmem:[%s2314 + $0x148] sm:$0xff]
        %v2357 = vld [vmem:[%s2314 + $0x150] sm:$0xff]
        %v2358 = vld [vmem:[%s2314 + $0x158] sm:$0xff]
        %v2359 = vld [vmem:[%s2314 + $0x160] sm:$0xff]
        %v2360 = vld [vmem:[%s2314 + $0x168] sm:$0xff]
        %v2361 = vld [vmem:[%s2314 + $0x170] sm:$0xff]
        %v2362 = vld [vmem:[%s2314 + $0x178] sm:$0xff]
        %v2363 = vld [vmem:[%s2314 + $0x180] sm:$0xff]
        %v2364 = vld [vmem:[%s2314 + $0x188] sm:$0xff]
        %v2365 = vld [vmem:[%s2314 + $0x190] sm:$0xff]
        %v2366 = vld [vmem:[%s2314 + $0x198] sm:$0xff]
        %v2367 = vld [vmem:[%s2314 + $0x1a0] sm:$0xff]
        %v2368 = vld [vmem:[%s2314 + $0x1a8] sm:$0xff]
        %v2369 = vld [vmem:[%s2314 + $0x1b0] sm:$0xff]
        %v2370 = vld [vmem:[%s2314 + $0x1b8] sm:$0xff]
        %v2371 = vld [vmem:[%s2314 + $0x1c0] sm:$0xff]
        %v2372 = vld [vmem:[%s2314 + $0x1c8] sm:$0xff]
        %v2373 = vld [vmem:[%s2314 + $0x1d0] sm:$0xff]
        %v2374 = vld [vmem:[%s2314 + $0x1d8] sm:$0xff]
        %v2375 = vld [vmem:[%s2314 + $0x1e0] sm:$0xff]
        %v2376 = vld [vmem:[%s2314 + $0x1e8] sm:$0xff]
        %v2377 = vld [vmem:[%s2314 + $0x1f0] sm:$0xff]
        %v2378 = vld [vmem:[%s2314 + $0x1f8] sm:$0xff]
        %v2379 = vld [vmem:[%s2314 + $0x200] sm:$0xff]
        %v2380 = vld [vmem:[%s2314 + $0x208] sm:$0xff]
        %v2381 = vld [vmem:[%s2314 + $0x210] sm:$0xff]
        %v2382 = vld [vmem:[%s2314 + $0x218] sm:$0xff]
        %v2383 = vld [vmem:[%s2314 + $0x220] sm:$0xff]
        %v2384 = vld [vmem:[%s2314 + $0x228] sm:$0xff]
        %v2385 = vld [vmem:[%s2314 + $0x230] sm:$0xff]
        %v2386 = vld [vmem:[%s2314 + $0x238] sm:$0xff]
        %v2387 = vld [vmem:[%s2314 + $0x240] sm:$0xff]
        %v2388 = vld [vmem:[%s2314 + $0x248] sm:$0xff]
        %v2389 = vld [vmem:[%s2314 + $0x250] sm:$0xff]
        %v2390 = vld [vmem:[%s2314 + $0x258] sm:$0xff]
        %v2391 = vld [vmem:[%s2314 + $0x260] sm:$0xff]
        %v2392 = vld [vmem:[%s2314 + $0x268] sm:$0xff]
        %v2393 = vld [vmem:[%s2314 + $0x270] sm:$0xff]
        %v2394 = vld [vmem:[%s2314 + $0x278] sm:$0xff]
        %v2395 = vld [vmem:[%s2314 + $0x280] sm:$0xff]
        %v2396 = vld [vmem:[%s2314 + $0x288] sm:$0xff]
        %v2397 = vld [vmem:[%s2314 + $0x290] sm:$0xff]
        %v2398 = vld [vmem:[%s2314 + $0x298] sm:$0xff]
        %v2399 = vld [vmem:[%s2314 + $0x2a0] sm:$0xff]
        %v2400 = vld [vmem:[%s2314 + $0x2a8] sm:$0xff]
        %v2401 = vld [vmem:[%s2314 + $0x2b0] sm:$0xff]
        %v2402 = vld [vmem:[%s2314 + $0x2b8] sm:$0xff]
        %v2403 = vld [vmem:[%s2314 + $0x2c0] sm:$0xff]
        %v2404 = vld [vmem:[%s2314 + $0x2c8] sm:$0xff]
        %v2405 = vld [vmem:[%s2314 + $0x2d0] sm:$0xff]
        %v2406 = vld [vmem:[%s2314 + $0x2d8] sm:$0xff]
        %v2407 = vld [vmem:[%s2314 + $0x2e0] sm:$0xff]
        %v2408 = vld [vmem:[%s2314 + $0x2e8] sm:$0xff]
        %v2409 = vld [vmem:[%s2314 + $0x2f0] sm:$0xff]
        %v2410 = vld [vmem:[%s2314 + $0x2f8] sm:$0xff]
        %v2411 = vld [vmem:[%s2314 + $0x300] sm:$0xff]
        %v2412 = vld [vmem:[%s2314 + $0x308] sm:$0xff]
        %v2413 = vld [vmem:[%s2314 + $0x310] sm:$0xff]
        %v2414 = vld [vmem:[%s2314 + $0x318] sm:$0xff]
        %v2415 = vld [vmem:[%s2314 + $0x320] sm:$0xff]
        %v2416 = vld [vmem:[%s2314 + $0x328] sm:$0xff]
        %v2417 = vld [vmem:[%s2314 + $0x330] sm:$0xff]
        %v2418 = vld [vmem:[%s2314 + $0x338] sm:$0xff]
        %v2419 = vld [vmem:[%s2314 + $0x340] sm:$0xff]
        %v2420 = vld [vmem:[%s2314 + $0x348] sm:$0xff]
        %v2421 = vld [vmem:[%s2314 + $0x350] sm:$0xff]
        %v2422 = vld [vmem:[%s2314 + $0x358] sm:$0xff]
        %v2423 = vld [vmem:[%s2314 + $0x360] sm:$0xff]
        %v2424 = vld [vmem:[%s2314 + $0x368] sm:$0xff]
        %v2425 = vld [vmem:[%s2314 + $0x370] sm:$0xff]
        %v2426 = vld [vmem:[%s2314 + $0x378] sm:$0xff]
        %v2427 = vld [vmem:[%s2314 + $0x380] sm:$0xff]
        %v2428 = vld [vmem:[%s2314 + $0x388] sm:$0xff]
        %v2429 = vld [vmem:[%s2314 + $0x390] sm:$0xff]
        %v2430 = vld [vmem:[%s2314 + $0x398] sm:$0xff]
        %v2431 = vld [vmem:[%s2314 + $0x3a0] sm:$0xff]
        %v2432 = vld [vmem:[%s2314 + $0x3a8] sm:$0xff]
        %v2433 = vld [vmem:[%s2314 + $0x3b0] sm:$0xff]
        %v2434 = vld [vmem:[%s2314 + $0x3b8] sm:$0xff]
        %v2435 = vld [vmem:[%s2314 + $0x3c0] sm:$0xff]
        %v2436 = vld [vmem:[%s2314 + $0x3c8] sm:$0xff]
        %v2437 = vld [vmem:[%s2314 + $0x3d0] sm:$0xff]
        %v2438 = vld [vmem:[%s2314 + $0x3d8] sm:$0xff]
        %v2439 = vld [vmem:[%s2314 + $0x3e0] sm:$0xff]
        %v2440 = vld [vmem:[%s2314 + $0x3e8] sm:$0xff]
        %v2441 = vld [vmem:[%s2314 + $0x3f0] sm:$0xff]
        %v2442 = vld [vmem:[%s2314 + $0x3f8] sm:$0xff]
        %v2449 = vunpack.c.l.b16 %v2308
        %v2450 = vunpack.c.h.b16 %v2308
        %v2451 = vunpack.c.l.b16 %v2309
        %v2452 = vunpack.c.h.b16 %v2309
        %v2453 = vunpack.c.l.b16 %v2310
        %v2454 = vunpack.c.h.b16 %v2310
        %v2455 = vunpack.c.l.b16 %v2311
        %v2456 = vunpack.c.h.b16 %v2311
        %v2457 = vunpack.c.l.b16 %v2312
        %v2458 = vunpack.c.h.b16 %v2312
        %v2459 = vunpack.c.l.b16 %v2313
        %v2460 = vunpack.c.h.b16 %v2313
        %v2461 = vpack.c.b16 %v2453, %v2449
        %v2462 = vpack.c.b16 %v2454, %v2450
        %v2463 = vpack.c.b16 %v2455, %v2451
        %v2464 = vpack.c.b16 %v2456, %v2452
        %v2465 = vpack.c.b16 %v2457, %v2457
        %v2466 = vpack.c.b16 %v2458, %v2458
        %v2467 = vpack.c.b16 %v2459, %v2459
        %v2468 = vpack.c.b16 %v2460, %v2460
        %vm2469 = vsmask.f32 7424
        %v2471 = vshrl.u32 %v2461, 16
        %v2473 = vshll.u32 %v2461, 16
        %v2475 = vrot.slane %v2473, 1
        %v2476 = vor.u32 %v2471, %v2475
        %v2478 = vshll.u32 %v2465, 16
        %v2480 = vrot.slane %v2478, 1
        %v2481 = vsel %vm2469, %v2476, %v2480
        %v2483 = vshrl.u32 %v2462, 16
        %v2485 = vshll.u32 %v2462, 16
        %v2487 = vrot.slane %v2485, 1
        %v2488 = vor.u32 %v2483, %v2487
        %v2490 = vshll.u32 %v2466, 16
        %v2492 = vrot.slane %v2490, 1
        %v2493 = vsel %vm2469, %v2488, %v2492
        %v2495 = vshrl.u32 %v2463, 16
        %v2497 = vshll.u32 %v2463, 16
        %v2499 = vrot.slane %v2497, 1
        %v2500 = vor.u32 %v2495, %v2499
        %v2502 = vshll.u32 %v2467, 16
        %v2504 = vrot.slane %v2502, 1
        %v2505 = vsel %vm2469, %v2500, %v2504
        %v2507 = vshrl.u32 %v2464, 16
        %v2509 = vshll.u32 %v2464, 16
        %v2511 = vrot.slane %v2509, 1
        %v2512 = vor.u32 %v2507, %v2511
        %v2514 = vshll.u32 %v2468, 16
        %v2516 = vrot.slane %v2514, 1
        %v2517 = vsel %vm2469, %v2512, %v2516
        %v2650 = vunpack.c.l.b16 %v2315
        %v2651 = vunpack.c.h.b16 %v2315
        %v2652 = vunpack.c.l.b16 %v2316
        %v2653 = vunpack.c.h.b16 %v2316
        %v2654 = vunpack.c.l.b16 %v2317
        %v2655 = vunpack.c.h.b16 %v2317
        %v2656 = vunpack.c.l.b16 %v2318
        %v2657 = vunpack.c.h.b16 %v2318
        %v2658 = vunpack.c.l.b16 %v2319
        %v2659 = vunpack.c.h.b16 %v2319
        %v2660 = vunpack.c.l.b16 %v2320
        %v2661 = vunpack.c.h.b16 %v2320
        %v2662 = vunpack.c.l.b16 %v2321
        %v2663 = vunpack.c.h.b16 %v2321
        %v2664 = vunpack.c.l.b16 %v2322
        %v2665 = vunpack.c.h.b16 %v2322
        %v2666 = vunpack.c.l.b16 %v2323
        %v2667 = vunpack.c.h.b16 %v2323
        %v2668 = vunpack.c.l.b16 %v2324
        %v2669 = vunpack.c.h.b16 %v2324
        %v2670 = vunpack.c.l.b16 %v2325
        %v2671 = vunpack.c.h.b16 %v2325
        %v2672 = vunpack.c.l.b16 %v2326
        %v2673 = vunpack.c.h.b16 %v2326
        %v2674 = vunpack.c.l.b16 %v2327
        %v2675 = vunpack.c.h.b16 %v2327
        %v2676 = vunpack.c.l.b16 %v2328
        %v2677 = vunpack.c.h.b16 %v2328
        %v2678 = vunpack.c.l.b16 %v2329
        %v2679 = vunpack.c.h.b16 %v2329
        %v2680 = vunpack.c.l.b16 %v2330
        %v2681 = vunpack.c.h.b16 %v2330
        %v2682 = vunpack.c.l.b16 %v2331
        %v2683 = vunpack.c.h.b16 %v2331
        %v2684 = vunpack.c.l.b16 %v2332
        %v2685 = vunpack.c.h.b16 %v2332
        %v2686 = vunpack.c.l.b16 %v2333
        %v2687 = vunpack.c.h.b16 %v2333
        %v2688 = vunpack.c.l.b16 %v2334
        %v2689 = vunpack.c.h.b16 %v2334
        %v2690 = vunpack.c.l.b16 %v2335
        %v2691 = vunpack.c.h.b16 %v2335
        %v2692 = vunpack.c.l.b16 %v2336
        %v2693 = vunpack.c.h.b16 %v2336
        %v2694 = vunpack.c.l.b16 %v2337
        %v2695 = vunpack.c.h.b16 %v2337
        %v2696 = vunpack.c.l.b16 %v2338
        %v2697 = vunpack.c.h.b16 %v2338
        %v2698 = vunpack.c.l.b16 %v2339
        %v2699 = vunpack.c.h.b16 %v2339
        %v2700 = vunpack.c.l.b16 %v2340
        %v2701 = vunpack.c.h.b16 %v2340
        %v2702 = vunpack.c.l.b16 %v2341
        %v2703 = vunpack.c.h.b16 %v2341
        %v2704 = vunpack.c.l.b16 %v2342
        %v2705 = vunpack.c.h.b16 %v2342
        %v2706 = vunpack.c.l.b16 %v2343
        %v2707 = vunpack.c.h.b16 %v2343
        %v2708 = vunpack.c.l.b16 %v2344
        %v2709 = vunpack.c.h.b16 %v2344
        %v2710 = vunpack.c.l.b16 %v2345
        %v2711 = vunpack.c.h.b16 %v2345
        %v2712 = vunpack.c.l.b16 %v2346
        %v2713 = vunpack.c.h.b16 %v2346
        %v2714 = vunpack.c.l.b16 %v2347
        %v2715 = vunpack.c.h.b16 %v2347
        %v2716 = vunpack.c.l.b16 %v2348
        %v2717 = vunpack.c.h.b16 %v2348
        %v2718 = vunpack.c.l.b16 %v2349
        %v2719 = vunpack.c.h.b16 %v2349
        %v2720 = vunpack.c.l.b16 %v2350
        %v2721 = vunpack.c.h.b16 %v2350
        %v2722 = vunpack.c.l.b16 %v2351
        %v2723 = vunpack.c.h.b16 %v2351
        %v2724 = vunpack.c.l.b16 %v2352
        %v2725 = vunpack.c.h.b16 %v2352
        %v2726 = vunpack.c.l.b16 %v2353
        %v2727 = vunpack.c.h.b16 %v2353
        %v2728 = vunpack.c.l.b16 %v2354
        %v2729 = vunpack.c.h.b16 %v2354
        %v2730 = vunpack.c.l.b16 %v2355
        %v2731 = vunpack.c.h.b16 %v2355
        %v2732 = vunpack.c.l.b16 %v2356
        %v2733 = vunpack.c.h.b16 %v2356
        %v2734 = vunpack.c.l.b16 %v2357
        %v2735 = vunpack.c.h.b16 %v2357
        %v2736 = vunpack.c.l.b16 %v2358
        %v2737 = vunpack.c.h.b16 %v2358
        %v2738 = vunpack.c.l.b16 %v2359
        %v2739 = vunpack.c.h.b16 %v2359
        %v2740 = vunpack.c.l.b16 %v2360
        %v2741 = vunpack.c.h.b16 %v2360
        %v2742 = vunpack.c.l.b16 %v2361
        %v2743 = vunpack.c.h.b16 %v2361
        %v2744 = vunpack.c.l.b16 %v2362
        %v2745 = vunpack.c.h.b16 %v2362
        %v2746 = vunpack.c.l.b16 %v2363
        %v2747 = vunpack.c.h.b16 %v2363
        %v2748 = vunpack.c.l.b16 %v2364
        %v2749 = vunpack.c.h.b16 %v2364
        %v2750 = vunpack.c.l.b16 %v2365
        %v2751 = vunpack.c.h.b16 %v2365
        %v2752 = vunpack.c.l.b16 %v2366
        %v2753 = vunpack.c.h.b16 %v2366
        %v2754 = vunpack.c.l.b16 %v2367
        %v2755 = vunpack.c.h.b16 %v2367
        %v2756 = vunpack.c.l.b16 %v2368
        %v2757 = vunpack.c.h.b16 %v2368
        %v2758 = vunpack.c.l.b16 %v2369
        %v2759 = vunpack.c.h.b16 %v2369
        %v2760 = vunpack.c.l.b16 %v2370
        %v2761 = vunpack.c.h.b16 %v2370
        %v2762 = vunpack.c.l.b16 %v2371
        %v2763 = vunpack.c.h.b16 %v2371
        %v2764 = vunpack.c.l.b16 %v2372
        %v2765 = vunpack.c.h.b16 %v2372
        %v2766 = vunpack.c.l.b16 %v2373
        %v2767 = vunpack.c.h.b16 %v2373
        %v2768 = vunpack.c.l.b16 %v2374
        %v2769 = vunpack.c.h.b16 %v2374
        %v2770 = vunpack.c.l.b16 %v2375
        %v2771 = vunpack.c.h.b16 %v2375
        %v2772 = vunpack.c.l.b16 %v2376
        %v2773 = vunpack.c.h.b16 %v2376
        %v2774 = vunpack.c.l.b16 %v2377
        %v2775 = vunpack.c.h.b16 %v2377
        %v2776 = vunpack.c.l.b16 %v2378
        %v2777 = vunpack.c.h.b16 %v2378
        %v2778 = vunpack.c.l.b16 %v2379
        %v2779 = vunpack.c.h.b16 %v2379
        %v2780 = vunpack.c.l.b16 %v2380
        %v2781 = vunpack.c.h.b16 %v2380
        %v2782 = vunpack.c.l.b16 %v2381
        %v2783 = vunpack.c.h.b16 %v2381
        %v2784 = vunpack.c.l.b16 %v2382
        %v2785 = vunpack.c.h.b16 %v2382
        %v2786 = vunpack.c.l.b16 %v2383
        %v2787 = vunpack.c.h.b16 %v2383
        %v2788 = vunpack.c.l.b16 %v2384
        %v2789 = vunpack.c.h.b16 %v2384
        %v2790 = vunpack.c.l.b16 %v2385
        %v2791 = vunpack.c.h.b16 %v2385
        %v2792 = vunpack.c.l.b16 %v2386
        %v2793 = vunpack.c.h.b16 %v2386
        %v2794 = vunpack.c.l.b16 %v2387
        %v2795 = vunpack.c.h.b16 %v2387
        %v2796 = vunpack.c.l.b16 %v2388
        %v2797 = vunpack.c.h.b16 %v2388
        %v2798 = vunpack.c.l.b16 %v2389
        %v2799 = vunpack.c.h.b16 %v2389
        %v2800 = vunpack.c.l.b16 %v2390
        %v2801 = vunpack.c.h.b16 %v2390
        %v2802 = vunpack.c.l.b16 %v2391
        %v2803 = vunpack.c.h.b16 %v2391
        %v2804 = vunpack.c.l.b16 %v2392
        %v2805 = vunpack.c.h.b16 %v2392
        %v2806 = vunpack.c.l.b16 %v2393
        %v2807 = vunpack.c.h.b16 %v2393
        %v2808 = vunpack.c.l.b16 %v2394
        %v2809 = vunpack.c.h.b16 %v2394
        %v2810 = vunpack.c.l.b16 %v2395
        %v2811 = vunpack.c.h.b16 %v2395
        %v2812 = vunpack.c.l.b16 %v2396
        %v2813 = vunpack.c.h.b16 %v2396
        %v2814 = vunpack.c.l.b16 %v2397
        %v2815 = vunpack.c.h.b16 %v2397
        %v2816 = vunpack.c.l.b16 %v2398
        %v2817 = vunpack.c.h.b16 %v2398
        %v2818 = vunpack.c.l.b16 %v2399
        %v2819 = vunpack.c.h.b16 %v2399
        %v2820 = vunpack.c.l.b16 %v2400
        %v2821 = vunpack.c.h.b16 %v2400
        %v2822 = vunpack.c.l.b16 %v2401
        %v2823 = vunpack.c.h.b16 %v2401
        %v2824 = vunpack.c.l.b16 %v2402
        %v2825 = vunpack.c.h.b16 %v2402
        %v2826 = vunpack.c.l.b16 %v2403
        %v2827 = vunpack.c.h.b16 %v2403
        %v2828 = vunpack.c.l.b16 %v2404
        %v2829 = vunpack.c.h.b16 %v2404
        %v2830 = vunpack.c.l.b16 %v2405
        %v2831 = vunpack.c.h.b16 %v2405
        %v2832 = vunpack.c.l.b16 %v2406
        %v2833 = vunpack.c.h.b16 %v2406
        %v2834 = vunpack.c.l.b16 %v2407
        %v2835 = vunpack.c.h.b16 %v2407
        %v2836 = vunpack.c.l.b16 %v2408
        %v2837 = vunpack.c.h.b16 %v2408
        %v2838 = vunpack.c.l.b16 %v2409
        %v2839 = vunpack.c.h.b16 %v2409
        %v2840 = vunpack.c.l.b16 %v2410
        %v2841 = vunpack.c.h.b16 %v2410
        %v2842 = vunpack.c.l.b16 %v2411
        %v2843 = vunpack.c.h.b16 %v2411
        %v2844 = vunpack.c.l.b16 %v2412
        %v2845 = vunpack.c.h.b16 %v2412
        %v2846 = vunpack.c.l.b16 %v2413
        %v2847 = vunpack.c.h.b16 %v2413
        %v2848 = vunpack.c.l.b16 %v2414
        %v2849 = vunpack.c.h.b16 %v2414
        %v2850 = vunpack.c.l.b16 %v2415
        %v2851 = vunpack.c.h.b16 %v2415
        %v2852 = vunpack.c.l.b16 %v2416
        %v2853 = vunpack.c.h.b16 %v2416
        %v2854 = vunpack.c.l.b16 %v2417
        %v2855 = vunpack.c.h.b16 %v2417
        %v2856 = vunpack.c.l.b16 %v2418
        %v2857 = vunpack.c.h.b16 %v2418
        %v2858 = vunpack.c.l.b16 %v2419
        %v2859 = vunpack.c.h.b16 %v2419
        %v2860 = vunpack.c.l.b16 %v2420
        %v2861 = vunpack.c.h.b16 %v2420
        %v2862 = vunpack.c.l.b16 %v2421
        %v2863 = vunpack.c.h.b16 %v2421
        %v2864 = vunpack.c.l.b16 %v2422
        %v2865 = vunpack.c.h.b16 %v2422
        %v2866 = vunpack.c.l.b16 %v2423
        %v2867 = vunpack.c.h.b16 %v2423
        %v2868 = vunpack.c.l.b16 %v2424
        %v2869 = vunpack.c.h.b16 %v2424
        %v2870 = vunpack.c.l.b16 %v2425
        %v2871 = vunpack.c.h.b16 %v2425
        %v2872 = vunpack.c.l.b16 %v2426
        %v2873 = vunpack.c.h.b16 %v2426
        %v2874 = vunpack.c.l.b16 %v2427
        %v2875 = vunpack.c.h.b16 %v2427
        %v2876 = vunpack.c.l.b16 %v2428
        %v2877 = vunpack.c.h.b16 %v2428
        %v2878 = vunpack.c.l.b16 %v2429
        %v2879 = vunpack.c.h.b16 %v2429
        %v2880 = vunpack.c.l.b16 %v2430
        %v2881 = vunpack.c.h.b16 %v2430
        %v2882 = vunpack.c.l.b16 %v2431
        %v2883 = vunpack.c.h.b16 %v2431
        %v2884 = vunpack.c.l.b16 %v2432
        %v2885 = vunpack.c.h.b16 %v2432
        %v2886 = vunpack.c.l.b16 %v2433
        %v2887 = vunpack.c.h.b16 %v2433
        %v2888 = vunpack.c.l.b16 %v2434
        %v2889 = vunpack.c.h.b16 %v2434
        %v2890 = vunpack.c.l.b16 %v2435
        %v2891 = vunpack.c.h.b16 %v2435
        %v2892 = vunpack.c.l.b16 %v2436
        %v2893 = vunpack.c.h.b16 %v2436
        %v2894 = vunpack.c.l.b16 %v2437
        %v2895 = vunpack.c.h.b16 %v2437
        %v2896 = vunpack.c.l.b16 %v2438
        %v2897 = vunpack.c.h.b16 %v2438
        %v2898 = vunpack.c.l.b16 %v2439
        %v2899 = vunpack.c.h.b16 %v2439
        %v2900 = vunpack.c.l.b16 %v2440
        %v2901 = vunpack.c.h.b16 %v2440
        %v2902 = vunpack.c.l.b16 %v2441
        %v2903 = vunpack.c.h.b16 %v2441
        %v2904 = vunpack.c.l.b16 %v2442
        %v2905 = vunpack.c.h.b16 %v2442
        %v2906 = vpack.c.b16 %v2654, %v2650
        %v2907 = vpack.c.b16 %v2655, %v2651
        %v2908 = vpack.c.b16 %v2656, %v2652
        %v2909 = vpack.c.b16 %v2657, %v2653
        %v2910 = vpack.c.b16 %v2662, %v2658
        %v2911 = vpack.c.b16 %v2663, %v2659
        %v2912 = vpack.c.b16 %v2664, %v2660
        %v2913 = vpack.c.b16 %v2665, %v2661
        %v2914 = vpack.c.b16 %v2670, %v2666
        %v2915 = vpack.c.b16 %v2671, %v2667
        %v2916 = vpack.c.b16 %v2672, %v2668
        %v2917 = vpack.c.b16 %v2673, %v2669
        %v2918 = vpack.c.b16 %v2678, %v2674
        %v2919 = vpack.c.b16 %v2679, %v2675
        %v2920 = vpack.c.b16 %v2680, %v2676
        %v2921 = vpack.c.b16 %v2681, %v2677
        %v2922 = vpack.c.b16 %v2686, %v2682
        %v2923 = vpack.c.b16 %v2687, %v2683
        %v2924 = vpack.c.b16 %v2688, %v2684
        %v2925 = vpack.c.b16 %v2689, %v2685
        %v2926 = vpack.c.b16 %v2694, %v2690
        %v2927 = vpack.c.b16 %v2695, %v2691
        %v2928 = vpack.c.b16 %v2696, %v2692
        %v2929 = vpack.c.b16 %v2697, %v2693
        %v2930 = vpack.c.b16 %v2702, %v2698
        %v2931 = vpack.c.b16 %v2703, %v2699
        %v2932 = vpack.c.b16 %v2704, %v2700
        %v2933 = vpack.c.b16 %v2705, %v2701
        %v2934 = vpack.c.b16 %v2710, %v2706
        %v2935 = vpack.c.b16 %v2711, %v2707
        %v2936 = vpack.c.b16 %v2712, %v2708
        %v2937 = vpack.c.b16 %v2713, %v2709
        %v2938 = vpack.c.b16 %v2718, %v2714
        %v2939 = vpack.c.b16 %v2719, %v2715
        %v2940 = vpack.c.b16 %v2720, %v2716
        %v2941 = vpack.c.b16 %v2721, %v2717
        %v2942 = vpack.c.b16 %v2726, %v2722
        %v2943 = vpack.c.b16 %v2727, %v2723
        %v2944 = vpack.c.b16 %v2728, %v2724
        %v2945 = vpack.c.b16 %v2729, %v2725
        %v2946 = vpack.c.b16 %v2734, %v2730
        %v2947 = vpack.c.b16 %v2735, %v2731
        %v2948 = vpack.c.b16 %v2736, %v2732
        %v2949 = vpack.c.b16 %v2737, %v2733
        %v2950 = vpack.c.b16 %v2742, %v2738
        %v2951 = vpack.c.b16 %v2743, %v2739
        %v2952 = vpack.c.b16 %v2744, %v2740
        %v2953 = vpack.c.b16 %v2745, %v2741
        %v2954 = vpack.c.b16 %v2750, %v2746
        %v2955 = vpack.c.b16 %v2751, %v2747
        %v2956 = vpack.c.b16 %v2752, %v2748
        %v2957 = vpack.c.b16 %v2753, %v2749
        %v2958 = vpack.c.b16 %v2758, %v2754
        %v2959 = vpack.c.b16 %v2759, %v2755
        %v2960 = vpack.c.b16 %v2760, %v2756
        %v2961 = vpack.c.b16 %v2761, %v2757
        %v2962 = vpack.c.b16 %v2766, %v2762
        %v2963 = vpack.c.b16 %v2767, %v2763
        %v2964 = vpack.c.b16 %v2768, %v2764
        %v2965 = vpack.c.b16 %v2769, %v2765
        %v2966 = vpack.c.b16 %v2774, %v2770
        %v2967 = vpack.c.b16 %v2775, %v2771
        %v2968 = vpack.c.b16 %v2776, %v2772
        %v2969 = vpack.c.b16 %v2777, %v2773
        %v2970 = vpack.c.b16 %v2782, %v2778
        %v2971 = vpack.c.b16 %v2783, %v2779
        %v2972 = vpack.c.b16 %v2784, %v2780
        %v2973 = vpack.c.b16 %v2785, %v2781
        %v2974 = vpack.c.b16 %v2790, %v2786
        %v2975 = vpack.c.b16 %v2791, %v2787
        %v2976 = vpack.c.b16 %v2792, %v2788
        %v2977 = vpack.c.b16 %v2793, %v2789
        %v2978 = vpack.c.b16 %v2798, %v2794
        %v2979 = vpack.c.b16 %v2799, %v2795
        %v2980 = vpack.c.b16 %v2800, %v2796
        %v2981 = vpack.c.b16 %v2801, %v2797
        %v2982 = vpack.c.b16 %v2806, %v2802
        %v2983 = vpack.c.b16 %v2807, %v2803
        %v2984 = vpack.c.b16 %v2808, %v2804
        %v2985 = vpack.c.b16 %v2809, %v2805
        %v2986 = vpack.c.b16 %v2814, %v2810
        %v2987 = vpack.c.b16 %v2815, %v2811
        %v2988 = vpack.c.b16 %v2816, %v2812
        %v2989 = vpack.c.b16 %v2817, %v2813
        %v2990 = vpack.c.b16 %v2822, %v2818
        %v2991 = vpack.c.b16 %v2823, %v2819
        %v2992 = vpack.c.b16 %v2824, %v2820
        %v2993 = vpack.c.b16 %v2825, %v2821
        %v2994 = vpack.c.b16 %v2830, %v2826
        %v2995 = vpack.c.b16 %v2831, %v2827
        %v2996 = vpack.c.b16 %v2832, %v2828
        %v2997 = vpack.c.b16 %v2833, %v2829
        %v2998 = vpack.c.b16 %v2838, %v2834
        %v2999 = vpack.c.b16 %v2839, %v2835
        %v3000 = vpack.c.b16 %v2840, %v2836
        %v3001 = vpack.c.b16 %v2841, %v2837
        %v3002 = vpack.c.b16 %v2846, %v2842
        %v3003 = vpack.c.b16 %v2847, %v2843
        %v3004 = vpack.c.b16 %v2848, %v2844
        %v3005 = vpack.c.b16 %v2849, %v2845
        %v3006 = vpack.c.b16 %v2854, %v2850
        %v3007 = vpack.c.b16 %v2855, %v2851
        %v3008 = vpack.c.b16 %v2856, %v2852
        %v3009 = vpack.c.b16 %v2857, %v2853
        %v3010 = vpack.c.b16 %v2862, %v2858
        %v3011 = vpack.c.b16 %v2863, %v2859
        %v3012 = vpack.c.b16 %v2864, %v2860
        %v3013 = vpack.c.b16 %v2865, %v2861
        %v3014 = vpack.c.b16 %v2870, %v2866
        %v3015 = vpack.c.b16 %v2871, %v2867
        %v3016 = vpack.c.b16 %v2872, %v2868
        %v3017 = vpack.c.b16 %v2873, %v2869
        %v3018 = vpack.c.b16 %v2878, %v2874
        %v3019 = vpack.c.b16 %v2879, %v2875
        %v3020 = vpack.c.b16 %v2880, %v2876
        %v3021 = vpack.c.b16 %v2881, %v2877
        %v3022 = vpack.c.b16 %v2886, %v2882
        %v3023 = vpack.c.b16 %v2887, %v2883
        %v3024 = vpack.c.b16 %v2888, %v2884
        %v3025 = vpack.c.b16 %v2889, %v2885
        %v3026 = vpack.c.b16 %v2894, %v2890
        %v3027 = vpack.c.b16 %v2895, %v2891
        %v3028 = vpack.c.b16 %v2896, %v2892
        %v3029 = vpack.c.b16 %v2897, %v2893
        %v3030 = vpack.c.b16 %v2902, %v2898
        %v3031 = vpack.c.b16 %v2903, %v2899
        %v3032 = vpack.c.b16 %v2904, %v2900
        %v3033 = vpack.c.b16 %v2905, %v2901
        %3162 = vmatprep.subr.bf16.mxu0 %v2935
        %3163 = vmatpush1.bf16.msra.mxu0 %v2934
        %3164 = vmatprep.subr.bf16.mxu0 %v2931
        %3165 = vmatpush1.bf16.msra.mxu0 %v2930
        %3166 = vmatprep.subr.bf16.mxu0 %v2927
        %3167 = vmatpush1.bf16.msra.mxu0 %v2926
        %3168 = vmatprep.subr.bf16.mxu0 %v2923
        %3169 = vmatpush1.bf16.msra.mxu0 %v2922
        %3170 = vmatprep.subr.bf16.mxu0 %v2919
        %3171 = vmatpush1.bf16.msra.mxu0 %v2918
        %3172 = vmatprep.subr.bf16.mxu0 %v2915
        %3173 = vmatpush1.bf16.msra.mxu0 %v2914
        %3174 = vmatprep.subr.bf16.mxu0 %v2911
        %3175 = vmatpush1.bf16.msra.mxu0 %v2910
        %3176 = vmatprep.subr.bf16.mxu0 %v2907
        %3177 = vmatpush1.bf16.msra.mxu0 %v2906
        %3178 = vmatprep.subr.bf16.mxu0 %v2967
        %3179 = vmatpush2.bf16.msra.mxu0 %v2966
        %3180 = vmatprep.subr.bf16.mxu0 %v2963
        %3181 = vmatpush2.bf16.msra.mxu0 %v2962
        %3182 = vmatprep.subr.bf16.mxu0 %v2959
        %3183 = vmatpush2.bf16.msra.mxu0 %v2958
        %3184 = vmatprep.subr.bf16.mxu0 %v2955
        %3185 = vmatpush2.bf16.msra.mxu0 %v2954
        %3186 = vmatprep.subr.bf16.mxu0 %v2951
        %3187 = vmatpush2.bf16.msra.mxu0 %v2950
        %3188 = vmatprep.subr.bf16.mxu0 %v2947
        %3189 = vmatpush2.bf16.msra.mxu0 %v2946
        %3190 = vmatprep.subr.bf16.mxu0 %v2943
        %3191 = vmatpush2.bf16.msra.mxu0 %v2942
        %3192 = vmatprep.subr.bf16.mxu0 %v2939
        %3193 = vmatpush2.bf16.msra.mxu0 %v2938
        %3194 = vmatprep.mubr.bf16.mxu0 %v2493
        %3195 = vmatmul.mubr.bf16.gmra.mxu0 %v2481
        %v3196 = vpop.f32.mrf.mxu0
        %v3197 = vadd.f32 0.0, %v3196
        %v3198 = vpop.f32.mrf.mxu0
        %v3199 = vadd.f32 0.0, %v3198
        %v3200 = vpop.f32.mrf.mxu0
        %v3201 = vadd.f32 0.0, %v3200
        %v3202 = vpop.f32.mrf.mxu0
        %v3203 = vadd.f32 0.0, %v3202
        %3204 = vdwg.mxu0
        %3205 = vmatprep.subr.bf16.mxu0 %v2999
        %3206 = vmatpush1.bf16.msra.mxu0 %v2998
        %3207 = vmatprep.subr.bf16.mxu0 %v2995
        %3208 = vmatpush1.bf16.msra.mxu0 %v2994
        %3209 = vmatprep.subr.bf16.mxu0 %v2991
        %3210 = vmatpush1.bf16.msra.mxu0 %v2990
        %3211 = vmatprep.subr.bf16.mxu0 %v2987
        %3212 = vmatpush1.bf16.msra.mxu0 %v2986
        %3213 = vmatprep.subr.bf16.mxu0 %v2983
        %3214 = vmatpush1.bf16.msra.mxu0 %v2982
        %3215 = vmatprep.subr.bf16.mxu0 %v2979
        %3216 = vmatpush1.bf16.msra.mxu0 %v2978
        %3217 = vmatprep.subr.bf16.mxu0 %v2975
        %3218 = vmatpush1.bf16.msra.mxu0 %v2974
        %3219 = vmatprep.subr.bf16.mxu0 %v2971
        %3220 = vmatpush1.bf16.msra.mxu0 %v2970
        %3221 = vmatprep.subr.bf16.mxu0 %v3031
        %3222 = vmatpush2.bf16.msra.mxu0 %v3030
        %3223 = vmatprep.subr.bf16.mxu0 %v3027
        %3224 = vmatpush2.bf16.msra.mxu0 %v3026
        %3225 = vmatprep.subr.bf16.mxu0 %v3023
        %3226 = vmatpush2.bf16.msra.mxu0 %v3022
        %3227 = vmatprep.subr.bf16.mxu0 %v3019
        %3228 = vmatpush2.bf16.msra.mxu0 %v3018
        %3229 = vmatprep.subr.bf16.mxu0 %v3015
        %3230 = vmatpush2.bf16.msra.mxu0 %v3014
        %3231 = vmatprep.subr.bf16.mxu0 %v3011
        %3232 = vmatpush2.bf16.msra.mxu0 %v3010
        %3233 = vmatprep.subr.bf16.mxu0 %v3007
        %3234 = vmatpush2.bf16.msra.mxu0 %v3006
        %3235 = vmatprep.subr.bf16.mxu0 %v3003
        %3236 = vmatpush2.bf16.msra.mxu0 %v3002
        %3237 = vmatprep.mubr.bf16.mxu0 %v2517
        %3238 = vmatmul.mubr.bf16.gmra.mxu0 %v2505
        %v3239 = vpop.f32.mrf.mxu0
        %v3240 = vadd.f32 %v3197, %v3239
        %v3241 = vpop.f32.mrf.mxu0
        %v3242 = vadd.f32 %v3199, %v3241
        %v3243 = vpop.f32.mrf.mxu0
        %v3244 = vadd.f32 %v3201, %v3243
        %v3245 = vpop.f32.mrf.mxu0
        %v3246 = vadd.f32 %v3203, %v3245
        %3247 = vdwg.mxu0
        %3248 = vmatprep.subr.bf16.mxu0 %v2937
        %3249 = vmatpush1.bf16.msra.mxu0 %v2936
        %3250 = vmatprep.subr.bf16.mxu0 %v2933
        %3251 = vmatpush1.bf16.msra.mxu0 %v2932
        %3252 = vmatprep.subr.bf16.mxu0 %v2929
        %3253 = vmatpush1.bf16.msra.mxu0 %v2928
        %3254 = vmatprep.subr.bf16.mxu0 %v2925
        %3255 = vmatpush1.bf16.msra.mxu0 %v2924
        %3256 = vmatprep.subr.bf16.mxu0 %v2921
        %3257 = vmatpush1.bf16.msra.mxu0 %v2920
        %3258 = vmatprep.subr.bf16.mxu0 %v2917
        %3259 = vmatpush1.bf16.msra.mxu0 %v2916
        %3260 = vmatprep.subr.bf16.mxu0 %v2913
        %3261 = vmatpush1.bf16.msra.mxu0 %v2912
        %3262 = vmatprep.subr.bf16.mxu0 %v2909
        %3263 = vmatpush1.bf16.msra.mxu0 %v2908
        %3264 = vmatprep.subr.bf16.mxu0 %v2969
        %3265 = vmatpush2.bf16.msra.mxu0 %v2968
        %3266 = vmatprep.subr.bf16.mxu0 %v2965
        %3267 = vmatpush2.bf16.msra.mxu0 %v2964
        %3268 = vmatprep.subr.bf16.mxu0 %v2961
        %3269 = vmatpush2.bf16.msra.mxu0 %v2960
        %3270 = vmatprep.subr.bf16.mxu0 %v2957
        %3271 = vmatpush2.bf16.msra.mxu0 %v2956
        %3272 = vmatprep.subr.bf16.mxu0 %v2953
        %3273 = vmatpush2.bf16.msra.mxu0 %v2952
        %3274 = vmatprep.subr.bf16.mxu0 %v2949
        %3275 = vmatpush2.bf16.msra.mxu0 %v2948
        %3276 = vmatprep.subr.bf16.mxu0 %v2945
        %3277 = vmatpush2.bf16.msra.mxu0 %v2944
        %3278 = vmatprep.subr.bf16.mxu0 %v2941
        %3279 = vmatpush2.bf16.msra.mxu0 %v2940
        %3280 = vmatprep.mubr.bf16.mxu0 %v2493
        %3281 = vmatmul.mubr.bf16.gmra.mxu0 %v2481
        %v3282 = vpop.f32.mrf.mxu0
        %v3283 = vadd.f32 0.0, %v3282
        %v3284 = vpop.f32.mrf.mxu0
        %v3285 = vadd.f32 0.0, %v3284
        %v3286 = vpop.f32.mrf.mxu0
        %v3287 = vadd.f32 0.0, %v3286
        %v3288 = vpop.f32.mrf.mxu0
        %v3289 = vadd.f32 0.0, %v3288
        %3290 = vdwg.mxu0
        %3291 = vmatprep.subr.bf16.mxu0 %v3001
        %3292 = vmatpush1.bf16.msra.mxu0 %v3000
        %3293 = vmatprep.subr.bf16.mxu0 %v2997
        %3294 = vmatpush1.bf16.msra.mxu0 %v2996
        %3295 = vmatprep.subr.bf16.mxu0 %v2993
        %3296 = vmatpush1.bf16.msra.mxu0 %v2992
        %3297 = vmatprep.subr.bf16.mxu0 %v2989
        %3298 = vmatpush1.bf16.msra.mxu0 %v2988
        %3299 = vmatprep.subr.bf16.mxu0 %v2985
        %3300 = vmatpush1.bf16.msra.mxu0 %v2984
        %3301 = vmatprep.subr.bf16.mxu0 %v2981
        %3302 = vmatpush1.bf16.msra.mxu0 %v2980
        %3303 = vmatprep.subr.bf16.mxu0 %v2977
        %3304 = vmatpush1.bf16.msra.mxu0 %v2976
        %3305 = vmatprep.subr.bf16.mxu0 %v2973
        %3306 = vmatpush1.bf16.msra.mxu0 %v2972
        %3307 = vmatprep.subr.bf16.mxu0 %v3033
        %3308 = vmatpush2.bf16.msra.mxu0 %v3032
        %3309 = vmatprep.subr.bf16.mxu0 %v3029
        %3310 = vmatpush2.bf16.msra.mxu0 %v3028
        %3311 = vmatprep.subr.bf16.mxu0 %v3025
        %3312 = vmatpush2.bf16.msra.mxu0 %v3024
        %3313 = vmatprep.subr.bf16.mxu0 %v3021
        %3314 = vmatpush2.bf16.msra.mxu0 %v3020
        %3315 = vmatprep.subr.bf16.mxu0 %v3017
        %3316 = vmatpush2.bf16.msra.mxu0 %v3016
        %3317 = vmatprep.subr.bf16.mxu0 %v3013
        %3318 = vmatpush2.bf16.msra.mxu0 %v3012
        %3319 = vmatprep.subr.bf16.mxu0 %v3009
        %3320 = vmatpush2.bf16.msra.mxu0 %v3008
        %3321 = vmatprep.subr.bf16.mxu0 %v3005
        %3322 = vmatpush2.bf16.msra.mxu0 %v3004
        %3323 = vmatprep.mubr.bf16.mxu0 %v2517
        %3324 = vmatmul.mubr.bf16.gmra.mxu0 %v2505
        %v3325 = vpop.f32.mrf.mxu0
        %v3326 = vadd.f32 %v3283, %v3325
        %v3327 = vpop.f32.mrf.mxu0
        %v3328 = vadd.f32 %v3285, %v3327
        %v3329 = vpop.f32.mrf.mxu0
        %v3330 = vadd.f32 %v3287, %v3329
        %v3331 = vpop.f32.mrf.mxu0
        %v3332 = vadd.f32 %v3289, %v3331
        %3333 = vdwg.mxu0
        %v3334 = vadd.f32 %v2214, %v3240
        %v3335 = vadd.f32 %v2216, %v3242
        %v3336 = vadd.f32 %v2300, %v3326
        %v3337 = vadd.f32 %v2302, %v3328
        %v3338 = vadd.f32 %v2218, %v3244
        %v3339 = vadd.f32 %v2220, %v3246
        %v3340 = vadd.f32 %v2304, %v3330
        %v3341 = vadd.f32 %v2306, %v3332
        %v3342 = vld [vmem:[#allocation10] sm:$0xf]
        %v3344 = vlaneseq
        %v3345 = vshrl.u32 %v3344, 7
        %v3346 = vsub.s32 0, %v3345
        %v3347 = vrot.slane %v3342, %v3346
        %v3348 = vlaneseq
        %v3349 = vshrl.u32 %v3348, 7
        %v3350 = vsub.s32 1, %v3349
        %v3351 = vrot.slane %v3342, %v3350
        %v3352 = vlaneseq
        %v3353 = vshrl.u32 %v3352, 7
        %v3354 = vsub.s32 2, %v3353
        %v3355 = vrot.slane %v3342, %v3354
        %v3356 = vlaneseq
        %v3357 = vshrl.u32 %v3356, 7
        %v3358 = vsub.s32 3, %v3357
        %v3359 = vrot.slane %v3342, %v3358
        %v3364 = vadd.f32 %v3334, %v3347
        %v3365 = vadd.f32 %v3335, %v3351
        %v3366 = vadd.f32 %v3336, %v3355
        %v3367 = vadd.f32 %v3337, %v3359
        %v3368 = vadd.f32 %v3338, %v3347
        %v3369 = vadd.f32 %v3339, %v3351
        %v3370 = vadd.f32 %v3340, %v3355
        %v3371 = vadd.f32 %v3341, %v3359
        %v3372 = vmax.f32 %v3364, 0.0
        %v3373 = vmax.f32 %v3365, 0.0
        %v3374 = vmax.f32 %v3366, 0.0
        %v3375 = vmax.f32 %v3367, 0.0
        %v3376 = vmax.f32 %v3368, 0.0
        %v3377 = vmax.f32 %v3369, 0.0
        %v3378 = vmax.f32 %v3370, 0.0
        %v3379 = vmax.f32 %v3371, 0.0
        %v3380 = vpack.c.bf16 %v3376, %v3372
        %v3381 = vpack.c.bf16 %v3377, %v3373
        %v3382 = vpack.c.bf16 %v3378, %v3374
        %v3383 = vpack.c.bf16 %v3379, %v3375
        %v3388 = vunpack.c.l.b16 %v3380
        %v3389 = vunpack.c.l.b16 %v3381
        %v3390 = vunpack.c.l.b16 %v3382
        %v3391 = vunpack.c.l.b16 %v3383
        %v3392 = vunpack.c.h.b16 %v3380
        %v3393 = vunpack.c.h.b16 %v3381
        %v3394 = vunpack.c.h.b16 %v3382
        %v3395 = vunpack.c.h.b16 %v3383
        %v3396 = vpack.c.b16 %v3389, %v3388
        %v3397 = vpack.c.b16 %v3391, %v3390
        %v3398 = vpack.c.b16 %v3393, %v3392
        %v3399 = vpack.c.b16 %v3395, %v3394
        %3404 = vst [vmem:[#allocation3 + $0x10] sm:$0xff] %v3396
        %3405 = vst [vmem:[#allocation3 + $0x18] sm:$0xff] %v3397
        %3406 = vst [vmem:[#allocation3 + $0x20] sm:$0xff] %v3398
        %3407 = vst [vmem:[#allocation3 + $0x28] sm:$0xff] %v3399
        %v3408 = vld [vmem:[#allocation3] sm:$0x88]
        %v3409 = vld [vmem:[#allocation3 + $0x8] sm:$0x88]
        %v3410 = vld [vmem:[#allocation3 + $0x10] sm:$0xff]
        %v3411 = vld [vmem:[#allocation3 + $0x18] sm:$0xff]
        %v3412 = vld [vmem:[#allocation3 + $0x20] sm:$0xff]
        %v3413 = vld [vmem:[#allocation3 + $0x28] sm:$0xff]
        %v3414 = vld [vmem:[#allocation9] sm:$0xff]
        %v3415 = vld [vmem:[#allocation9 + $0x8] sm:$0xff]
        %v3416 = vld [vmem:[#allocation9 + $0x10] sm:$0xff]
        %v3417 = vld [vmem:[#allocation9 + $0x18] sm:$0xff]
        %v3418 = vld [vmem:[#allocation9 + $0x20] sm:$0xff]
        %v3419 = vld [vmem:[#allocation9 + $0x28] sm:$0xff]
        %v3420 = vld [vmem:[#allocation9 + $0x30] sm:$0xff]
        %v3421 = vld [vmem:[#allocation9 + $0x38] sm:$0xff]
        %v3422 = vld [vmem:[#allocation9 + $0x40] sm:$0xff]
        %v3423 = vld [vmem:[#allocation9 + $0x48] sm:$0xff]
        %v3424 = vld [vmem:[#allocation9 + $0x50] sm:$0xff]
        %v3425 = vld [vmem:[#allocation9 + $0x58] sm:$0xff]
        %v3426 = vld [vmem:[#allocation9 + $0x60] sm:$0xff]
        %v3427 = vld [vmem:[#allocation9 + $0x68] sm:$0xff]
        %v3428 = vld [vmem:[#allocation9 + $0x70] sm:$0xff]
        %v3429 = vld [vmem:[#allocation9 + $0x78] sm:$0xff]
        %v3430 = vld [vmem:[#allocation9 + $0x80] sm:$0xff]
        %v3431 = vld [vmem:[#allocation9 + $0x88] sm:$0xff]
        %v3432 = vld [vmem:[#allocation9 + $0x90] sm:$0xff]
        %v3433 = vld [vmem:[#allocation9 + $0x98] sm:$0xff]
        %v3434 = vld [vmem:[#allocation9 + $0xa0] sm:$0xff]
        %v3435 = vld [vmem:[#allocation9 + $0xa8] sm:$0xff]
        %v3436 = vld [vmem:[#allocation9 + $0xb0] sm:$0xff]
        %v3437 = vld [vmem:[#allocation9 + $0xb8] sm:$0xff]
        %v3438 = vld [vmem:[#allocation9 + $0xc0] sm:$0xff]
        %v3439 = vld [vmem:[#allocation9 + $0xc8] sm:$0xff]
        %v3440 = vld [vmem:[#allocation9 + $0xd0] sm:$0xff]
        %v3441 = vld [vmem:[#allocation9 + $0xd8] sm:$0xff]
        %v3442 = vld [vmem:[#allocation9 + $0xe0] sm:$0xff]
        %v3443 = vld [vmem:[#allocation9 + $0xe8] sm:$0xff]
        %v3444 = vld [vmem:[#allocation9 + $0xf0] sm:$0xff]
        %v3445 = vld [vmem:[#allocation9 + $0xf8] sm:$0xff]
        %v3446 = vld [vmem:[#allocation9 + $0x100] sm:$0xff]
        %v3447 = vld [vmem:[#allocation9 + $0x108] sm:$0xff]
        %v3448 = vld [vmem:[#allocation9 + $0x110] sm:$0xff]
        %v3449 = vld [vmem:[#allocation9 + $0x118] sm:$0xff]
        %v3450 = vld [vmem:[#allocation9 + $0x120] sm:$0xff]
        %v3451 = vld [vmem:[#allocation9 + $0x128] sm:$0xff]
        %v3452 = vld [vmem:[#allocation9 + $0x130] sm:$0xff]
        %v3453 = vld [vmem:[#allocation9 + $0x138] sm:$0xff]
        %v3454 = vld [vmem:[#allocation9 + $0x140] sm:$0xff]
        %v3455 = vld [vmem:[#allocation9 + $0x148] sm:$0xff]
        %v3456 = vld [vmem:[#allocation9 + $0x150] sm:$0xff]
        %v3457 = vld [vmem:[#allocation9 + $0x158] sm:$0xff]
        %v3458 = vld [vmem:[#allocation9 + $0x160] sm:$0xff]
        %v3459 = vld [vmem:[#allocation9 + $0x168] sm:$0xff]
        %v3460 = vld [vmem:[#allocation9 + $0x170] sm:$0xff]
        %v3461 = vld [vmem:[#allocation9 + $0x178] sm:$0xff]
        %v3462 = vld [vmem:[#allocation9 + $0x180] sm:$0xff]
        %v3463 = vld [vmem:[#allocation9 + $0x188] sm:$0xff]
        %v3464 = vld [vmem:[#allocation9 + $0x190] sm:$0xff]
        %v3465 = vld [vmem:[#allocation9 + $0x198] sm:$0xff]
        %v3466 = vld [vmem:[#allocation9 + $0x1a0] sm:$0xff]
        %v3467 = vld [vmem:[#allocation9 + $0x1a8] sm:$0xff]
        %v3468 = vld [vmem:[#allocation9 + $0x1b0] sm:$0xff]
        %v3469 = vld [vmem:[#allocation9 + $0x1b8] sm:$0xff]
        %v3470 = vld [vmem:[#allocation9 + $0x1c0] sm:$0xff]
        %v3471 = vld [vmem:[#allocation9 + $0x1c8] sm:$0xff]
        %v3472 = vld [vmem:[#allocation9 + $0x1d0] sm:$0xff]
        %v3473 = vld [vmem:[#allocation9 + $0x1d8] sm:$0xff]
        %v3474 = vld [vmem:[#allocation9 + $0x1e0] sm:$0xff]
        %v3475 = vld [vmem:[#allocation9 + $0x1e8] sm:$0xff]
        %v3476 = vld [vmem:[#allocation9 + $0x1f0] sm:$0xff]
        %v3477 = vld [vmem:[#allocation9 + $0x1f8] sm:$0xff]
        %v3478 = vld [vmem:[#allocation9 + $0x200] sm:$0xff]
        %v3479 = vld [vmem:[#allocation9 + $0x208] sm:$0xff]
        %v3480 = vld [vmem:[#allocation9 + $0x210] sm:$0xff]
        %v3481 = vld [vmem:[#allocation9 + $0x218] sm:$0xff]
        %v3482 = vld [vmem:[#allocation9 + $0x220] sm:$0xff]
        %v3483 = vld [vmem:[#allocation9 + $0x228] sm:$0xff]
        %v3484 = vld [vmem:[#allocation9 + $0x230] sm:$0xff]
        %v3485 = vld [vmem:[#allocation9 + $0x238] sm:$0xff]
        %v3486 = vld [vmem:[#allocation9 + $0x240] sm:$0xff]
        %v3487 = vld [vmem:[#allocation9 + $0x248] sm:$0xff]
        %v3488 = vld [vmem:[#allocation9 + $0x250] sm:$0xff]
        %v3489 = vld [vmem:[#allocation9 + $0x258] sm:$0xff]
        %v3490 = vld [vmem:[#allocation9 + $0x260] sm:$0xff]
        %v3491 = vld [vmem:[#allocation9 + $0x268] sm:$0xff]
        %v3492 = vld [vmem:[#allocation9 + $0x270] sm:$0xff]
        %v3493 = vld [vmem:[#allocation9 + $0x278] sm:$0xff]
        %v3494 = vld [vmem:[#allocation9 + $0x280] sm:$0xff]
        %v3495 = vld [vmem:[#allocation9 + $0x288] sm:$0xff]
        %v3496 = vld [vmem:[#allocation9 + $0x290] sm:$0xff]
        %v3497 = vld [vmem:[#allocation9 + $0x298] sm:$0xff]
        %v3498 = vld [vmem:[#allocation9 + $0x2a0] sm:$0xff]
        %v3499 = vld [vmem:[#allocation9 + $0x2a8] sm:$0xff]
        %v3500 = vld [vmem:[#allocation9 + $0x2b0] sm:$0xff]
        %v3501 = vld [vmem:[#allocation9 + $0x2b8] sm:$0xff]
        %v3502 = vld [vmem:[#allocation9 + $0x2c0] sm:$0xff]
        %v3503 = vld [vmem:[#allocation9 + $0x2c8] sm:$0xff]
        %v3504 = vld [vmem:[#allocation9 + $0x2d0] sm:$0xff]
        %v3505 = vld [vmem:[#allocation9 + $0x2d8] sm:$0xff]
        %v3506 = vld [vmem:[#allocation9 + $0x2e0] sm:$0xff]
        %v3507 = vld [vmem:[#allocation9 + $0x2e8] sm:$0xff]
        %v3508 = vld [vmem:[#allocation9 + $0x2f0] sm:$0xff]
        %v3509 = vld [vmem:[#allocation9 + $0x2f8] sm:$0xff]
        %v3510 = vld [vmem:[#allocation9 + $0x300] sm:$0xff]
        %v3511 = vld [vmem:[#allocation9 + $0x308] sm:$0xff]
        %v3512 = vld [vmem:[#allocation9 + $0x310] sm:$0xff]
        %v3513 = vld [vmem:[#allocation9 + $0x318] sm:$0xff]
        %v3514 = vld [vmem:[#allocation9 + $0x320] sm:$0xff]
        %v3515 = vld [vmem:[#allocation9 + $0x328] sm:$0xff]
        %v3516 = vld [vmem:[#allocation9 + $0x330] sm:$0xff]
        %v3517 = vld [vmem:[#allocation9 + $0x338] sm:$0xff]
        %v3518 = vld [vmem:[#allocation9 + $0x340] sm:$0xff]
        %v3519 = vld [vmem:[#allocation9 + $0x348] sm:$0xff]
        %v3520 = vld [vmem:[#allocation9 + $0x350] sm:$0xff]
        %v3521 = vld [vmem:[#allocation9 + $0x358] sm:$0xff]
        %v3522 = vld [vmem:[#allocation9 + $0x360] sm:$0xff]
        %v3523 = vld [vmem:[#allocation9 + $0x368] sm:$0xff]
        %v3524 = vld [vmem:[#allocation9 + $0x370] sm:$0xff]
        %v3525 = vld [vmem:[#allocation9 + $0x378] sm:$0xff]
        %v3526 = vld [vmem:[#allocation9 + $0x380] sm:$0xff]
        %v3527 = vld [vmem:[#allocation9 + $0x388] sm:$0xff]
        %v3528 = vld [vmem:[#allocation9 + $0x390] sm:$0xff]
        %v3529 = vld [vmem:[#allocation9 + $0x398] sm:$0xff]
        %v3530 = vld [vmem:[#allocation9 + $0x3a0] sm:$0xff]
        %v3531 = vld [vmem:[#allocation9 + $0x3a8] sm:$0xff]
        %v3532 = vld [vmem:[#allocation9 + $0x3b0] sm:$0xff]
        %v3533 = vld [vmem:[#allocation9 + $0x3b8] sm:$0xff]
        %v3534 = vld [vmem:[#allocation9 + $0x3c0] sm:$0xff]
        %v3535 = vld [vmem:[#allocation9 + $0x3c8] sm:$0xff]
        %v3536 = vld [vmem:[#allocation9 + $0x3d0] sm:$0xff]
        %v3537 = vld [vmem:[#allocation9 + $0x3d8] sm:$0xff]
        %v3538 = vld [vmem:[#allocation9 + $0x3e0] sm:$0xff]
        %v3539 = vld [vmem:[#allocation9 + $0x3e8] sm:$0xff]
        %v3540 = vld [vmem:[#allocation9 + $0x3f0] sm:$0xff]
        %v3541 = vld [vmem:[#allocation9 + $0x3f8] sm:$0xff]
        %s3542 = scalar_lea.vmem [#allocation9], 1024
        %v3543 = vld [vmem:[%s3542] sm:$0xff]
        %v3544 = vld [vmem:[%s3542 + $0x8] sm:$0xff]
        %v3545 = vld [vmem:[%s3542 + $0x10] sm:$0xff]
        %v3546 = vld [vmem:[%s3542 + $0x18] sm:$0xff]
        %v3547 = vld [vmem:[%s3542 + $0x20] sm:$0xff]
        %v3548 = vld [vmem:[%s3542 + $0x28] sm:$0xff]
        %v3549 = vld [vmem:[%s3542 + $0x30] sm:$0xff]
        %v3550 = vld [vmem:[%s3542 + $0x38] sm:$0xff]
        %v3551 = vld [vmem:[%s3542 + $0x40] sm:$0xff]
        %v3552 = vld [vmem:[%s3542 + $0x48] sm:$0xff]
        %v3553 = vld [vmem:[%s3542 + $0x50] sm:$0xff]
        %v3554 = vld [vmem:[%s3542 + $0x58] sm:$0xff]
        %v3555 = vld [vmem:[%s3542 + $0x60] sm:$0xff]
        %v3556 = vld [vmem:[%s3542 + $0x68] sm:$0xff]
        %v3557 = vld [vmem:[%s3542 + $0x70] sm:$0xff]
        %v3558 = vld [vmem:[%s3542 + $0x78] sm:$0xff]
        %v3559 = vld [vmem:[%s3542 + $0x80] sm:$0xff]
        %v3560 = vld [vmem:[%s3542 + $0x88] sm:$0xff]
        %v3561 = vld [vmem:[%s3542 + $0x90] sm:$0xff]
        %v3562 = vld [vmem:[%s3542 + $0x98] sm:$0xff]
        %v3563 = vld [vmem:[%s3542 + $0xa0] sm:$0xff]
        %v3564 = vld [vmem:[%s3542 + $0xa8] sm:$0xff]
        %v3565 = vld [vmem:[%s3542 + $0xb0] sm:$0xff]
        %v3566 = vld [vmem:[%s3542 + $0xb8] sm:$0xff]
        %v3567 = vld [vmem:[%s3542 + $0xc0] sm:$0xff]
        %v3568 = vld [vmem:[%s3542 + $0xc8] sm:$0xff]
        %v3569 = vld [vmem:[%s3542 + $0xd0] sm:$0xff]
        %v3570 = vld [vmem:[%s3542 + $0xd8] sm:$0xff]
        %v3571 = vld [vmem:[%s3542 + $0xe0] sm:$0xff]
        %v3572 = vld [vmem:[%s3542 + $0xe8] sm:$0xff]
        %v3573 = vld [vmem:[%s3542 + $0xf0] sm:$0xff]
        %v3574 = vld [vmem:[%s3542 + $0xf8] sm:$0xff]
        %v3575 = vld [vmem:[%s3542 + $0x100] sm:$0xff]
        %v3576 = vld [vmem:[%s3542 + $0x108] sm:$0xff]
        %v3577 = vld [vmem:[%s3542 + $0x110] sm:$0xff]
        %v3578 = vld [vmem:[%s3542 + $0x118] sm:$0xff]
        %v3579 = vld [vmem:[%s3542 + $0x120] sm:$0xff]
        %v3580 = vld [vmem:[%s3542 + $0x128] sm:$0xff]
        %v3581 = vld [vmem:[%s3542 + $0x130] sm:$0xff]
        %v3582 = vld [vmem:[%s3542 + $0x138] sm:$0xff]
        %v3583 = vld [vmem:[%s3542 + $0x140] sm:$0xff]
        %v3584 = vld [vmem:[%s3542 + $0x148] sm:$0xff]
        %v3585 = vld [vmem:[%s3542 + $0x150] sm:$0xff]
        %v3586 = vld [vmem:[%s3542 + $0x158] sm:$0xff]
        %v3587 = vld [vmem:[%s3542 + $0x160] sm:$0xff]
        %v3588 = vld [vmem:[%s3542 + $0x168] sm:$0xff]
        %v3589 = vld [vmem:[%s3542 + $0x170] sm:$0xff]
        %v3590 = vld [vmem:[%s3542 + $0x178] sm:$0xff]
        %v3591 = vld [vmem:[%s3542 + $0x180] sm:$0xff]
        %v3592 = vld [vmem:[%s3542 + $0x188] sm:$0xff]
        %v3593 = vld [vmem:[%s3542 + $0x190] sm:$0xff]
        %v3594 = vld [vmem:[%s3542 + $0x198] sm:$0xff]
        %v3595 = vld [vmem:[%s3542 + $0x1a0] sm:$0xff]
        %v3596 = vld [vmem:[%s3542 + $0x1a8] sm:$0xff]
        %v3597 = vld [vmem:[%s3542 + $0x1b0] sm:$0xff]
        %v3598 = vld [vmem:[%s3542 + $0x1b8] sm:$0xff]
        %v3599 = vld [vmem:[%s3542 + $0x1c0] sm:$0xff]
        %v3600 = vld [vmem:[%s3542 + $0x1c8] sm:$0xff]
        %v3601 = vld [vmem:[%s3542 + $0x1d0] sm:$0xff]
        %v3602 = vld [vmem:[%s3542 + $0x1d8] sm:$0xff]
        %v3603 = vld [vmem:[%s3542 + $0x1e0] sm:$0xff]
        %v3604 = vld [vmem:[%s3542 + $0x1e8] sm:$0xff]
        %v3605 = vld [vmem:[%s3542 + $0x1f0] sm:$0xff]
        %v3606 = vld [vmem:[%s3542 + $0x1f8] sm:$0xff]
        %v3607 = vld [vmem:[%s3542 + $0x200] sm:$0xff]
        %v3608 = vld [vmem:[%s3542 + $0x208] sm:$0xff]
        %v3609 = vld [vmem:[%s3542 + $0x210] sm:$0xff]
        %v3610 = vld [vmem:[%s3542 + $0x218] sm:$0xff]
        %v3611 = vld [vmem:[%s3542 + $0x220] sm:$0xff]
        %v3612 = vld [vmem:[%s3542 + $0x228] sm:$0xff]
        %v3613 = vld [vmem:[%s3542 + $0x230] sm:$0xff]
        %v3614 = vld [vmem:[%s3542 + $0x238] sm:$0xff]
        %v3615 = vld [vmem:[%s3542 + $0x240] sm:$0xff]
        %v3616 = vld [vmem:[%s3542 + $0x248] sm:$0xff]
        %v3617 = vld [vmem:[%s3542 + $0x250] sm:$0xff]
        %v3618 = vld [vmem:[%s3542 + $0x258] sm:$0xff]
        %v3619 = vld [vmem:[%s3542 + $0x260] sm:$0xff]
        %v3620 = vld [vmem:[%s3542 + $0x268] sm:$0xff]
        %v3621 = vld [vmem:[%s3542 + $0x270] sm:$0xff]
        %v3622 = vld [vmem:[%s3542 + $0x278] sm:$0xff]
        %v3623 = vld [vmem:[%s3542 + $0x280] sm:$0xff]
        %v3624 = vld [vmem:[%s3542 + $0x288] sm:$0xff]
        %v3625 = vld [vmem:[%s3542 + $0x290] sm:$0xff]
        %v3626 = vld [vmem:[%s3542 + $0x298] sm:$0xff]
        %v3627 = vld [vmem:[%s3542 + $0x2a0] sm:$0xff]
        %v3628 = vld [vmem:[%s3542 + $0x2a8] sm:$0xff]
        %v3629 = vld [vmem:[%s3542 + $0x2b0] sm:$0xff]
        %v3630 = vld [vmem:[%s3542 + $0x2b8] sm:$0xff]
        %v3631 = vld [vmem:[%s3542 + $0x2c0] sm:$0xff]
        %v3632 = vld [vmem:[%s3542 + $0x2c8] sm:$0xff]
        %v3633 = vld [vmem:[%s3542 + $0x2d0] sm:$0xff]
        %v3634 = vld [vmem:[%s3542 + $0x2d8] sm:$0xff]
        %v3635 = vld [vmem:[%s3542 + $0x2e0] sm:$0xff]
        %v3636 = vld [vmem:[%s3542 + $0x2e8] sm:$0xff]
        %v3637 = vld [vmem:[%s3542 + $0x2f0] sm:$0xff]
        %v3638 = vld [vmem:[%s3542 + $0x2f8] sm:$0xff]
        %v3639 = vld [vmem:[%s3542 + $0x300] sm:$0xff]
        %v3640 = vld [vmem:[%s3542 + $0x308] sm:$0xff]
        %v3641 = vld [vmem:[%s3542 + $0x310] sm:$0xff]
        %v3642 = vld [vmem:[%s3542 + $0x318] sm:$0xff]
        %v3643 = vld [vmem:[%s3542 + $0x320] sm:$0xff]
        %v3644 = vld [vmem:[%s3542 + $0x328] sm:$0xff]
        %v3645 = vld [vmem:[%s3542 + $0x330] sm:$0xff]
        %v3646 = vld [vmem:[%s3542 + $0x338] sm:$0xff]
        %v3647 = vld [vmem:[%s3542 + $0x340] sm:$0xff]
        %v3648 = vld [vmem:[%s3542 + $0x348] sm:$0xff]
        %v3649 = vld [vmem:[%s3542 + $0x350] sm:$0xff]
        %v3650 = vld [vmem:[%s3542 + $0x358] sm:$0xff]
        %v3651 = vld [vmem:[%s3542 + $0x360] sm:$0xff]
        %v3652 = vld [vmem:[%s3542 + $0x368] sm:$0xff]
        %v3653 = vld [vmem:[%s3542 + $0x370] sm:$0xff]
        %v3654 = vld [vmem:[%s3542 + $0x378] sm:$0xff]
        %v3655 = vld [vmem:[%s3542 + $0x380] sm:$0xff]
        %v3656 = vld [vmem:[%s3542 + $0x388] sm:$0xff]
        %v3657 = vld [vmem:[%s3542 + $0x390] sm:$0xff]
        %v3658 = vld [vmem:[%s3542 + $0x398] sm:$0xff]
        %v3659 = vld [vmem:[%s3542 + $0x3a0] sm:$0xff]
        %v3660 = vld [vmem:[%s3542 + $0x3a8] sm:$0xff]
        %v3661 = vld [vmem:[%s3542 + $0x3b0] sm:$0xff]
        %v3662 = vld [vmem:[%s3542 + $0x3b8] sm:$0xff]
        %v3663 = vld [vmem:[%s3542 + $0x3c0] sm:$0xff]
        %v3664 = vld [vmem:[%s3542 + $0x3c8] sm:$0xff]
        %v3665 = vld [vmem:[%s3542 + $0x3d0] sm:$0xff]
        %v3666 = vld [vmem:[%s3542 + $0x3d8] sm:$0xff]
        %v3667 = vld [vmem:[%s3542 + $0x3e0] sm:$0xff]
        %v3668 = vld [vmem:[%s3542 + $0x3e8] sm:$0xff]
        %v3669 = vld [vmem:[%s3542 + $0x3f0] sm:$0xff]
        %v3670 = vld [vmem:[%s3542 + $0x3f8] sm:$0xff]
        %v3675 = vunpack.c.l.b16 %v3410
        %v3676 = vunpack.c.h.b16 %v3410
        %v3677 = vunpack.c.l.b16 %v3411
        %v3678 = vunpack.c.h.b16 %v3411
        %v3679 = vunpack.c.l.b16 %v3412
        %v3680 = vunpack.c.h.b16 %v3412
        %v3681 = vunpack.c.l.b16 %v3413
        %v3682 = vunpack.c.h.b16 %v3413
        %v3683 = vpack.c.b16 %v3679, %v3675
        %v3684 = vpack.c.b16 %v3680, %v3676
        %v3685 = vpack.c.b16 %v3681, %v3677
        %v3686 = vpack.c.b16 %v3682, %v3678
        %v3819 = vunpack.c.l.b16 %v3543
        %v3820 = vunpack.c.h.b16 %v3543
        %v3821 = vunpack.c.l.b16 %v3544
        %v3822 = vunpack.c.h.b16 %v3544
        %v3823 = vunpack.c.l.b16 %v3545
        %v3824 = vunpack.c.h.b16 %v3545
        %v3825 = vunpack.c.l.b16 %v3546
        %v3826 = vunpack.c.h.b16 %v3546
        %v3827 = vunpack.c.l.b16 %v3547
        %v3828 = vunpack.c.h.b16 %v3547
        %v3829 = vunpack.c.l.b16 %v3548
        %v3830 = vunpack.c.h.b16 %v3548
        %v3831 = vunpack.c.l.b16 %v3549
        %v3832 = vunpack.c.h.b16 %v3549
        %v3833 = vunpack.c.l.b16 %v3550
        %v3834 = vunpack.c.h.b16 %v3550
        %v3835 = vunpack.c.l.b16 %v3551
        %v3836 = vunpack.c.h.b16 %v3551
        %v3837 = vunpack.c.l.b16 %v3552
        %v3838 = vunpack.c.h.b16 %v3552
        %v3839 = vunpack.c.l.b16 %v3553
        %v3840 = vunpack.c.h.b16 %v3553
        %v3841 = vunpack.c.l.b16 %v3554
        %v3842 = vunpack.c.h.b16 %v3554
        %v3843 = vunpack.c.l.b16 %v3555
        %v3844 = vunpack.c.h.b16 %v3555
        %v3845 = vunpack.c.l.b16 %v3556
        %v3846 = vunpack.c.h.b16 %v3556
        %v3847 = vunpack.c.l.b16 %v3557
        %v3848 = vunpack.c.h.b16 %v3557
        %v3849 = vunpack.c.l.b16 %v3558
        %v3850 = vunpack.c.h.b16 %v3558
        %v3851 = vunpack.c.l.b16 %v3559
        %v3852 = vunpack.c.h.b16 %v3559
        %v3853 = vunpack.c.l.b16 %v3560
        %v3854 = vunpack.c.h.b16 %v3560
        %v3855 = vunpack.c.l.b16 %v3561
        %v3856 = vunpack.c.h.b16 %v3561
        %v3857 = vunpack.c.l.b16 %v3562
        %v3858 = vunpack.c.h.b16 %v3562
        %v3859 = vunpack.c.l.b16 %v3563
        %v3860 = vunpack.c.h.b16 %v3563
        %v3861 = vunpack.c.l.b16 %v3564
        %v3862 = vunpack.c.h.b16 %v3564
        %v3863 = vunpack.c.l.b16 %v3565
        %v3864 = vunpack.c.h.b16 %v3565
        %v3865 = vunpack.c.l.b16 %v3566
        %v3866 = vunpack.c.h.b16 %v3566
        %v3867 = vunpack.c.l.b16 %v3567
        %v3868 = vunpack.c.h.b16 %v3567
        %v3869 = vunpack.c.l.b16 %v3568
        %v3870 = vunpack.c.h.b16 %v3568
        %v3871 = vunpack.c.l.b16 %v3569
        %v3872 = vunpack.c.h.b16 %v3569
        %v3873 = vunpack.c.l.b16 %v3570
        %v3874 = vunpack.c.h.b16 %v3570
        %v3875 = vunpack.c.l.b16 %v3571
        %v3876 = vunpack.c.h.b16 %v3571
        %v3877 = vunpack.c.l.b16 %v3572
        %v3878 = vunpack.c.h.b16 %v3572
        %v3879 = vunpack.c.l.b16 %v3573
        %v3880 = vunpack.c.h.b16 %v3573
        %v3881 = vunpack.c.l.b16 %v3574
        %v3882 = vunpack.c.h.b16 %v3574
        %v3883 = vunpack.c.l.b16 %v3575
        %v3884 = vunpack.c.h.b16 %v3575
        %v3885 = vunpack.c.l.b16 %v3576
        %v3886 = vunpack.c.h.b16 %v3576
        %v3887 = vunpack.c.l.b16 %v3577
        %v3888 = vunpack.c.h.b16 %v3577
        %v3889 = vunpack.c.l.b16 %v3578
        %v3890 = vunpack.c.h.b16 %v3578
        %v3891 = vunpack.c.l.b16 %v3579
        %v3892 = vunpack.c.h.b16 %v3579
        %v3893 = vunpack.c.l.b16 %v3580
        %v3894 = vunpack.c.h.b16 %v3580
        %v3895 = vunpack.c.l.b16 %v3581
        %v3896 = vunpack.c.h.b16 %v3581
        %v3897 = vunpack.c.l.b16 %v3582
        %v3898 = vunpack.c.h.b16 %v3582
        %v3899 = vunpack.c.l.b16 %v3583
        %v3900 = vunpack.c.h.b16 %v3583
        %v3901 = vunpack.c.l.b16 %v3584
        %v3902 = vunpack.c.h.b16 %v3584
        %v3903 = vunpack.c.l.b16 %v3585
        %v3904 = vunpack.c.h.b16 %v3585
        %v3905 = vunpack.c.l.b16 %v3586
        %v3906 = vunpack.c.h.b16 %v3586
        %v3907 = vunpack.c.l.b16 %v3587
        %v3908 = vunpack.c.h.b16 %v3587
        %v3909 = vunpack.c.l.b16 %v3588
        %v3910 = vunpack.c.h.b16 %v3588
        %v3911 = vunpack.c.l.b16 %v3589
        %v3912 = vunpack.c.h.b16 %v3589
        %v3913 = vunpack.c.l.b16 %v3590
        %v3914 = vunpack.c.h.b16 %v3590
        %v3915 = vunpack.c.l.b16 %v3591
        %v3916 = vunpack.c.h.b16 %v3591
        %v3917 = vunpack.c.l.b16 %v3592
        %v3918 = vunpack.c.h.b16 %v3592
        %v3919 = vunpack.c.l.b16 %v3593
        %v3920 = vunpack.c.h.b16 %v3593
        %v3921 = vunpack.c.l.b16 %v3594
        %v3922 = vunpack.c.h.b16 %v3594
        %v3923 = vunpack.c.l.b16 %v3595
        %v3924 = vunpack.c.h.b16 %v3595
        %v3925 = vunpack.c.l.b16 %v3596
        %v3926 = vunpack.c.h.b16 %v3596
        %v3927 = vunpack.c.l.b16 %v3597
        %v3928 = vunpack.c.h.b16 %v3597
        %v3929 = vunpack.c.l.b16 %v3598
        %v3930 = vunpack.c.h.b16 %v3598
        %v3931 = vunpack.c.l.b16 %v3599
        %v3932 = vunpack.c.h.b16 %v3599
        %v3933 = vunpack.c.l.b16 %v3600
        %v3934 = vunpack.c.h.b16 %v3600
        %v3935 = vunpack.c.l.b16 %v3601
        %v3936 = vunpack.c.h.b16 %v3601
        %v3937 = vunpack.c.l.b16 %v3602
        %v3938 = vunpack.c.h.b16 %v3602
        %v3939 = vunpack.c.l.b16 %v3603
        %v3940 = vunpack.c.h.b16 %v3603
        %v3941 = vunpack.c.l.b16 %v3604
        %v3942 = vunpack.c.h.b16 %v3604
        %v3943 = vunpack.c.l.b16 %v3605
        %v3944 = vunpack.c.h.b16 %v3605
        %v3945 = vunpack.c.l.b16 %v3606
        %v3946 = vunpack.c.h.b16 %v3606
        %v3947 = vunpack.c.l.b16 %v3607
        %v3948 = vunpack.c.h.b16 %v3607
        %v3949 = vunpack.c.l.b16 %v3608
        %v3950 = vunpack.c.h.b16 %v3608
        %v3951 = vunpack.c.l.b16 %v3609
        %v3952 = vunpack.c.h.b16 %v3609
        %v3953 = vunpack.c.l.b16 %v3610
        %v3954 = vunpack.c.h.b16 %v3610
        %v3955 = vunpack.c.l.b16 %v3611
        %v3956 = vunpack.c.h.b16 %v3611
        %v3957 = vunpack.c.l.b16 %v3612
        %v3958 = vunpack.c.h.b16 %v3612
        %v3959 = vunpack.c.l.b16 %v3613
        %v3960 = vunpack.c.h.b16 %v3613
        %v3961 = vunpack.c.l.b16 %v3614
        %v3962 = vunpack.c.h.b16 %v3614
        %v3963 = vunpack.c.l.b16 %v3615
        %v3964 = vunpack.c.h.b16 %v3615
        %v3965 = vunpack.c.l.b16 %v3616
        %v3966 = vunpack.c.h.b16 %v3616
        %v3967 = vunpack.c.l.b16 %v3617
        %v3968 = vunpack.c.h.b16 %v3617
        %v3969 = vunpack.c.l.b16 %v3618
        %v3970 = vunpack.c.h.b16 %v3618
        %v3971 = vunpack.c.l.b16 %v3619
        %v3972 = vunpack.c.h.b16 %v3619
        %v3973 = vunpack.c.l.b16 %v3620
        %v3974 = vunpack.c.h.b16 %v3620
        %v3975 = vunpack.c.l.b16 %v3621
        %v3976 = vunpack.c.h.b16 %v3621
        %v3977 = vunpack.c.l.b16 %v3622
        %v3978 = vunpack.c.h.b16 %v3622
        %v3979 = vunpack.c.l.b16 %v3623
        %v3980 = vunpack.c.h.b16 %v3623
        %v3981 = vunpack.c.l.b16 %v3624
        %v3982 = vunpack.c.h.b16 %v3624
        %v3983 = vunpack.c.l.b16 %v3625
        %v3984 = vunpack.c.h.b16 %v3625
        %v3985 = vunpack.c.l.b16 %v3626
        %v3986 = vunpack.c.h.b16 %v3626
        %v3987 = vunpack.c.l.b16 %v3627
        %v3988 = vunpack.c.h.b16 %v3627
        %v3989 = vunpack.c.l.b16 %v3628
        %v3990 = vunpack.c.h.b16 %v3628
        %v3991 = vunpack.c.l.b16 %v3629
        %v3992 = vunpack.c.h.b16 %v3629
        %v3993 = vunpack.c.l.b16 %v3630
        %v3994 = vunpack.c.h.b16 %v3630
        %v3995 = vunpack.c.l.b16 %v3631
        %v3996 = vunpack.c.h.b16 %v3631
        %v3997 = vunpack.c.l.b16 %v3632
        %v3998 = vunpack.c.h.b16 %v3632
        %v3999 = vunpack.c.l.b16 %v3633
        %v4000 = vunpack.c.h.b16 %v3633
        %v4001 = vunpack.c.l.b16 %v3634
        %v4002 = vunpack.c.h.b16 %v3634
        %v4003 = vunpack.c.l.b16 %v3635
        %v4004 = vunpack.c.h.b16 %v3635
        %v4005 = vunpack.c.l.b16 %v3636
        %v4006 = vunpack.c.h.b16 %v3636
        %v4007 = vunpack.c.l.b16 %v3637
        %v4008 = vunpack.c.h.b16 %v3637
        %v4009 = vunpack.c.l.b16 %v3638
        %v4010 = vunpack.c.h.b16 %v3638
        %v4011 = vunpack.c.l.b16 %v3639
        %v4012 = vunpack.c.h.b16 %v3639
        %v4013 = vunpack.c.l.b16 %v3640
        %v4014 = vunpack.c.h.b16 %v3640
        %v4015 = vunpack.c.l.b16 %v3641
        %v4016 = vunpack.c.h.b16 %v3641
        %v4017 = vunpack.c.l.b16 %v3642
        %v4018 = vunpack.c.h.b16 %v3642
        %v4019 = vunpack.c.l.b16 %v3643
        %v4020 = vunpack.c.h.b16 %v3643
        %v4021 = vunpack.c.l.b16 %v3644
        %v4022 = vunpack.c.h.b16 %v3644
        %v4023 = vunpack.c.l.b16 %v3645
        %v4024 = vunpack.c.h.b16 %v3645
        %v4025 = vunpack.c.l.b16 %v3646
        %v4026 = vunpack.c.h.b16 %v3646
        %v4027 = vunpack.c.l.b16 %v3647
        %v4028 = vunpack.c.h.b16 %v3647
        %v4029 = vunpack.c.l.b16 %v3648
        %v4030 = vunpack.c.h.b16 %v3648
        %v4031 = vunpack.c.l.b16 %v3649
        %v4032 = vunpack.c.h.b16 %v3649
        %v4033 = vunpack.c.l.b16 %v3650
        %v4034 = vunpack.c.h.b16 %v3650
        %v4035 = vunpack.c.l.b16 %v3651
        %v4036 = vunpack.c.h.b16 %v3651
        %v4037 = vunpack.c.l.b16 %v3652
        %v4038 = vunpack.c.h.b16 %v3652
        %v4039 = vunpack.c.l.b16 %v3653
        %v4040 = vunpack.c.h.b16 %v3653
        %v4041 = vunpack.c.l.b16 %v3654
        %v4042 = vunpack.c.h.b16 %v3654
        %v4043 = vunpack.c.l.b16 %v3655
        %v4044 = vunpack.c.h.b16 %v3655
        %v4045 = vunpack.c.l.b16 %v3656
        %v4046 = vunpack.c.h.b16 %v3656
        %v4047 = vunpack.c.l.b16 %v3657
        %v4048 = vunpack.c.h.b16 %v3657
        %v4049 = vunpack.c.l.b16 %v3658
        %v4050 = vunpack.c.h.b16 %v3658
        %v4051 = vunpack.c.l.b16 %v3659
        %v4052 = vunpack.c.h.b16 %v3659
        %v4053 = vunpack.c.l.b16 %v3660
        %v4054 = vunpack.c.h.b16 %v3660
        %v4055 = vunpack.c.l.b16 %v3661
        %v4056 = vunpack.c.h.b16 %v3661
        %v4057 = vunpack.c.l.b16 %v3662
        %v4058 = vunpack.c.h.b16 %v3662
        %v4059 = vunpack.c.l.b16 %v3663
        %v4060 = vunpack.c.h.b16 %v3663
        %v4061 = vunpack.c.l.b16 %v3664
        %v4062 = vunpack.c.h.b16 %v3664
        %v4063 = vunpack.c.l.b16 %v3665
        %v4064 = vunpack.c.h.b16 %v3665
        %v4065 = vunpack.c.l.b16 %v3666
        %v4066 = vunpack.c.h.b16 %v3666
        %v4067 = vunpack.c.l.b16 %v3667
        %v4068 = vunpack.c.h.b16 %v3667
        %v4069 = vunpack.c.l.b16 %v3668
        %v4070 = vunpack.c.h.b16 %v3668
        %v4071 = vunpack.c.l.b16 %v3669
        %v4072 = vunpack.c.h.b16 %v3669
        %v4073 = vunpack.c.l.b16 %v3670
        %v4074 = vunpack.c.h.b16 %v3670
        %v4075 = vpack.c.b16 %v3823, %v3819
        %v4076 = vpack.c.b16 %v3824, %v3820
        %v4077 = vpack.c.b16 %v3825, %v3821
        %v4078 = vpack.c.b16 %v3826, %v3822
        %v4079 = vpack.c.b16 %v3831, %v3827
        %v4080 = vpack.c.b16 %v3832, %v3828
        %v4081 = vpack.c.b16 %v3833, %v3829
        %v4082 = vpack.c.b16 %v3834, %v3830
        %v4083 = vpack.c.b16 %v3839, %v3835
        %v4084 = vpack.c.b16 %v3840, %v3836
        %v4085 = vpack.c.b16 %v3841, %v3837
        %v4086 = vpack.c.b16 %v3842, %v3838
        %v4087 = vpack.c.b16 %v3847, %v3843
        %v4088 = vpack.c.b16 %v3848, %v3844
        %v4089 = vpack.c.b16 %v3849, %v3845
        %v4090 = vpack.c.b16 %v3850, %v3846
        %v4091 = vpack.c.b16 %v3855, %v3851
        %v4092 = vpack.c.b16 %v3856, %v3852
        %v4093 = vpack.c.b16 %v3857, %v3853
        %v4094 = vpack.c.b16 %v3858, %v3854
        %v4095 = vpack.c.b16 %v3863, %v3859
        %v4096 = vpack.c.b16 %v3864, %v3860
        %v4097 = vpack.c.b16 %v3865, %v3861
        %v4098 = vpack.c.b16 %v3866, %v3862
        %v4099 = vpack.c.b16 %v3871, %v3867
        %v4100 = vpack.c.b16 %v3872, %v3868
        %v4101 = vpack.c.b16 %v3873, %v3869
        %v4102 = vpack.c.b16 %v3874, %v3870
        %v4103 = vpack.c.b16 %v3879, %v3875
        %v4104 = vpack.c.b16 %v3880, %v3876
        %v4105 = vpack.c.b16 %v3881, %v3877
        %v4106 = vpack.c.b16 %v3882, %v3878
        %v4107 = vpack.c.b16 %v3887, %v3883
        %v4108 = vpack.c.b16 %v3888, %v3884
        %v4109 = vpack.c.b16 %v3889, %v3885
        %v4110 = vpack.c.b16 %v3890, %v3886
        %v4111 = vpack.c.b16 %v3895, %v3891
        %v4112 = vpack.c.b16 %v3896, %v3892
        %v4113 = vpack.c.b16 %v3897, %v3893
        %v4114 = vpack.c.b16 %v3898, %v3894
        %v4115 = vpack.c.b16 %v3903, %v3899
        %v4116 = vpack.c.b16 %v3904, %v3900
        %v4117 = vpack.c.b16 %v3905, %v3901
        %v4118 = vpack.c.b16 %v3906, %v3902
        %v4119 = vpack.c.b16 %v3911, %v3907
        %v4120 = vpack.c.b16 %v3912, %v3908
        %v4121 = vpack.c.b16 %v3913, %v3909
        %v4122 = vpack.c.b16 %v3914, %v3910
        %v4123 = vpack.c.b16 %v3919, %v3915
        %v4124 = vpack.c.b16 %v3920, %v3916
        %v4125 = vpack.c.b16 %v3921, %v3917
        %v4126 = vpack.c.b16 %v3922, %v3918
        %v4127 = vpack.c.b16 %v3927, %v3923
        %v4128 = vpack.c.b16 %v3928, %v3924
        %v4129 = vpack.c.b16 %v3929, %v3925
        %v4130 = vpack.c.b16 %v3930, %v3926
        %v4131 = vpack.c.b16 %v3935, %v3931
        %v4132 = vpack.c.b16 %v3936, %v3932
        %v4133 = vpack.c.b16 %v3937, %v3933
        %v4134 = vpack.c.b16 %v3938, %v3934
        %v4135 = vpack.c.b16 %v3943, %v3939
        %v4136 = vpack.c.b16 %v3944, %v3940
        %v4137 = vpack.c.b16 %v3945, %v3941
        %v4138 = vpack.c.b16 %v3946, %v3942
        %v4139 = vpack.c.b16 %v3951, %v3947
        %v4140 = vpack.c.b16 %v3952, %v3948
        %v4141 = vpack.c.b16 %v3953, %v3949
        %v4142 = vpack.c.b16 %v3954, %v3950
        %v4143 = vpack.c.b16 %v3959, %v3955
        %v4144 = vpack.c.b16 %v3960, %v3956
        %v4145 = vpack.c.b16 %v3961, %v3957
        %v4146 = vpack.c.b16 %v3962, %v3958
        %v4147 = vpack.c.b16 %v3967, %v3963
        %v4148 = vpack.c.b16 %v3968, %v3964
        %v4149 = vpack.c.b16 %v3969, %v3965
        %v4150 = vpack.c.b16 %v3970, %v3966
        %v4151 = vpack.c.b16 %v3975, %v3971
        %v4152 = vpack.c.b16 %v3976, %v3972
        %v4153 = vpack.c.b16 %v3977, %v3973
        %v4154 = vpack.c.b16 %v3978, %v3974
        %v4155 = vpack.c.b16 %v3983, %v3979
        %v4156 = vpack.c.b16 %v3984, %v3980
        %v4157 = vpack.c.b16 %v3985, %v3981
        %v4158 = vpack.c.b16 %v3986, %v3982
        %v4159 = vpack.c.b16 %v3991, %v3987
        %v4160 = vpack.c.b16 %v3992, %v3988
        %v4161 = vpack.c.b16 %v3993, %v3989
        %v4162 = vpack.c.b16 %v3994, %v3990
        %v4163 = vpack.c.b16 %v3999, %v3995
        %v4164 = vpack.c.b16 %v4000, %v3996
        %v4165 = vpack.c.b16 %v4001, %v3997
        %v4166 = vpack.c.b16 %v4002, %v3998
        %v4167 = vpack.c.b16 %v4007, %v4003
        %v4168 = vpack.c.b16 %v4008, %v4004
        %v4169 = vpack.c.b16 %v4009, %v4005
        %v4170 = vpack.c.b16 %v4010, %v4006
        %v4171 = vpack.c.b16 %v4015, %v4011
        %v4172 = vpack.c.b16 %v4016, %v4012
        %v4173 = vpack.c.b16 %v4017, %v4013
        %v4174 = vpack.c.b16 %v4018, %v4014
        %v4175 = vpack.c.b16 %v4023, %v4019
        %v4176 = vpack.c.b16 %v4024, %v4020
        %v4177 = vpack.c.b16 %v4025, %v4021
        %v4178 = vpack.c.b16 %v4026, %v4022
        %v4179 = vpack.c.b16 %v4031, %v4027
        %v4180 = vpack.c.b16 %v4032, %v4028
        %v4181 = vpack.c.b16 %v4033, %v4029
        %v4182 = vpack.c.b16 %v4034, %v4030
        %v4183 = vpack.c.b16 %v4039, %v4035
        %v4184 = vpack.c.b16 %v4040, %v4036
        %v4185 = vpack.c.b16 %v4041, %v4037
        %v4186 = vpack.c.b16 %v4042, %v4038
        %v4187 = vpack.c.b16 %v4047, %v4043
        %v4188 = vpack.c.b16 %v4048, %v4044
        %v4189 = vpack.c.b16 %v4049, %v4045
        %v4190 = vpack.c.b16 %v4050, %v4046
        %v4191 = vpack.c.b16 %v4055, %v4051
        %v4192 = vpack.c.b16 %v4056, %v4052
        %v4193 = vpack.c.b16 %v4057, %v4053
        %v4194 = vpack.c.b16 %v4058, %v4054
        %v4195 = vpack.c.b16 %v4063, %v4059
        %v4196 = vpack.c.b16 %v4064, %v4060
        %v4197 = vpack.c.b16 %v4065, %v4061
        %v4198 = vpack.c.b16 %v4066, %v4062
        %v4199 = vpack.c.b16 %v4071, %v4067
        %v4200 = vpack.c.b16 %v4072, %v4068
        %v4201 = vpack.c.b16 %v4073, %v4069
        %v4202 = vpack.c.b16 %v4074, %v4070
        %4331 = vmatprep.subr.bf16.mxu0 %v4104
        %4332 = vmatpush1.bf16.msra.mxu0 %v4103
        %4333 = vmatprep.subr.bf16.mxu0 %v4100
        %4334 = vmatpush1.bf16.msra.mxu0 %v4099
        %4335 = vmatprep.subr.bf16.mxu0 %v4096
        %4336 = vmatpush1.bf16.msra.mxu0 %v4095
        %4337 = vmatprep.subr.bf16.mxu0 %v4092
        %4338 = vmatpush1.bf16.msra.mxu0 %v4091
        %4339 = vmatprep.subr.bf16.mxu0 %v4088
        %4340 = vmatpush1.bf16.msra.mxu0 %v4087
        %4341 = vmatprep.subr.bf16.mxu0 %v4084
        %4342 = vmatpush1.bf16.msra.mxu0 %v4083
        %4343 = vmatprep.subr.bf16.mxu0 %v4080
        %4344 = vmatpush1.bf16.msra.mxu0 %v4079
        %4345 = vmatprep.subr.bf16.mxu0 %v4076
        %4346 = vmatpush1.bf16.msra.mxu0 %v4075
        %4347 = vmatprep.subr.bf16.mxu0 %v4136
        %4348 = vmatpush2.bf16.msra.mxu0 %v4135
        %4349 = vmatprep.subr.bf16.mxu0 %v4132
        %4350 = vmatpush2.bf16.msra.mxu0 %v4131
        %4351 = vmatprep.subr.bf16.mxu0 %v4128
        %4352 = vmatpush2.bf16.msra.mxu0 %v4127
        %4353 = vmatprep.subr.bf16.mxu0 %v4124
        %4354 = vmatpush2.bf16.msra.mxu0 %v4123
        %4355 = vmatprep.subr.bf16.mxu0 %v4120
        %4356 = vmatpush2.bf16.msra.mxu0 %v4119
        %4357 = vmatprep.subr.bf16.mxu0 %v4116
        %4358 = vmatpush2.bf16.msra.mxu0 %v4115
        %4359 = vmatprep.subr.bf16.mxu0 %v4112
        %4360 = vmatpush2.bf16.msra.mxu0 %v4111
        %4361 = vmatprep.subr.bf16.mxu0 %v4108
        %4362 = vmatpush2.bf16.msra.mxu0 %v4107
        %4363 = vmatprep.mubr.bf16.mxu0 %v3684
        %4364 = vmatmul.mubr.bf16.gmra.mxu0 %v3683
        %v4365 = vpop.f32.mrf.mxu0
        %v4366 = vadd.f32 0.0, %v4365
        %v4367 = vpop.f32.mrf.mxu0
        %v4368 = vadd.f32 0.0, %v4367
        %v4369 = vpop.f32.mrf.mxu0
        %v4370 = vadd.f32 0.0, %v4369
        %v4371 = vpop.f32.mrf.mxu0
        %v4372 = vadd.f32 0.0, %v4371
        %4373 = vdwg.mxu0
        %4374 = vmatprep.subr.bf16.mxu0 %v4168
        %4375 = vmatpush1.bf16.msra.mxu0 %v4167
        %4376 = vmatprep.subr.bf16.mxu0 %v4164
        %4377 = vmatpush1.bf16.msra.mxu0 %v4163
        %4378 = vmatprep.subr.bf16.mxu0 %v4160
        %4379 = vmatpush1.bf16.msra.mxu0 %v4159
        %4380 = vmatprep.subr.bf16.mxu0 %v4156
        %4381 = vmatpush1.bf16.msra.mxu0 %v4155
        %4382 = vmatprep.subr.bf16.mxu0 %v4152
        %4383 = vmatpush1.bf16.msra.mxu0 %v4151
        %4384 = vmatprep.subr.bf16.mxu0 %v4148
        %4385 = vmatpush1.bf16.msra.mxu0 %v4147
        %4386 = vmatprep.subr.bf16.mxu0 %v4144
        %4387 = vmatpush1.bf16.msra.mxu0 %v4143
        %4388 = vmatprep.subr.bf16.mxu0 %v4140
        %4389 = vmatpush1.bf16.msra.mxu0 %v4139
        %4390 = vmatprep.subr.bf16.mxu0 %v4200
        %4391 = vmatpush2.bf16.msra.mxu0 %v4199
        %4392 = vmatprep.subr.bf16.mxu0 %v4196
        %4393 = vmatpush2.bf16.msra.mxu0 %v4195
        %4394 = vmatprep.subr.bf16.mxu0 %v4192
        %4395 = vmatpush2.bf16.msra.mxu0 %v4191
        %4396 = vmatprep.subr.bf16.mxu0 %v4188
        %4397 = vmatpush2.bf16.msra.mxu0 %v4187
        %4398 = vmatprep.subr.bf16.mxu0 %v4184
        %4399 = vmatpush2.bf16.msra.mxu0 %v4183
        %4400 = vmatprep.subr.bf16.mxu0 %v4180
        %4401 = vmatpush2.bf16.msra.mxu0 %v4179
        %4402 = vmatprep.subr.bf16.mxu0 %v4176
        %4403 = vmatpush2.bf16.msra.mxu0 %v4175
        %4404 = vmatprep.subr.bf16.mxu0 %v4172
        %4405 = vmatpush2.bf16.msra.mxu0 %v4171
        %4406 = vmatprep.mubr.bf16.mxu0 %v3686
        %4407 = vmatmul.mubr.bf16.gmra.mxu0 %v3685
        %v4408 = vpop.f32.mrf.mxu0
        %v4409 = vadd.f32 %v4366, %v4408
        %v4410 = vpop.f32.mrf.mxu0
        %v4411 = vadd.f32 %v4368, %v4410
        %v4412 = vpop.f32.mrf.mxu0
        %v4413 = vadd.f32 %v4370, %v4412
        %v4414 = vpop.f32.mrf.mxu0
        %v4415 = vadd.f32 %v4372, %v4414
        %4416 = vdwg.mxu0
        %4417 = vmatprep.subr.bf16.mxu0 %v4106
        %4418 = vmatpush1.bf16.msra.mxu0 %v4105
        %4419 = vmatprep.subr.bf16.mxu0 %v4102
        %4420 = vmatpush1.bf16.msra.mxu0 %v4101
        %4421 = vmatprep.subr.bf16.mxu0 %v4098
        %4422 = vmatpush1.bf16.msra.mxu0 %v4097
        %4423 = vmatprep.subr.bf16.mxu0 %v4094
        %4424 = vmatpush1.bf16.msra.mxu0 %v4093
        %4425 = vmatprep.subr.bf16.mxu0 %v4090
        %4426 = vmatpush1.bf16.msra.mxu0 %v4089
        %4427 = vmatprep.subr.bf16.mxu0 %v4086
        %4428 = vmatpush1.bf16.msra.mxu0 %v4085
        %4429 = vmatprep.subr.bf16.mxu0 %v4082
        %4430 = vmatpush1.bf16.msra.mxu0 %v4081
        %4431 = vmatprep.subr.bf16.mxu0 %v4078
        %4432 = vmatpush1.bf16.msra.mxu0 %v4077
        %4433 = vmatprep.subr.bf16.mxu0 %v4138
        %4434 = vmatpush2.bf16.msra.mxu0 %v4137
        %4435 = vmatprep.subr.bf16.mxu0 %v4134
        %4436 = vmatpush2.bf16.msra.mxu0 %v4133
        %4437 = vmatprep.subr.bf16.mxu0 %v4130
        %4438 = vmatpush2.bf16.msra.mxu0 %v4129
        %4439 = vmatprep.subr.bf16.mxu0 %v4126
        %4440 = vmatpush2.bf16.msra.mxu0 %v4125
        %4441 = vmatprep.subr.bf16.mxu0 %v4122
        %4442 = vmatpush2.bf16.msra.mxu0 %v4121
        %4443 = vmatprep.subr.bf16.mxu0 %v4118
        %4444 = vmatpush2.bf16.msra.mxu0 %v4117
        %4445 = vmatprep.subr.bf16.mxu0 %v4114
        %4446 = vmatpush2.bf16.msra.mxu0 %v4113
        %4447 = vmatprep.subr.bf16.mxu0 %v4110
        %4448 = vmatpush2.bf16.msra.mxu0 %v4109
        %4449 = vmatprep.mubr.bf16.mxu0 %v3684
        %4450 = vmatmul.mubr.bf16.gmra.mxu0 %v3683
        %v4451 = vpop.f32.mrf.mxu0
        %v4452 = vadd.f32 0.0, %v4451
        %v4453 = vpop.f32.mrf.mxu0
        %v4454 = vadd.f32 0.0, %v4453
        %v4455 = vpop.f32.mrf.mxu0
        %v4456 = vadd.f32 0.0, %v4455
        %v4457 = vpop.f32.mrf.mxu0
        %v4458 = vadd.f32 0.0, %v4457
        %4459 = vdwg.mxu0
        %4460 = vmatprep.subr.bf16.mxu0 %v4170
        %4461 = vmatpush1.bf16.msra.mxu0 %v4169
        %4462 = vmatprep.subr.bf16.mxu0 %v4166
        %4463 = vmatpush1.bf16.msra.mxu0 %v4165
        %4464 = vmatprep.subr.bf16.mxu0 %v4162
        %4465 = vmatpush1.bf16.msra.mxu0 %v4161
        %4466 = vmatprep.subr.bf16.mxu0 %v4158
        %4467 = vmatpush1.bf16.msra.mxu0 %v4157
        %4468 = vmatprep.subr.bf16.mxu0 %v4154
        %4469 = vmatpush1.bf16.msra.mxu0 %v4153
        %4470 = vmatprep.subr.bf16.mxu0 %v4150
        %4471 = vmatpush1.bf16.msra.mxu0 %v4149
        %4472 = vmatprep.subr.bf16.mxu0 %v4146
        %4473 = vmatpush1.bf16.msra.mxu0 %v4145
        %4474 = vmatprep.subr.bf16.mxu0 %v4142
        %4475 = vmatpush1.bf16.msra.mxu0 %v4141
        %4476 = vmatprep.subr.bf16.mxu0 %v4202
        %4477 = vmatpush2.bf16.msra.mxu0 %v4201
        %4478 = vmatprep.subr.bf16.mxu0 %v4198
        %4479 = vmatpush2.bf16.msra.mxu0 %v4197
        %4480 = vmatprep.subr.bf16.mxu0 %v4194
        %4481 = vmatpush2.bf16.msra.mxu0 %v4193
        %4482 = vmatprep.subr.bf16.mxu0 %v4190
        %4483 = vmatpush2.bf16.msra.mxu0 %v4189
        %4484 = vmatprep.subr.bf16.mxu0 %v4186
        %4485 = vmatpush2.bf16.msra.mxu0 %v4185
        %4486 = vmatprep.subr.bf16.mxu0 %v4182
        %4487 = vmatpush2.bf16.msra.mxu0 %v4181
        %4488 = vmatprep.subr.bf16.mxu0 %v4178
        %4489 = vmatpush2.bf16.msra.mxu0 %v4177
        %4490 = vmatprep.subr.bf16.mxu0 %v4174
        %4491 = vmatpush2.bf16.msra.mxu0 %v4173
        %4492 = vmatprep.mubr.bf16.mxu0 %v3686
        %4493 = vmatmul.mubr.bf16.gmra.mxu0 %v3685
        %v4494 = vpop.f32.mrf.mxu0
        %v4495 = vadd.f32 %v4452, %v4494
        %v4496 = vpop.f32.mrf.mxu0
        %v4497 = vadd.f32 %v4454, %v4496
        %v4498 = vpop.f32.mrf.mxu0
        %v4499 = vadd.f32 %v4456, %v4498
        %v4500 = vpop.f32.mrf.mxu0
        %v4501 = vadd.f32 %v4458, %v4500
        %4502 = vdwg.mxu0
        %v4505 = vunpack.c.l.b16 %v3408
        %v4506 = vunpack.c.h.b16 %v3408
        %v4507 = vunpack.c.l.b16 %v3409
        %v4508 = vunpack.c.h.b16 %v3409
        %v4509 = vpack.c.b16 %v3675, %v4505
        %v4510 = vpack.c.b16 %v3676, %v4506
        %v4511 = vpack.c.b16 %v3677, %v4507
        %v4512 = vpack.c.b16 %v3678, %v4508
        %v4513 = vpack.c.b16 %v3679, %v3679
        %v4514 = vpack.c.b16 %v3680, %v3680
        %v4515 = vpack.c.b16 %v3681, %v3681
        %v4516 = vpack.c.b16 %v3682, %v3682
        %v4518 = vshrl.u32 %v4509, 16
        %v4520 = vrot.slane %v4518, 3
        %v4521 = vshll.u32 %v4509, 16
        %v4523 = vrot.slane %v4521, 4
        %v4524 = vor.u32 %v4520, %v4523
        %v4526 = vshrl.u32 %v4513, 16
        %v4528 = vrot.slane %v4526, 3
        %v4529 = vshll.u32 %v4513, 16
        %v4531 = vrot.slane %v4529, 4
        %v4532 = vor.u32 %v4528, %v4531
        %v4533 = vsel %vm1423, %v4524, %v4532
        %v4535 = vshrl.u32 %v4510, 16
        %v4537 = vrot.slane %v4535, 3
        %v4538 = vshll.u32 %v4510, 16
        %v4540 = vrot.slane %v4538, 4
        %v4541 = vor.u32 %v4537, %v4540
        %v4543 = vshrl.u32 %v4514, 16
        %v4545 = vrot.slane %v4543, 3
        %v4546 = vshll.u32 %v4514, 16
        %v4548 = vrot.slane %v4546, 4
        %v4549 = vor.u32 %v4545, %v4548
        %v4550 = vsel %vm1423, %v4541, %v4549
        %v4552 = vshrl.u32 %v4511, 16
        %v4554 = vrot.slane %v4552, 3
        %v4555 = vshll.u32 %v4511, 16
        %v4557 = vrot.slane %v4555, 4
        %v4558 = vor.u32 %v4554, %v4557
        %v4560 = vshrl.u32 %v4515, 16
        %v4562 = vrot.slane %v4560, 3
        %v4563 = vshll.u32 %v4515, 16
        %v4565 = vrot.slane %v4563, 4
        %v4566 = vor.u32 %v4562, %v4565
        %v4567 = vsel %vm1423, %v4558, %v4566
        %v4569 = vshrl.u32 %v4512, 16
        %v4571 = vrot.slane %v4569, 3
        %v4572 = vshll.u32 %v4512, 16
        %v4574 = vrot.slane %v4572, 4
        %v4575 = vor.u32 %v4571, %v4574
        %v4577 = vshrl.u32 %v4516, 16
        %v4579 = vrot.slane %v4577, 3
        %v4580 = vshll.u32 %v4516, 16
        %v4582 = vrot.slane %v4580, 4
        %v4583 = vor.u32 %v4579, %v4582
        %v4584 = vsel %vm1423, %v4575, %v4583
        %v4717 = vunpack.c.l.b16 %v3414
        %v4718 = vunpack.c.h.b16 %v3414
        %v4719 = vunpack.c.l.b16 %v3415
        %v4720 = vunpack.c.h.b16 %v3415
        %v4721 = vunpack.c.l.b16 %v3416
        %v4722 = vunpack.c.h.b16 %v3416
        %v4723 = vunpack.c.l.b16 %v3417
        %v4724 = vunpack.c.h.b16 %v3417
        %v4725 = vunpack.c.l.b16 %v3418
        %v4726 = vunpack.c.h.b16 %v3418
        %v4727 = vunpack.c.l.b16 %v3419
        %v4728 = vunpack.c.h.b16 %v3419
        %v4729 = vunpack.c.l.b16 %v3420
        %v4730 = vunpack.c.h.b16 %v3420
        %v4731 = vunpack.c.l.b16 %v3421
        %v4732 = vunpack.c.h.b16 %v3421
        %v4733 = vunpack.c.l.b16 %v3422
        %v4734 = vunpack.c.h.b16 %v3422
        %v4735 = vunpack.c.l.b16 %v3423
        %v4736 = vunpack.c.h.b16 %v3423
        %v4737 = vunpack.c.l.b16 %v3424
        %v4738 = vunpack.c.h.b16 %v3424
        %v4739 = vunpack.c.l.b16 %v3425
        %v4740 = vunpack.c.h.b16 %v3425
        %v4741 = vunpack.c.l.b16 %v3426
        %v4742 = vunpack.c.h.b16 %v3426
        %v4743 = vunpack.c.l.b16 %v3427
        %v4744 = vunpack.c.h.b16 %v3427
        %v4745 = vunpack.c.l.b16 %v3428
        %v4746 = vunpack.c.h.b16 %v3428
        %v4747 = vunpack.c.l.b16 %v3429
        %v4748 = vunpack.c.h.b16 %v3429
        %v4749 = vunpack.c.l.b16 %v3430
        %v4750 = vunpack.c.h.b16 %v3430
        %v4751 = vunpack.c.l.b16 %v3431
        %v4752 = vunpack.c.h.b16 %v3431
        %v4753 = vunpack.c.l.b16 %v3432
        %v4754 = vunpack.c.h.b16 %v3432
        %v4755 = vunpack.c.l.b16 %v3433
        %v4756 = vunpack.c.h.b16 %v3433
        %v4757 = vunpack.c.l.b16 %v3434
        %v4758 = vunpack.c.h.b16 %v3434
        %v4759 = vunpack.c.l.b16 %v3435
        %v4760 = vunpack.c.h.b16 %v3435
        %v4761 = vunpack.c.l.b16 %v3436
        %v4762 = vunpack.c.h.b16 %v3436
        %v4763 = vunpack.c.l.b16 %v3437
        %v4764 = vunpack.c.h.b16 %v3437
        %v4765 = vunpack.c.l.b16 %v3438
        %v4766 = vunpack.c.h.b16 %v3438
        %v4767 = vunpack.c.l.b16 %v3439
        %v4768 = vunpack.c.h.b16 %v3439
        %v4769 = vunpack.c.l.b16 %v3440
        %v4770 = vunpack.c.h.b16 %v3440
        %v4771 = vunpack.c.l.b16 %v3441
        %v4772 = vunpack.c.h.b16 %v3441
        %v4773 = vunpack.c.l.b16 %v3442
        %v4774 = vunpack.c.h.b16 %v3442
        %v4775 = vunpack.c.l.b16 %v3443
        %v4776 = vunpack.c.h.b16 %v3443
        %v4777 = vunpack.c.l.b16 %v3444
        %v4778 = vunpack.c.h.b16 %v3444
        %v4779 = vunpack.c.l.b16 %v3445
        %v4780 = vunpack.c.h.b16 %v3445
        %v4781 = vunpack.c.l.b16 %v3446
        %v4782 = vunpack.c.h.b16 %v3446
        %v4783 = vunpack.c.l.b16 %v3447
        %v4784 = vunpack.c.h.b16 %v3447
        %v4785 = vunpack.c.l.b16 %v3448
        %v4786 = vunpack.c.h.b16 %v3448
        %v4787 = vunpack.c.l.b16 %v3449
        %v4788 = vunpack.c.h.b16 %v3449
        %v4789 = vunpack.c.l.b16 %v3450
        %v4790 = vunpack.c.h.b16 %v3450
        %v4791 = vunpack.c.l.b16 %v3451
        %v4792 = vunpack.c.h.b16 %v3451
        %v4793 = vunpack.c.l.b16 %v3452
        %v4794 = vunpack.c.h.b16 %v3452
        %v4795 = vunpack.c.l.b16 %v3453
        %v4796 = vunpack.c.h.b16 %v3453
        %v4797 = vunpack.c.l.b16 %v3454
        %v4798 = vunpack.c.h.b16 %v3454
        %v4799 = vunpack.c.l.b16 %v3455
        %v4800 = vunpack.c.h.b16 %v3455
        %v4801 = vunpack.c.l.b16 %v3456
        %v4802 = vunpack.c.h.b16 %v3456
        %v4803 = vunpack.c.l.b16 %v3457
        %v4804 = vunpack.c.h.b16 %v3457
        %v4805 = vunpack.c.l.b16 %v3458
        %v4806 = vunpack.c.h.b16 %v3458
        %v4807 = vunpack.c.l.b16 %v3459
        %v4808 = vunpack.c.h.b16 %v3459
        %v4809 = vunpack.c.l.b16 %v3460
        %v4810 = vunpack.c.h.b16 %v3460
        %v4811 = vunpack.c.l.b16 %v3461
        %v4812 = vunpack.c.h.b16 %v3461
        %v4813 = vunpack.c.l.b16 %v3462
        %v4814 = vunpack.c.h.b16 %v3462
        %v4815 = vunpack.c.l.b16 %v3463
        %v4816 = vunpack.c.h.b16 %v3463
        %v4817 = vunpack.c.l.b16 %v3464
        %v4818 = vunpack.c.h.b16 %v3464
        %v4819 = vunpack.c.l.b16 %v3465
        %v4820 = vunpack.c.h.b16 %v3465
        %v4821 = vunpack.c.l.b16 %v3466
        %v4822 = vunpack.c.h.b16 %v3466
        %v4823 = vunpack.c.l.b16 %v3467
        %v4824 = vunpack.c.h.b16 %v3467
        %v4825 = vunpack.c.l.b16 %v3468
        %v4826 = vunpack.c.h.b16 %v3468
        %v4827 = vunpack.c.l.b16 %v3469
        %v4828 = vunpack.c.h.b16 %v3469
        %v4829 = vunpack.c.l.b16 %v3470
        %v4830 = vunpack.c.h.b16 %v3470
        %v4831 = vunpack.c.l.b16 %v3471
        %v4832 = vunpack.c.h.b16 %v3471
        %v4833 = vunpack.c.l.b16 %v3472
        %v4834 = vunpack.c.h.b16 %v3472
        %v4835 = vunpack.c.l.b16 %v3473
        %v4836 = vunpack.c.h.b16 %v3473
        %v4837 = vunpack.c.l.b16 %v3474
        %v4838 = vunpack.c.h.b16 %v3474
        %v4839 = vunpack.c.l.b16 %v3475
        %v4840 = vunpack.c.h.b16 %v3475
        %v4841 = vunpack.c.l.b16 %v3476
        %v4842 = vunpack.c.h.b16 %v3476
        %v4843 = vunpack.c.l.b16 %v3477
        %v4844 = vunpack.c.h.b16 %v3477
        %v4845 = vunpack.c.l.b16 %v3478
        %v4846 = vunpack.c.h.b16 %v3478
        %v4847 = vunpack.c.l.b16 %v3479
        %v4848 = vunpack.c.h.b16 %v3479
        %v4849 = vunpack.c.l.b16 %v3480
        %v4850 = vunpack.c.h.b16 %v3480
        %v4851 = vunpack.c.l.b16 %v3481
        %v4852 = vunpack.c.h.b16 %v3481
        %v4853 = vunpack.c.l.b16 %v3482
        %v4854 = vunpack.c.h.b16 %v3482
        %v4855 = vunpack.c.l.b16 %v3483
        %v4856 = vunpack.c.h.b16 %v3483
        %v4857 = vunpack.c.l.b16 %v3484
        %v4858 = vunpack.c.h.b16 %v3484
        %v4859 = vunpack.c.l.b16 %v3485
        %v4860 = vunpack.c.h.b16 %v3485
        %v4861 = vunpack.c.l.b16 %v3486
        %v4862 = vunpack.c.h.b16 %v3486
        %v4863 = vunpack.c.l.b16 %v3487
        %v4864 = vunpack.c.h.b16 %v3487
        %v4865 = vunpack.c.l.b16 %v3488
        %v4866 = vunpack.c.h.b16 %v3488
        %v4867 = vunpack.c.l.b16 %v3489
        %v4868 = vunpack.c.h.b16 %v3489
        %v4869 = vunpack.c.l.b16 %v3490
        %v4870 = vunpack.c.h.b16 %v3490
        %v4871 = vunpack.c.l.b16 %v3491
        %v4872 = vunpack.c.h.b16 %v3491
        %v4873 = vunpack.c.l.b16 %v3492
        %v4874 = vunpack.c.h.b16 %v3492
        %v4875 = vunpack.c.l.b16 %v3493
        %v4876 = vunpack.c.h.b16 %v3493
        %v4877 = vunpack.c.l.b16 %v3494
        %v4878 = vunpack.c.h.b16 %v3494
        %v4879 = vunpack.c.l.b16 %v3495
        %v4880 = vunpack.c.h.b16 %v3495
        %v4881 = vunpack.c.l.b16 %v3496
        %v4882 = vunpack.c.h.b16 %v3496
        %v4883 = vunpack.c.l.b16 %v3497
        %v4884 = vunpack.c.h.b16 %v3497
        %v4885 = vunpack.c.l.b16 %v3498
        %v4886 = vunpack.c.h.b16 %v3498
        %v4887 = vunpack.c.l.b16 %v3499
        %v4888 = vunpack.c.h.b16 %v3499
        %v4889 = vunpack.c.l.b16 %v3500
        %v4890 = vunpack.c.h.b16 %v3500
        %v4891 = vunpack.c.l.b16 %v3501
        %v4892 = vunpack.c.h.b16 %v3501
        %v4893 = vunpack.c.l.b16 %v3502
        %v4894 = vunpack.c.h.b16 %v3502
        %v4895 = vunpack.c.l.b16 %v3503
        %v4896 = vunpack.c.h.b16 %v3503
        %v4897 = vunpack.c.l.b16 %v3504
        %v4898 = vunpack.c.h.b16 %v3504
        %v4899 = vunpack.c.l.b16 %v3505
        %v4900 = vunpack.c.h.b16 %v3505
        %v4901 = vunpack.c.l.b16 %v3506
        %v4902 = vunpack.c.h.b16 %v3506
        %v4903 = vunpack.c.l.b16 %v3507
        %v4904 = vunpack.c.h.b16 %v3507
        %v4905 = vunpack.c.l.b16 %v3508
        %v4906 = vunpack.c.h.b16 %v3508
        %v4907 = vunpack.c.l.b16 %v3509
        %v4908 = vunpack.c.h.b16 %v3509
        %v4909 = vunpack.c.l.b16 %v3510
        %v4910 = vunpack.c.h.b16 %v3510
        %v4911 = vunpack.c.l.b16 %v3511
        %v4912 = vunpack.c.h.b16 %v3511
        %v4913 = vunpack.c.l.b16 %v3512
        %v4914 = vunpack.c.h.b16 %v3512
        %v4915 = vunpack.c.l.b16 %v3513
        %v4916 = vunpack.c.h.b16 %v3513
        %v4917 = vunpack.c.l.b16 %v3514
        %v4918 = vunpack.c.h.b16 %v3514
        %v4919 = vunpack.c.l.b16 %v3515
        %v4920 = vunpack.c.h.b16 %v3515
        %v4921 = vunpack.c.l.b16 %v3516
        %v4922 = vunpack.c.h.b16 %v3516
        %v4923 = vunpack.c.l.b16 %v3517
        %v4924 = vunpack.c.h.b16 %v3517
        %v4925 = vunpack.c.l.b16 %v3518
        %v4926 = vunpack.c.h.b16 %v3518
        %v4927 = vunpack.c.l.b16 %v3519
        %v4928 = vunpack.c.h.b16 %v3519
        %v4929 = vunpack.c.l.b16 %v3520
        %v4930 = vunpack.c.h.b16 %v3520
        %v4931 = vunpack.c.l.b16 %v3521
        %v4932 = vunpack.c.h.b16 %v3521
        %v4933 = vunpack.c.l.b16 %v3522
        %v4934 = vunpack.c.h.b16 %v3522
        %v4935 = vunpack.c.l.b16 %v3523
        %v4936 = vunpack.c.h.b16 %v3523
        %v4937 = vunpack.c.l.b16 %v3524
        %v4938 = vunpack.c.h.b16 %v3524
        %v4939 = vunpack.c.l.b16 %v3525
        %v4940 = vunpack.c.h.b16 %v3525
        %v4941 = vunpack.c.l.b16 %v3526
        %v4942 = vunpack.c.h.b16 %v3526
        %v4943 = vunpack.c.l.b16 %v3527
        %v4944 = vunpack.c.h.b16 %v3527
        %v4945 = vunpack.c.l.b16 %v3528
        %v4946 = vunpack.c.h.b16 %v3528
        %v4947 = vunpack.c.l.b16 %v3529
        %v4948 = vunpack.c.h.b16 %v3529
        %v4949 = vunpack.c.l.b16 %v3530
        %v4950 = vunpack.c.h.b16 %v3530
        %v4951 = vunpack.c.l.b16 %v3531
        %v4952 = vunpack.c.h.b16 %v3531
        %v4953 = vunpack.c.l.b16 %v3532
        %v4954 = vunpack.c.h.b16 %v3532
        %v4955 = vunpack.c.l.b16 %v3533
        %v4956 = vunpack.c.h.b16 %v3533
        %v4957 = vunpack.c.l.b16 %v3534
        %v4958 = vunpack.c.h.b16 %v3534
        %v4959 = vunpack.c.l.b16 %v3535
        %v4960 = vunpack.c.h.b16 %v3535
        %v4961 = vunpack.c.l.b16 %v3536
        %v4962 = vunpack.c.h.b16 %v3536
        %v4963 = vunpack.c.l.b16 %v3537
        %v4964 = vunpack.c.h.b16 %v3537
        %v4965 = vunpack.c.l.b16 %v3538
        %v4966 = vunpack.c.h.b16 %v3538
        %v4967 = vunpack.c.l.b16 %v3539
        %v4968 = vunpack.c.h.b16 %v3539
        %v4969 = vunpack.c.l.b16 %v3540
        %v4970 = vunpack.c.h.b16 %v3540
        %v4971 = vunpack.c.l.b16 %v3541
        %v4972 = vunpack.c.h.b16 %v3541
        %v4973 = vpack.c.b16 %v4721, %v4717
        %v4974 = vpack.c.b16 %v4722, %v4718
        %v4975 = vpack.c.b16 %v4723, %v4719
        %v4976 = vpack.c.b16 %v4724, %v4720
        %v4977 = vpack.c.b16 %v4729, %v4725
        %v4978 = vpack.c.b16 %v4730, %v4726
        %v4979 = vpack.c.b16 %v4731, %v4727
        %v4980 = vpack.c.b16 %v4732, %v4728
        %v4981 = vpack.c.b16 %v4737, %v4733
        %v4982 = vpack.c.b16 %v4738, %v4734
        %v4983 = vpack.c.b16 %v4739, %v4735
        %v4984 = vpack.c.b16 %v4740, %v4736
        %v4985 = vpack.c.b16 %v4745, %v4741
        %v4986 = vpack.c.b16 %v4746, %v4742
        %v4987 = vpack.c.b16 %v4747, %v4743
        %v4988 = vpack.c.b16 %v4748, %v4744
        %v4989 = vpack.c.b16 %v4753, %v4749
        %v4990 = vpack.c.b16 %v4754, %v4750
        %v4991 = vpack.c.b16 %v4755, %v4751
        %v4992 = vpack.c.b16 %v4756, %v4752
        %v4993 = vpack.c.b16 %v4761, %v4757
        %v4994 = vpack.c.b16 %v4762, %v4758
        %v4995 = vpack.c.b16 %v4763, %v4759
        %v4996 = vpack.c.b16 %v4764, %v4760
        %v4997 = vpack.c.b16 %v4769, %v4765
        %v4998 = vpack.c.b16 %v4770, %v4766
        %v4999 = vpack.c.b16 %v4771, %v4767
        %v5000 = vpack.c.b16 %v4772, %v4768
        %v5001 = vpack.c.b16 %v4777, %v4773
        %v5002 = vpack.c.b16 %v4778, %v4774
        %v5003 = vpack.c.b16 %v4779, %v4775
        %v5004 = vpack.c.b16 %v4780, %v4776
        %v5005 = vpack.c.b16 %v4785, %v4781
        %v5006 = vpack.c.b16 %v4786, %v4782
        %v5007 = vpack.c.b16 %v4787, %v4783
        %v5008 = vpack.c.b16 %v4788, %v4784
        %v5009 = vpack.c.b16 %v4793, %v4789
        %v5010 = vpack.c.b16 %v4794, %v4790
        %v5011 = vpack.c.b16 %v4795, %v4791
        %v5012 = vpack.c.b16 %v4796, %v4792
        %v5013 = vpack.c.b16 %v4801, %v4797
        %v5014 = vpack.c.b16 %v4802, %v4798
        %v5015 = vpack.c.b16 %v4803, %v4799
        %v5016 = vpack.c.b16 %v4804, %v4800
        %v5017 = vpack.c.b16 %v4809, %v4805
        %v5018 = vpack.c.b16 %v4810, %v4806
        %v5019 = vpack.c.b16 %v4811, %v4807
        %v5020 = vpack.c.b16 %v4812, %v4808
        %v5021 = vpack.c.b16 %v4817, %v4813
        %v5022 = vpack.c.b16 %v4818, %v4814
        %v5023 = vpack.c.b16 %v4819, %v4815
        %v5024 = vpack.c.b16 %v4820, %v4816
        %v5025 = vpack.c.b16 %v4825, %v4821
        %v5026 = vpack.c.b16 %v4826, %v4822
        %v5027 = vpack.c.b16 %v4827, %v4823
        %v5028 = vpack.c.b16 %v4828, %v4824
        %v5029 = vpack.c.b16 %v4833, %v4829
        %v5030 = vpack.c.b16 %v4834, %v4830
        %v5031 = vpack.c.b16 %v4835, %v4831
        %v5032 = vpack.c.b16 %v4836, %v4832
        %v5033 = vpack.c.b16 %v4841, %v4837
        %v5034 = vpack.c.b16 %v4842, %v4838
        %v5035 = vpack.c.b16 %v4843, %v4839
        %v5036 = vpack.c.b16 %v4844, %v4840
        %v5037 = vpack.c.b16 %v4849, %v4845
        %v5038 = vpack.c.b16 %v4850, %v4846
        %v5039 = vpack.c.b16 %v4851, %v4847
        %v5040 = vpack.c.b16 %v4852, %v4848
        %v5041 = vpack.c.b16 %v4857, %v4853
        %v5042 = vpack.c.b16 %v4858, %v4854
        %v5043 = vpack.c.b16 %v4859, %v4855
        %v5044 = vpack.c.b16 %v4860, %v4856
        %v5045 = vpack.c.b16 %v4865, %v4861
        %v5046 = vpack.c.b16 %v4866, %v4862
        %v5047 = vpack.c.b16 %v4867, %v4863
        %v5048 = vpack.c.b16 %v4868, %v4864
        %v5049 = vpack.c.b16 %v4873, %v4869
        %v5050 = vpack.c.b16 %v4874, %v4870
        %v5051 = vpack.c.b16 %v4875, %v4871
        %v5052 = vpack.c.b16 %v4876, %v4872
        %v5053 = vpack.c.b16 %v4881, %v4877
        %v5054 = vpack.c.b16 %v4882, %v4878
        %v5055 = vpack.c.b16 %v4883, %v4879
        %v5056 = vpack.c.b16 %v4884, %v4880
        %v5057 = vpack.c.b16 %v4889, %v4885
        %v5058 = vpack.c.b16 %v4890, %v4886
        %v5059 = vpack.c.b16 %v4891, %v4887
        %v5060 = vpack.c.b16 %v4892, %v4888
        %v5061 = vpack.c.b16 %v4897, %v4893
        %v5062 = vpack.c.b16 %v4898, %v4894
        %v5063 = vpack.c.b16 %v4899, %v4895
        %v5064 = vpack.c.b16 %v4900, %v4896
        %v5065 = vpack.c.b16 %v4905, %v4901
        %v5066 = vpack.c.b16 %v4906, %v4902
        %v5067 = vpack.c.b16 %v4907, %v4903
        %v5068 = vpack.c.b16 %v4908, %v4904
        %v5069 = vpack.c.b16 %v4913, %v4909
        %v5070 = vpack.c.b16 %v4914, %v4910
        %v5071 = vpack.c.b16 %v4915, %v4911
        %v5072 = vpack.c.b16 %v4916, %v4912
        %v5073 = vpack.c.b16 %v4921, %v4917
        %v5074 = vpack.c.b16 %v4922, %v4918
        %v5075 = vpack.c.b16 %v4923, %v4919
        %v5076 = vpack.c.b16 %v4924, %v4920
        %v5077 = vpack.c.b16 %v4929, %v4925
        %v5078 = vpack.c.b16 %v4930, %v4926
        %v5079 = vpack.c.b16 %v4931, %v4927
        %v5080 = vpack.c.b16 %v4932, %v4928
        %v5081 = vpack.c.b16 %v4937, %v4933
        %v5082 = vpack.c.b16 %v4938, %v4934
        %v5083 = vpack.c.b16 %v4939, %v4935
        %v5084 = vpack.c.b16 %v4940, %v4936
        %v5085 = vpack.c.b16 %v4945, %v4941
        %v5086 = vpack.c.b16 %v4946, %v4942
        %v5087 = vpack.c.b16 %v4947, %v4943
        %v5088 = vpack.c.b16 %v4948, %v4944
        %v5089 = vpack.c.b16 %v4953, %v4949
        %v5090 = vpack.c.b16 %v4954, %v4950
        %v5091 = vpack.c.b16 %v4955, %v4951
        %v5092 = vpack.c.b16 %v4956, %v4952
        %v5093 = vpack.c.b16 %v4961, %v4957
        %v5094 = vpack.c.b16 %v4962, %v4958
        %v5095 = vpack.c.b16 %v4963, %v4959
        %v5096 = vpack.c.b16 %v4964, %v4960
        %v5097 = vpack.c.b16 %v4969, %v4965
        %v5098 = vpack.c.b16 %v4970, %v4966
        %v5099 = vpack.c.b16 %v4971, %v4967
        %v5100 = vpack.c.b16 %v4972, %v4968
        %5229 = vmatprep.subr.bf16.mxu0 %v5002
        %5230 = vmatpush1.bf16.msra.mxu0 %v5001
        %5231 = vmatprep.subr.bf16.mxu0 %v4998
        %5232 = vmatpush1.bf16.msra.mxu0 %v4997
        %5233 = vmatprep.subr.bf16.mxu0 %v4994
        %5234 = vmatpush1.bf16.msra.mxu0 %v4993
        %5235 = vmatprep.subr.bf16.mxu0 %v4990
        %5236 = vmatpush1.bf16.msra.mxu0 %v4989
        %5237 = vmatprep.subr.bf16.mxu0 %v4986
        %5238 = vmatpush1.bf16.msra.mxu0 %v4985
        %5239 = vmatprep.subr.bf16.mxu0 %v4982
        %5240 = vmatpush1.bf16.msra.mxu0 %v4981
        %5241 = vmatprep.subr.bf16.mxu0 %v4978
        %5242 = vmatpush1.bf16.msra.mxu0 %v4977
        %5243 = vmatprep.subr.bf16.mxu0 %v4974
        %5244 = vmatpush1.bf16.msra.mxu0 %v4973
        %5245 = vmatprep.subr.bf16.mxu0 %v5034
        %5246 = vmatpush2.bf16.msra.mxu0 %v5033
        %5247 = vmatprep.subr.bf16.mxu0 %v5030
        %5248 = vmatpush2.bf16.msra.mxu0 %v5029
        %5249 = vmatprep.subr.bf16.mxu0 %v5026
        %5250 = vmatpush2.bf16.msra.mxu0 %v5025
        %5251 = vmatprep.subr.bf16.mxu0 %v5022
        %5252 = vmatpush2.bf16.msra.mxu0 %v5021
        %5253 = vmatprep.subr.bf16.mxu0 %v5018
        %5254 = vmatpush2.bf16.msra.mxu0 %v5017
        %5255 = vmatprep.subr.bf16.mxu0 %v5014
        %5256 = vmatpush2.bf16.msra.mxu0 %v5013
        %5257 = vmatprep.subr.bf16.mxu0 %v5010
        %5258 = vmatpush2.bf16.msra.mxu0 %v5009
        %5259 = vmatprep.subr.bf16.mxu0 %v5006
        %5260 = vmatpush2.bf16.msra.mxu0 %v5005
        %5261 = vmatprep.mubr.bf16.mxu0 %v4550
        %5262 = vmatmul.mubr.bf16.gmra.mxu0 %v4533
        %v5263 = vpop.f32.mrf.mxu0
        %v5264 = vadd.f32 %v4409, %v5263
        %v5265 = vpop.f32.mrf.mxu0
        %v5266 = vadd.f32 %v4411, %v5265
        %v5267 = vpop.f32.mrf.mxu0
        %v5268 = vadd.f32 %v4413, %v5267
        %v5269 = vpop.f32.mrf.mxu0
        %v5270 = vadd.f32 %v4415, %v5269
        %5271 = vdwg.mxu0
        %5272 = vmatprep.subr.bf16.mxu0 %v5066
        %5273 = vmatpush1.bf16.msra.mxu0 %v5065
        %5274 = vmatprep.subr.bf16.mxu0 %v5062
        %5275 = vmatpush1.bf16.msra.mxu0 %v5061
        %5276 = vmatprep.subr.bf16.mxu0 %v5058
        %5277 = vmatpush1.bf16.msra.mxu0 %v5057
        %5278 = vmatprep.subr.bf16.mxu0 %v5054
        %5279 = vmatpush1.bf16.msra.mxu0 %v5053
        %5280 = vmatprep.subr.bf16.mxu0 %v5050
        %5281 = vmatpush1.bf16.msra.mxu0 %v5049
        %5282 = vmatprep.subr.bf16.mxu0 %v5046
        %5283 = vmatpush1.bf16.msra.mxu0 %v5045
        %5284 = vmatprep.subr.bf16.mxu0 %v5042
        %5285 = vmatpush1.bf16.msra.mxu0 %v5041
        %5286 = vmatprep.subr.bf16.mxu0 %v5038
        %5287 = vmatpush1.bf16.msra.mxu0 %v5037
        %5288 = vmatprep.subr.bf16.mxu0 %v5098
        %5289 = vmatpush2.bf16.msra.mxu0 %v5097
        %5290 = vmatprep.subr.bf16.mxu0 %v5094
        %5291 = vmatpush2.bf16.msra.mxu0 %v5093
        %5292 = vmatprep.subr.bf16.mxu0 %v5090
        %5293 = vmatpush2.bf16.msra.mxu0 %v5089
        %5294 = vmatprep.subr.bf16.mxu0 %v5086
        %5295 = vmatpush2.bf16.msra.mxu0 %v5085
        %5296 = vmatprep.subr.bf16.mxu0 %v5082
        %5297 = vmatpush2.bf16.msra.mxu0 %v5081
        %5298 = vmatprep.subr.bf16.mxu0 %v5078
        %5299 = vmatpush2.bf16.msra.mxu0 %v5077
        %5300 = vmatprep.subr.bf16.mxu0 %v5074
        %5301 = vmatpush2.bf16.msra.mxu0 %v5073
        %5302 = vmatprep.subr.bf16.mxu0 %v5070
        %5303 = vmatpush2.bf16.msra.mxu0 %v5069
        %5304 = vmatprep.mubr.bf16.mxu0 %v4584
        %5305 = vmatmul.mubr.bf16.gmra.mxu0 %v4567
        %v5306 = vpop.f32.mrf.mxu0
        %v5307 = vadd.f32 %v5264, %v5306
        %v5308 = vpop.f32.mrf.mxu0
        %v5309 = vadd.f32 %v5266, %v5308
        %v5310 = vpop.f32.mrf.mxu0
        %v5311 = vadd.f32 %v5268, %v5310
        %v5312 = vpop.f32.mrf.mxu0
        %v5313 = vadd.f32 %v5270, %v5312
        %5314 = vdwg.mxu0
        %5315 = vmatprep.subr.bf16.mxu0 %v5004
        %5316 = vmatpush1.bf16.msra.mxu0 %v5003
        %5317 = vmatprep.subr.bf16.mxu0 %v5000
        %5318 = vmatpush1.bf16.msra.mxu0 %v4999
        %5319 = vmatprep.subr.bf16.mxu0 %v4996
        %5320 = vmatpush1.bf16.msra.mxu0 %v4995
        %5321 = vmatprep.subr.bf16.mxu0 %v4992
        %5322 = vmatpush1.bf16.msra.mxu0 %v4991
        %5323 = vmatprep.subr.bf16.mxu0 %v4988
        %5324 = vmatpush1.bf16.msra.mxu0 %v4987
        %5325 = vmatprep.subr.bf16.mxu0 %v4984
        %5326 = vmatpush1.bf16.msra.mxu0 %v4983
        %5327 = vmatprep.subr.bf16.mxu0 %v4980
        %5328 = vmatpush1.bf16.msra.mxu0 %v4979
        %5329 = vmatprep.subr.bf16.mxu0 %v4976
        %5330 = vmatpush1.bf16.msra.mxu0 %v4975
        %5331 = vmatprep.subr.bf16.mxu0 %v5036
        %5332 = vmatpush2.bf16.msra.mxu0 %v5035
        %5333 = vmatprep.subr.bf16.mxu0 %v5032
        %5334 = vmatpush2.bf16.msra.mxu0 %v5031
        %5335 = vmatprep.subr.bf16.mxu0 %v5028
        %5336 = vmatpush2.bf16.msra.mxu0 %v5027
        %5337 = vmatprep.subr.bf16.mxu0 %v5024
        %5338 = vmatpush2.bf16.msra.mxu0 %v5023
        %5339 = vmatprep.subr.bf16.mxu0 %v5020
        %5340 = vmatpush2.bf16.msra.mxu0 %v5019
        %5341 = vmatprep.subr.bf16.mxu0 %v5016
        %5342 = vmatpush2.bf16.msra.mxu0 %v5015
        %5343 = vmatprep.subr.bf16.mxu0 %v5012
        %5344 = vmatpush2.bf16.msra.mxu0 %v5011
        %5345 = vmatprep.subr.bf16.mxu0 %v5008
        %5346 = vmatpush2.bf16.msra.mxu0 %v5007
        %5347 = vmatprep.mubr.bf16.mxu0 %v4550
        %5348 = vmatmul.mubr.bf16.gmra.mxu0 %v4533
        %v5349 = vpop.f32.mrf.mxu0
        %v5350 = vadd.f32 %v4495, %v5349
        %v5351 = vpop.f32.mrf.mxu0
        %v5352 = vadd.f32 %v4497, %v5351
        %v5353 = vpop.f32.mrf.mxu0
        %v5354 = vadd.f32 %v4499, %v5353
        %v5355 = vpop.f32.mrf.mxu0
        %v5356 = vadd.f32 %v4501, %v5355
        %5357 = vdwg.mxu0
        %5358 = vmatprep.subr.bf16.mxu0 %v5068
        %5359 = vmatpush1.bf16.msra.mxu0 %v5067
        %5360 = vmatprep.subr.bf16.mxu0 %v5064
        %5361 = vmatpush1.bf16.msra.mxu0 %v5063
        %5362 = vmatprep.subr.bf16.mxu0 %v5060
        %5363 = vmatpush1.bf16.msra.mxu0 %v5059
        %5364 = vmatprep.subr.bf16.mxu0 %v5056
        %5365 = vmatpush1.bf16.msra.mxu0 %v5055
        %5366 = vmatprep.subr.bf16.mxu0 %v5052
        %5367 = vmatpush1.bf16.msra.mxu0 %v5051
        %5368 = vmatprep.subr.bf16.mxu0 %v5048
        %5369 = vmatpush1.bf16.msra.mxu0 %v5047
        %5370 = vmatprep.subr.bf16.mxu0 %v5044
        %5371 = vmatpush1.bf16.msra.mxu0 %v5043
        %5372 = vmatprep.subr.bf16.mxu0 %v5040
        %5373 = vmatpush1.bf16.msra.mxu0 %v5039
        %5374 = vmatprep.subr.bf16.mxu0 %v5100
        %5375 = vmatpush2.bf16.msra.mxu0 %v5099
        %5376 = vmatprep.subr.bf16.mxu0 %v5096
        %5377 = vmatpush2.bf16.msra.mxu0 %v5095
        %5378 = vmatprep.subr.bf16.mxu0 %v5092
        %5379 = vmatpush2.bf16.msra.mxu0 %v5091
        %5380 = vmatprep.subr.bf16.mxu0 %v5088
        %5381 = vmatpush2.bf16.msra.mxu0 %v5087
        %5382 = vmatprep.subr.bf16.mxu0 %v5084
        %5383 = vmatpush2.bf16.msra.mxu0 %v5083
        %5384 = vmatprep.subr.bf16.mxu0 %v5080
        %5385 = vmatpush2.bf16.msra.mxu0 %v5079
        %5386 = vmatprep.subr.bf16.mxu0 %v5076
        %5387 = vmatpush2.bf16.msra.mxu0 %v5075
        %5388 = vmatprep.subr.bf16.mxu0 %v5072
        %5389 = vmatpush2.bf16.msra.mxu0 %v5071
        %5390 = vmatprep.mubr.bf16.mxu0 %v4584
        %5391 = vmatmul.mubr.bf16.gmra.mxu0 %v4567
        %v5392 = vpop.f32.mrf.mxu0
        %v5393 = vadd.f32 %v5350, %v5392
        %v5394 = vpop.f32.mrf.mxu0
        %v5395 = vadd.f32 %v5352, %v5394
        %v5396 = vpop.f32.mrf.mxu0
        %v5397 = vadd.f32 %v5354, %v5396
        %v5398 = vpop.f32.mrf.mxu0
        %v5399 = vadd.f32 %v5356, %v5398
        %5400 = vdwg.mxu0
        %v5401 = vld [vmem:[#allocation3 + $0x10] sm:$0xff]
        %v5402 = vld [vmem:[#allocation3 + $0x18] sm:$0xff]
        %v5403 = vld [vmem:[#allocation3 + $0x20] sm:$0xff]
        %v5404 = vld [vmem:[#allocation3 + $0x28] sm:$0xff]
        %v5405 = vld [vmem:[#allocation3 + $0x30] sm:$0x11]
        %v5406 = vld [vmem:[#allocation3 + $0x38] sm:$0x11]
        %s5407 = scalar_lea.vmem [#allocation9], 2048
        %v5408 = vld [vmem:[%s5407] sm:$0xff]
        %v5409 = vld [vmem:[%s5407 + $0x8] sm:$0xff]
        %v5410 = vld [vmem:[%s5407 + $0x10] sm:$0xff]
        %v5411 = vld [vmem:[%s5407 + $0x18] sm:$0xff]
        %v5412 = vld [vmem:[%s5407 + $0x20] sm:$0xff]
        %v5413 = vld [vmem:[%s5407 + $0x28] sm:$0xff]
        %v5414 = vld [vmem:[%s5407 + $0x30] sm:$0xff]
        %v5415 = vld [vmem:[%s5407 + $0x38] sm:$0xff]
        %v5416 = vld [vmem:[%s5407 + $0x40] sm:$0xff]
        %v5417 = vld [vmem:[%s5407 + $0x48] sm:$0xff]
        %v5418 = vld [vmem:[%s5407 + $0x50] sm:$0xff]
        %v5419 = vld [vmem:[%s5407 + $0x58] sm:$0xff]
        %v5420 = vld [vmem:[%s5407 + $0x60] sm:$0xff]
        %v5421 = vld [vmem:[%s5407 + $0x68] sm:$0xff]
        %v5422 = vld [vmem:[%s5407 + $0x70] sm:$0xff]
        %v5423 = vld [vmem:[%s5407 + $0x78] sm:$0xff]
        %v5424 = vld [vmem:[%s5407 + $0x80] sm:$0xff]
        %v5425 = vld [vmem:[%s5407 + $0x88] sm:$0xff]
        %v5426 = vld [vmem:[%s5407 + $0x90] sm:$0xff]
        %v5427 = vld [vmem:[%s5407 + $0x98] sm:$0xff]
        %v5428 = vld [vmem:[%s5407 + $0xa0] sm:$0xff]
        %v5429 = vld [vmem:[%s5407 + $0xa8] sm:$0xff]
        %v5430 = vld [vmem:[%s5407 + $0xb0] sm:$0xff]
        %v5431 = vld [vmem:[%s5407 + $0xb8] sm:$0xff]
        %v5432 = vld [vmem:[%s5407 + $0xc0] sm:$0xff]
        %v5433 = vld [vmem:[%s5407 + $0xc8] sm:$0xff]
        %v5434 = vld [vmem:[%s5407 + $0xd0] sm:$0xff]
        %v5435 = vld [vmem:[%s5407 + $0xd8] sm:$0xff]
        %v5436 = vld [vmem:[%s5407 + $0xe0] sm:$0xff]
        %v5437 = vld [vmem:[%s5407 + $0xe8] sm:$0xff]
        %v5438 = vld [vmem:[%s5407 + $0xf0] sm:$0xff]
        %v5439 = vld [vmem:[%s5407 + $0xf8] sm:$0xff]
        %v5440 = vld [vmem:[%s5407 + $0x100] sm:$0xff]
        %v5441 = vld [vmem:[%s5407 + $0x108] sm:$0xff]
        %v5442 = vld [vmem:[%s5407 + $0x110] sm:$0xff]
        %v5443 = vld [vmem:[%s5407 + $0x118] sm:$0xff]
        %v5444 = vld [vmem:[%s5407 + $0x120] sm:$0xff]
        %v5445 = vld [vmem:[%s5407 + $0x128] sm:$0xff]
        %v5446 = vld [vmem:[%s5407 + $0x130] sm:$0xff]
        %v5447 = vld [vmem:[%s5407 + $0x138] sm:$0xff]
        %v5448 = vld [vmem:[%s5407 + $0x140] sm:$0xff]
        %v5449 = vld [vmem:[%s5407 + $0x148] sm:$0xff]
        %v5450 = vld [vmem:[%s5407 + $0x150] sm:$0xff]
        %v5451 = vld [vmem:[%s5407 + $0x158] sm:$0xff]
        %v5452 = vld [vmem:[%s5407 + $0x160] sm:$0xff]
        %v5453 = vld [vmem:[%s5407 + $0x168] sm:$0xff]
        %v5454 = vld [vmem:[%s5407 + $0x170] sm:$0xff]
        %v5455 = vld [vmem:[%s5407 + $0x178] sm:$0xff]
        %v5456 = vld [vmem:[%s5407 + $0x180] sm:$0xff]
        %v5457 = vld [vmem:[%s5407 + $0x188] sm:$0xff]
        %v5458 = vld [vmem:[%s5407 + $0x190] sm:$0xff]
        %v5459 = vld [vmem:[%s5407 + $0x198] sm:$0xff]
        %v5460 = vld [vmem:[%s5407 + $0x1a0] sm:$0xff]
        %v5461 = vld [vmem:[%s5407 + $0x1a8] sm:$0xff]
        %v5462 = vld [vmem:[%s5407 + $0x1b0] sm:$0xff]
        %v5463 = vld [vmem:[%s5407 + $0x1b8] sm:$0xff]
        %v5464 = vld [vmem:[%s5407 + $0x1c0] sm:$0xff]
        %v5465 = vld [vmem:[%s5407 + $0x1c8] sm:$0xff]
        %v5466 = vld [vmem:[%s5407 + $0x1d0] sm:$0xff]
        %v5467 = vld [vmem:[%s5407 + $0x1d8] sm:$0xff]
        %v5468 = vld [vmem:[%s5407 + $0x1e0] sm:$0xff]
        %v5469 = vld [vmem:[%s5407 + $0x1e8] sm:$0xff]
        %v5470 = vld [vmem:[%s5407 + $0x1f0] sm:$0xff]
        %v5471 = vld [vmem:[%s5407 + $0x1f8] sm:$0xff]
        %v5472 = vld [vmem:[%s5407 + $0x200] sm:$0xff]
        %v5473 = vld [vmem:[%s5407 + $0x208] sm:$0xff]
        %v5474 = vld [vmem:[%s5407 + $0x210] sm:$0xff]
        %v5475 = vld [vmem:[%s5407 + $0x218] sm:$0xff]
        %v5476 = vld [vmem:[%s5407 + $0x220] sm:$0xff]
        %v5477 = vld [vmem:[%s5407 + $0x228] sm:$0xff]
        %v5478 = vld [vmem:[%s5407 + $0x230] sm:$0xff]
        %v5479 = vld [vmem:[%s5407 + $0x238] sm:$0xff]
        %v5480 = vld [vmem:[%s5407 + $0x240] sm:$0xff]
        %v5481 = vld [vmem:[%s5407 + $0x248] sm:$0xff]
        %v5482 = vld [vmem:[%s5407 + $0x250] sm:$0xff]
        %v5483 = vld [vmem:[%s5407 + $0x258] sm:$0xff]
        %v5484 = vld [vmem:[%s5407 + $0x260] sm:$0xff]
        %v5485 = vld [vmem:[%s5407 + $0x268] sm:$0xff]
        %v5486 = vld [vmem:[%s5407 + $0x270] sm:$0xff]
        %v5487 = vld [vmem:[%s5407 + $0x278] sm:$0xff]
        %v5488 = vld [vmem:[%s5407 + $0x280] sm:$0xff]
        %v5489 = vld [vmem:[%s5407 + $0x288] sm:$0xff]
        %v5490 = vld [vmem:[%s5407 + $0x290] sm:$0xff]
        %v5491 = vld [vmem:[%s5407 + $0x298] sm:$0xff]
        %v5492 = vld [vmem:[%s5407 + $0x2a0] sm:$0xff]
        %v5493 = vld [vmem:[%s5407 + $0x2a8] sm:$0xff]
        %v5494 = vld [vmem:[%s5407 + $0x2b0] sm:$0xff]
        %v5495 = vld [vmem:[%s5407 + $0x2b8] sm:$0xff]
        %v5496 = vld [vmem:[%s5407 + $0x2c0] sm:$0xff]
        %v5497 = vld [vmem:[%s5407 + $0x2c8] sm:$0xff]
        %v5498 = vld [vmem:[%s5407 + $0x2d0] sm:$0xff]
        %v5499 = vld [vmem:[%s5407 + $0x2d8] sm:$0xff]
        %v5500 = vld [vmem:[%s5407 + $0x2e0] sm:$0xff]
        %v5501 = vld [vmem:[%s5407 + $0x2e8] sm:$0xff]
        %v5502 = vld [vmem:[%s5407 + $0x2f0] sm:$0xff]
        %v5503 = vld [vmem:[%s5407 + $0x2f8] sm:$0xff]
        %v5504 = vld [vmem:[%s5407 + $0x300] sm:$0xff]
        %v5505 = vld [vmem:[%s5407 + $0x308] sm:$0xff]
        %v5506 = vld [vmem:[%s5407 + $0x310] sm:$0xff]
        %v5507 = vld [vmem:[%s5407 + $0x318] sm:$0xff]
        %v5508 = vld [vmem:[%s5407 + $0x320] sm:$0xff]
        %v5509 = vld [vmem:[%s5407 + $0x328] sm:$0xff]
        %v5510 = vld [vmem:[%s5407 + $0x330] sm:$0xff]
        %v5511 = vld [vmem:[%s5407 + $0x338] sm:$0xff]
        %v5512 = vld [vmem:[%s5407 + $0x340] sm:$0xff]
        %v5513 = vld [vmem:[%s5407 + $0x348] sm:$0xff]
        %v5514 = vld [vmem:[%s5407 + $0x350] sm:$0xff]
        %v5515 = vld [vmem:[%s5407 + $0x358] sm:$0xff]
        %v5516 = vld [vmem:[%s5407 + $0x360] sm:$0xff]
        %v5517 = vld [vmem:[%s5407 + $0x368] sm:$0xff]
        %v5518 = vld [vmem:[%s5407 + $0x370] sm:$0xff]
        %v5519 = vld [vmem:[%s5407 + $0x378] sm:$0xff]
        %v5520 = vld [vmem:[%s5407 + $0x380] sm:$0xff]
        %v5521 = vld [vmem:[%s5407 + $0x388] sm:$0xff]
        %v5522 = vld [vmem:[%s5407 + $0x390] sm:$0xff]
        %v5523 = vld [vmem:[%s5407 + $0x398] sm:$0xff]
        %v5524 = vld [vmem:[%s5407 + $0x3a0] sm:$0xff]
        %v5525 = vld [vmem:[%s5407 + $0x3a8] sm:$0xff]
        %v5526 = vld [vmem:[%s5407 + $0x3b0] sm:$0xff]
        %v5527 = vld [vmem:[%s5407 + $0x3b8] sm:$0xff]
        %v5528 = vld [vmem:[%s5407 + $0x3c0] sm:$0xff]
        %v5529 = vld [vmem:[%s5407 + $0x3c8] sm:$0xff]
        %v5530 = vld [vmem:[%s5407 + $0x3d0] sm:$0xff]
        %v5531 = vld [vmem:[%s5407 + $0x3d8] sm:$0xff]
        %v5532 = vld [vmem:[%s5407 + $0x3e0] sm:$0xff]
        %v5533 = vld [vmem:[%s5407 + $0x3e8] sm:$0xff]
        %v5534 = vld [vmem:[%s5407 + $0x3f0] sm:$0xff]
        %v5535 = vld [vmem:[%s5407 + $0x3f8] sm:$0xff]
        %v5542 = vunpack.c.l.b16 %v5401
        %v5543 = vunpack.c.h.b16 %v5401
        %v5544 = vunpack.c.l.b16 %v5402
        %v5545 = vunpack.c.h.b16 %v5402
        %v5546 = vunpack.c.l.b16 %v5403
        %v5547 = vunpack.c.h.b16 %v5403
        %v5548 = vunpack.c.l.b16 %v5404
        %v5549 = vunpack.c.h.b16 %v5404
        %v5550 = vunpack.c.l.b16 %v5405
        %v5551 = vunpack.c.h.b16 %v5405
        %v5552 = vunpack.c.l.b16 %v5406
        %v5553 = vunpack.c.h.b16 %v5406
        %v5554 = vpack.c.b16 %v5546, %v5542
        %v5555 = vpack.c.b16 %v5547, %v5543
        %v5556 = vpack.c.b16 %v5548, %v5544
        %v5557 = vpack.c.b16 %v5549, %v5545
        %v5558 = vpack.c.b16 %v5550, %v5550
        %v5559 = vpack.c.b16 %v5551, %v5551
        %v5560 = vpack.c.b16 %v5552, %v5552
        %v5561 = vpack.c.b16 %v5553, %v5553
        %v5563 = vshrl.u32 %v5554, 16
        %v5565 = vshll.u32 %v5554, 16
        %v5567 = vrot.slane %v5565, 1
        %v5568 = vor.u32 %v5563, %v5567
        %v5570 = vshll.u32 %v5558, 16
        %v5572 = vrot.slane %v5570, 1
        %v5573 = vsel %vm2469, %v5568, %v5572
        %v5575 = vshrl.u32 %v5555, 16
        %v5577 = vshll.u32 %v5555, 16
        %v5579 = vrot.slane %v5577, 1
        %v5580 = vor.u32 %v5575, %v5579
        %v5582 = vshll.u32 %v5559, 16
        %v5584 = vrot.slane %v5582, 1
        %v5585 = vsel %vm2469, %v5580, %v5584
        %v5587 = vshrl.u32 %v5556, 16
        %v5589 = vshll.u32 %v5556, 16
        %v5591 = vrot.slane %v5589, 1
        %v5592 = vor.u32 %v5587, %v5591
        %v5594 = vshll.u32 %v5560, 16
        %v5596 = vrot.slane %v5594, 1
        %v5597 = vsel %vm2469, %v5592, %v5596
        %v5599 = vshrl.u32 %v5557, 16
        %v5601 = vshll.u32 %v5557, 16
        %v5603 = vrot.slane %v5601, 1
        %v5604 = vor.u32 %v5599, %v5603
        %v5606 = vshll.u32 %v5561, 16
        %v5608 = vrot.slane %v5606, 1
        %v5609 = vsel %vm2469, %v5604, %v5608
        %v5742 = vunpack.c.l.b16 %v5408
        %v5743 = vunpack.c.h.b16 %v5408
        %v5744 = vunpack.c.l.b16 %v5409
        %v5745 = vunpack.c.h.b16 %v5409
        %v5746 = vunpack.c.l.b16 %v5410
        %v5747 = vunpack.c.h.b16 %v5410
        %v5748 = vunpack.c.l.b16 %v5411
        %v5749 = vunpack.c.h.b16 %v5411
        %v5750 = vunpack.c.l.b16 %v5412
        %v5751 = vunpack.c.h.b16 %v5412
        %v5752 = vunpack.c.l.b16 %v5413
        %v5753 = vunpack.c.h.b16 %v5413
        %v5754 = vunpack.c.l.b16 %v5414
        %v5755 = vunpack.c.h.b16 %v5414
        %v5756 = vunpack.c.l.b16 %v5415
        %v5757 = vunpack.c.h.b16 %v5415
        %v5758 = vunpack.c.l.b16 %v5416
        %v5759 = vunpack.c.h.b16 %v5416
        %v5760 = vunpack.c.l.b16 %v5417
        %v5761 = vunpack.c.h.b16 %v5417
        %v5762 = vunpack.c.l.b16 %v5418
        %v5763 = vunpack.c.h.b16 %v5418
        %v5764 = vunpack.c.l.b16 %v5419
        %v5765 = vunpack.c.h.b16 %v5419
        %v5766 = vunpack.c.l.b16 %v5420
        %v5767 = vunpack.c.h.b16 %v5420
        %v5768 = vunpack.c.l.b16 %v5421
        %v5769 = vunpack.c.h.b16 %v5421
        %v5770 = vunpack.c.l.b16 %v5422
        %v5771 = vunpack.c.h.b16 %v5422
        %v5772 = vunpack.c.l.b16 %v5423
        %v5773 = vunpack.c.h.b16 %v5423
        %v5774 = vunpack.c.l.b16 %v5424
        %v5775 = vunpack.c.h.b16 %v5424
        %v5776 = vunpack.c.l.b16 %v5425
        %v5777 = vunpack.c.h.b16 %v5425
        %v5778 = vunpack.c.l.b16 %v5426
        %v5779 = vunpack.c.h.b16 %v5426
        %v5780 = vunpack.c.l.b16 %v5427
        %v5781 = vunpack.c.h.b16 %v5427
        %v5782 = vunpack.c.l.b16 %v5428
        %v5783 = vunpack.c.h.b16 %v5428
        %v5784 = vunpack.c.l.b16 %v5429
        %v5785 = vunpack.c.h.b16 %v5429
        %v5786 = vunpack.c.l.b16 %v5430
        %v5787 = vunpack.c.h.b16 %v5430
        %v5788 = vunpack.c.l.b16 %v5431
        %v5789 = vunpack.c.h.b16 %v5431
        %v5790 = vunpack.c.l.b16 %v5432
        %v5791 = vunpack.c.h.b16 %v5432
        %v5792 = vunpack.c.l.b16 %v5433
        %v5793 = vunpack.c.h.b16 %v5433
        %v5794 = vunpack.c.l.b16 %v5434
        %v5795 = vunpack.c.h.b16 %v5434
        %v5796 = vunpack.c.l.b16 %v5435
        %v5797 = vunpack.c.h.b16 %v5435
        %v5798 = vunpack.c.l.b16 %v5436
        %v5799 = vunpack.c.h.b16 %v5436
        %v5800 = vunpack.c.l.b16 %v5437
        %v5801 = vunpack.c.h.b16 %v5437
        %v5802 = vunpack.c.l.b16 %v5438
        %v5803 = vunpack.c.h.b16 %v5438
        %v5804 = vunpack.c.l.b16 %v5439
        %v5805 = vunpack.c.h.b16 %v5439
        %v5806 = vunpack.c.l.b16 %v5440
        %v5807 = vunpack.c.h.b16 %v5440
        %v5808 = vunpack.c.l.b16 %v5441
        %v5809 = vunpack.c.h.b16 %v5441
        %v5810 = vunpack.c.l.b16 %v5442
        %v5811 = vunpack.c.h.b16 %v5442
        %v5812 = vunpack.c.l.b16 %v5443
        %v5813 = vunpack.c.h.b16 %v5443
        %v5814 = vunpack.c.l.b16 %v5444
        %v5815 = vunpack.c.h.b16 %v5444
        %v5816 = vunpack.c.l.b16 %v5445
        %v5817 = vunpack.c.h.b16 %v5445
        %v5818 = vunpack.c.l.b16 %v5446
        %v5819 = vunpack.c.h.b16 %v5446
        %v5820 = vunpack.c.l.b16 %v5447
        %v5821 = vunpack.c.h.b16 %v5447
        %v5822 = vunpack.c.l.b16 %v5448
        %v5823 = vunpack.c.h.b16 %v5448
        %v5824 = vunpack.c.l.b16 %v5449
        %v5825 = vunpack.c.h.b16 %v5449
        %v5826 = vunpack.c.l.b16 %v5450
        %v5827 = vunpack.c.h.b16 %v5450
        %v5828 = vunpack.c.l.b16 %v5451
        %v5829 = vunpack.c.h.b16 %v5451
        %v5830 = vunpack.c.l.b16 %v5452
        %v5831 = vunpack.c.h.b16 %v5452
        %v5832 = vunpack.c.l.b16 %v5453
        %v5833 = vunpack.c.h.b16 %v5453
        %v5834 = vunpack.c.l.b16 %v5454
        %v5835 = vunpack.c.h.b16 %v5454
        %v5836 = vunpack.c.l.b16 %v5455
        %v5837 = vunpack.c.h.b16 %v5455
        %v5838 = vunpack.c.l.b16 %v5456
        %v5839 = vunpack.c.h.b16 %v5456
        %v5840 = vunpack.c.l.b16 %v5457
        %v5841 = vunpack.c.h.b16 %v5457
        %v5842 = vunpack.c.l.b16 %v5458
        %v5843 = vunpack.c.h.b16 %v5458
        %v5844 = vunpack.c.l.b16 %v5459
        %v5845 = vunpack.c.h.b16 %v5459
        %v5846 = vunpack.c.l.b16 %v5460
        %v5847 = vunpack.c.h.b16 %v5460
        %v5848 = vunpack.c.l.b16 %v5461
        %v5849 = vunpack.c.h.b16 %v5461
        %v5850 = vunpack.c.l.b16 %v5462
        %v5851 = vunpack.c.h.b16 %v5462
        %v5852 = vunpack.c.l.b16 %v5463
        %v5853 = vunpack.c.h.b16 %v5463
        %v5854 = vunpack.c.l.b16 %v5464
        %v5855 = vunpack.c.h.b16 %v5464
        %v5856 = vunpack.c.l.b16 %v5465
        %v5857 = vunpack.c.h.b16 %v5465
        %v5858 = vunpack.c.l.b16 %v5466
        %v5859 = vunpack.c.h.b16 %v5466
        %v5860 = vunpack.c.l.b16 %v5467
        %v5861 = vunpack.c.h.b16 %v5467
        %v5862 = vunpack.c.l.b16 %v5468
        %v5863 = vunpack.c.h.b16 %v5468
        %v5864 = vunpack.c.l.b16 %v5469
        %v5865 = vunpack.c.h.b16 %v5469
        %v5866 = vunpack.c.l.b16 %v5470
        %v5867 = vunpack.c.h.b16 %v5470
        %v5868 = vunpack.c.l.b16 %v5471
        %v5869 = vunpack.c.h.b16 %v5471
        %v5870 = vunpack.c.l.b16 %v5472
        %v5871 = vunpack.c.h.b16 %v5472
        %v5872 = vunpack.c.l.b16 %v5473
        %v5873 = vunpack.c.h.b16 %v5473
        %v5874 = vunpack.c.l.b16 %v5474
        %v5875 = vunpack.c.h.b16 %v5474
        %v5876 = vunpack.c.l.b16 %v5475
        %v5877 = vunpack.c.h.b16 %v5475
        %v5878 = vunpack.c.l.b16 %v5476
        %v5879 = vunpack.c.h.b16 %v5476
        %v5880 = vunpack.c.l.b16 %v5477
        %v5881 = vunpack.c.h.b16 %v5477
        %v5882 = vunpack.c.l.b16 %v5478
        %v5883 = vunpack.c.h.b16 %v5478
        %v5884 = vunpack.c.l.b16 %v5479
        %v5885 = vunpack.c.h.b16 %v5479
        %v5886 = vunpack.c.l.b16 %v5480
        %v5887 = vunpack.c.h.b16 %v5480
        %v5888 = vunpack.c.l.b16 %v5481
        %v5889 = vunpack.c.h.b16 %v5481
        %v5890 = vunpack.c.l.b16 %v5482
        %v5891 = vunpack.c.h.b16 %v5482
        %v5892 = vunpack.c.l.b16 %v5483
        %v5893 = vunpack.c.h.b16 %v5483
        %v5894 = vunpack.c.l.b16 %v5484
        %v5895 = vunpack.c.h.b16 %v5484
        %v5896 = vunpack.c.l.b16 %v5485
        %v5897 = vunpack.c.h.b16 %v5485
        %v5898 = vunpack.c.l.b16 %v5486
        %v5899 = vunpack.c.h.b16 %v5486
        %v5900 = vunpack.c.l.b16 %v5487
        %v5901 = vunpack.c.h.b16 %v5487
        %v5902 = vunpack.c.l.b16 %v5488
        %v5903 = vunpack.c.h.b16 %v5488
        %v5904 = vunpack.c.l.b16 %v5489
        %v5905 = vunpack.c.h.b16 %v5489
        %v5906 = vunpack.c.l.b16 %v5490
        %v5907 = vunpack.c.h.b16 %v5490
        %v5908 = vunpack.c.l.b16 %v5491
        %v5909 = vunpack.c.h.b16 %v5491
        %v5910 = vunpack.c.l.b16 %v5492
        %v5911 = vunpack.c.h.b16 %v5492
        %v5912 = vunpack.c.l.b16 %v5493
        %v5913 = vunpack.c.h.b16 %v5493
        %v5914 = vunpack.c.l.b16 %v5494
        %v5915 = vunpack.c.h.b16 %v5494
        %v5916 = vunpack.c.l.b16 %v5495
        %v5917 = vunpack.c.h.b16 %v5495
        %v5918 = vunpack.c.l.b16 %v5496
        %v5919 = vunpack.c.h.b16 %v5496
        %v5920 = vunpack.c.l.b16 %v5497
        %v5921 = vunpack.c.h.b16 %v5497
        %v5922 = vunpack.c.l.b16 %v5498
        %v5923 = vunpack.c.h.b16 %v5498
        %v5924 = vunpack.c.l.b16 %v5499
        %v5925 = vunpack.c.h.b16 %v5499
        %v5926 = vunpack.c.l.b16 %v5500
        %v5927 = vunpack.c.h.b16 %v5500
        %v5928 = vunpack.c.l.b16 %v5501
        %v5929 = vunpack.c.h.b16 %v5501
        %v5930 = vunpack.c.l.b16 %v5502
        %v5931 = vunpack.c.h.b16 %v5502
        %v5932 = vunpack.c.l.b16 %v5503
        %v5933 = vunpack.c.h.b16 %v5503
        %v5934 = vunpack.c.l.b16 %v5504
        %v5935 = vunpack.c.h.b16 %v5504
        %v5936 = vunpack.c.l.b16 %v5505
        %v5937 = vunpack.c.h.b16 %v5505
        %v5938 = vunpack.c.l.b16 %v5506
        %v5939 = vunpack.c.h.b16 %v5506
        %v5940 = vunpack.c.l.b16 %v5507
        %v5941 = vunpack.c.h.b16 %v5507
        %v5942 = vunpack.c.l.b16 %v5508
        %v5943 = vunpack.c.h.b16 %v5508
        %v5944 = vunpack.c.l.b16 %v5509
        %v5945 = vunpack.c.h.b16 %v5509
        %v5946 = vunpack.c.l.b16 %v5510
        %v5947 = vunpack.c.h.b16 %v5510
        %v5948 = vunpack.c.l.b16 %v5511
        %v5949 = vunpack.c.h.b16 %v5511
        %v5950 = vunpack.c.l.b16 %v5512
        %v5951 = vunpack.c.h.b16 %v5512
        %v5952 = vunpack.c.l.b16 %v5513
        %v5953 = vunpack.c.h.b16 %v5513
        %v5954 = vunpack.c.l.b16 %v5514
        %v5955 = vunpack.c.h.b16 %v5514
        %v5956 = vunpack.c.l.b16 %v5515
        %v5957 = vunpack.c.h.b16 %v5515
        %v5958 = vunpack.c.l.b16 %v5516
        %v5959 = vunpack.c.h.b16 %v5516
        %v5960 = vunpack.c.l.b16 %v5517
        %v5961 = vunpack.c.h.b16 %v5517
        %v5962 = vunpack.c.l.b16 %v5518
        %v5963 = vunpack.c.h.b16 %v5518
        %v5964 = vunpack.c.l.b16 %v5519
        %v5965 = vunpack.c.h.b16 %v5519
        %v5966 = vunpack.c.l.b16 %v5520
        %v5967 = vunpack.c.h.b16 %v5520
        %v5968 = vunpack.c.l.b16 %v5521
        %v5969 = vunpack.c.h.b16 %v5521
        %v5970 = vunpack.c.l.b16 %v5522
        %v5971 = vunpack.c.h.b16 %v5522
        %v5972 = vunpack.c.l.b16 %v5523
        %v5973 = vunpack.c.h.b16 %v5523
        %v5974 = vunpack.c.l.b16 %v5524
        %v5975 = vunpack.c.h.b16 %v5524
        %v5976 = vunpack.c.l.b16 %v5525
        %v5977 = vunpack.c.h.b16 %v5525
        %v5978 = vunpack.c.l.b16 %v5526
        %v5979 = vunpack.c.h.b16 %v5526
        %v5980 = vunpack.c.l.b16 %v5527
        %v5981 = vunpack.c.h.b16 %v5527
        %v5982 = vunpack.c.l.b16 %v5528
        %v5983 = vunpack.c.h.b16 %v5528
        %v5984 = vunpack.c.l.b16 %v5529
        %v5985 = vunpack.c.h.b16 %v5529
        %v5986 = vunpack.c.l.b16 %v5530
        %v5987 = vunpack.c.h.b16 %v5530
        %v5988 = vunpack.c.l.b16 %v5531
        %v5989 = vunpack.c.h.b16 %v5531
        %v5990 = vunpack.c.l.b16 %v5532
        %v5991 = vunpack.c.h.b16 %v5532
        %v5992 = vunpack.c.l.b16 %v5533
        %v5993 = vunpack.c.h.b16 %v5533
        %v5994 = vunpack.c.l.b16 %v5534
        %v5995 = vunpack.c.h.b16 %v5534
        %v5996 = vunpack.c.l.b16 %v5535
        %v5997 = vunpack.c.h.b16 %v5535
        %v5998 = vpack.c.b16 %v5746, %v5742
        %v5999 = vpack.c.b16 %v5747, %v5743
        %v6000 = vpack.c.b16 %v5748, %v5744
        %v6001 = vpack.c.b16 %v5749, %v5745
        %v6002 = vpack.c.b16 %v5754, %v5750
        %v6003 = vpack.c.b16 %v5755, %v5751
        %v6004 = vpack.c.b16 %v5756, %v5752
        %v6005 = vpack.c.b16 %v5757, %v5753
        %v6006 = vpack.c.b16 %v5762, %v5758
        %v6007 = vpack.c.b16 %v5763, %v5759
        %v6008 = vpack.c.b16 %v5764, %v5760
        %v6009 = vpack.c.b16 %v5765, %v5761
        %v6010 = vpack.c.b16 %v5770, %v5766
        %v6011 = vpack.c.b16 %v5771, %v5767
        %v6012 = vpack.c.b16 %v5772, %v5768
        %v6013 = vpack.c.b16 %v5773, %v5769
        %v6014 = vpack.c.b16 %v5778, %v5774
        %v6015 = vpack.c.b16 %v5779, %v5775
        %v6016 = vpack.c.b16 %v5780, %v5776
        %v6017 = vpack.c.b16 %v5781, %v5777
        %v6018 = vpack.c.b16 %v5786, %v5782
        %v6019 = vpack.c.b16 %v5787, %v5783
        %v6020 = vpack.c.b16 %v5788, %v5784
        %v6021 = vpack.c.b16 %v5789, %v5785
        %v6022 = vpack.c.b16 %v5794, %v5790
        %v6023 = vpack.c.b16 %v5795, %v5791
        %v6024 = vpack.c.b16 %v5796, %v5792
        %v6025 = vpack.c.b16 %v5797, %v5793
        %v6026 = vpack.c.b16 %v5802, %v5798
        %v6027 = vpack.c.b16 %v5803, %v5799
        %v6028 = vpack.c.b16 %v5804, %v5800
        %v6029 = vpack.c.b16 %v5805, %v5801
        %v6030 = vpack.c.b16 %v5810, %v5806
        %v6031 = vpack.c.b16 %v5811, %v5807
        %v6032 = vpack.c.b16 %v5812, %v5808
        %v6033 = vpack.c.b16 %v5813, %v5809
        %v6034 = vpack.c.b16 %v5818, %v5814
        %v6035 = vpack.c.b16 %v5819, %v5815
        %v6036 = vpack.c.b16 %v5820, %v5816
        %v6037 = vpack.c.b16 %v5821, %v5817
        %v6038 = vpack.c.b16 %v5826, %v5822
        %v6039 = vpack.c.b16 %v5827, %v5823
        %v6040 = vpack.c.b16 %v5828, %v5824
        %v6041 = vpack.c.b16 %v5829, %v5825
        %v6042 = vpack.c.b16 %v5834, %v5830
        %v6043 = vpack.c.b16 %v5835, %v5831
        %v6044 = vpack.c.b16 %v5836, %v5832
        %v6045 = vpack.c.b16 %v5837, %v5833
        %v6046 = vpack.c.b16 %v5842, %v5838
        %v6047 = vpack.c.b16 %v5843, %v5839
        %v6048 = vpack.c.b16 %v5844, %v5840
        %v6049 = vpack.c.b16 %v5845, %v5841
        %v6050 = vpack.c.b16 %v5850, %v5846
        %v6051 = vpack.c.b16 %v5851, %v5847
        %v6052 = vpack.c.b16 %v5852, %v5848
        %v6053 = vpack.c.b16 %v5853, %v5849
        %v6054 = vpack.c.b16 %v5858, %v5854
        %v6055 = vpack.c.b16 %v5859, %v5855
        %v6056 = vpack.c.b16 %v5860, %v5856
        %v6057 = vpack.c.b16 %v5861, %v5857
        %v6058 = vpack.c.b16 %v5866, %v5862
        %v6059 = vpack.c.b16 %v5867, %v5863
        %v6060 = vpack.c.b16 %v5868, %v5864
        %v6061 = vpack.c.b16 %v5869, %v5865
        %v6062 = vpack.c.b16 %v5874, %v5870
        %v6063 = vpack.c.b16 %v5875, %v5871
        %v6064 = vpack.c.b16 %v5876, %v5872
        %v6065 = vpack.c.b16 %v5877, %v5873
        %v6066 = vpack.c.b16 %v5882, %v5878
        %v6067 = vpack.c.b16 %v5883, %v5879
        %v6068 = vpack.c.b16 %v5884, %v5880
        %v6069 = vpack.c.b16 %v5885, %v5881
        %v6070 = vpack.c.b16 %v5890, %v5886
        %v6071 = vpack.c.b16 %v5891, %v5887
        %v6072 = vpack.c.b16 %v5892, %v5888
        %v6073 = vpack.c.b16 %v5893, %v5889
        %v6074 = vpack.c.b16 %v5898, %v5894
        %v6075 = vpack.c.b16 %v5899, %v5895
        %v6076 = vpack.c.b16 %v5900, %v5896
        %v6077 = vpack.c.b16 %v5901, %v5897
        %v6078 = vpack.c.b16 %v5906, %v5902
        %v6079 = vpack.c.b16 %v5907, %v5903
        %v6080 = vpack.c.b16 %v5908, %v5904
        %v6081 = vpack.c.b16 %v5909, %v5905
        %v6082 = vpack.c.b16 %v5914, %v5910
        %v6083 = vpack.c.b16 %v5915, %v5911
        %v6084 = vpack.c.b16 %v5916, %v5912
        %v6085 = vpack.c.b16 %v5917, %v5913
        %v6086 = vpack.c.b16 %v5922, %v5918
        %v6087 = vpack.c.b16 %v5923, %v5919
        %v6088 = vpack.c.b16 %v5924, %v5920
        %v6089 = vpack.c.b16 %v5925, %v5921
        %v6090 = vpack.c.b16 %v5930, %v5926
        %v6091 = vpack.c.b16 %v5931, %v5927
        %v6092 = vpack.c.b16 %v5932, %v5928
        %v6093 = vpack.c.b16 %v5933, %v5929
        %v6094 = vpack.c.b16 %v5938, %v5934
        %v6095 = vpack.c.b16 %v5939, %v5935
        %v6096 = vpack.c.b16 %v5940, %v5936
        %v6097 = vpack.c.b16 %v5941, %v5937
        %v6098 = vpack.c.b16 %v5946, %v5942
        %v6099 = vpack.c.b16 %v5947, %v5943
        %v6100 = vpack.c.b16 %v5948, %v5944
        %v6101 = vpack.c.b16 %v5949, %v5945
        %v6102 = vpack.c.b16 %v5954, %v5950
        %v6103 = vpack.c.b16 %v5955, %v5951
        %v6104 = vpack.c.b16 %v5956, %v5952
        %v6105 = vpack.c.b16 %v5957, %v5953
        %v6106 = vpack.c.b16 %v5962, %v5958
        %v6107 = vpack.c.b16 %v5963, %v5959
        %v6108 = vpack.c.b16 %v5964, %v5960
        %v6109 = vpack.c.b16 %v5965, %v5961
        %v6110 = vpack.c.b16 %v5970, %v5966
        %v6111 = vpack.c.b16 %v5971, %v5967
        %v6112 = vpack.c.b16 %v5972, %v5968
        %v6113 = vpack.c.b16 %v5973, %v5969
        %v6114 = vpack.c.b16 %v5978, %v5974
        %v6115 = vpack.c.b16 %v5979, %v5975
        %v6116 = vpack.c.b16 %v5980, %v5976
        %v6117 = vpack.c.b16 %v5981, %v5977
        %v6118 = vpack.c.b16 %v5986, %v5982
        %v6119 = vpack.c.b16 %v5987, %v5983
        %v6120 = vpack.c.b16 %v5988, %v5984
        %v6121 = vpack.c.b16 %v5989, %v5985
        %v6122 = vpack.c.b16 %v5994, %v5990
        %v6123 = vpack.c.b16 %v5995, %v5991
        %v6124 = vpack.c.b16 %v5996, %v5992
        %v6125 = vpack.c.b16 %v5997, %v5993
        %6254 = vmatprep.subr.bf16.mxu0 %v6027
        %6255 = vmatpush1.bf16.msra.mxu0 %v6026
        %6256 = vmatprep.subr.bf16.mxu0 %v6023
        %6257 = vmatpush1.bf16.msra.mxu0 %v6022
        %6258 = vmatprep.subr.bf16.mxu0 %v6019
        %6259 = vmatpush1.bf16.msra.mxu0 %v6018
        %6260 = vmatprep.subr.bf16.mxu0 %v6015
        %6261 = vmatpush1.bf16.msra.mxu0 %v6014
        %6262 = vmatprep.subr.bf16.mxu0 %v6011
        %6263 = vmatpush1.bf16.msra.mxu0 %v6010
        %6264 = vmatprep.subr.bf16.mxu0 %v6007
        %6265 = vmatpush1.bf16.msra.mxu0 %v6006
        %6266 = vmatprep.subr.bf16.mxu0 %v6003
        %6267 = vmatpush1.bf16.msra.mxu0 %v6002
        %6268 = vmatprep.subr.bf16.mxu0 %v5999
        %6269 = vmatpush1.bf16.msra.mxu0 %v5998
        %6270 = vmatprep.subr.bf16.mxu0 %v6059
        %6271 = vmatpush2.bf16.msra.mxu0 %v6058
        %6272 = vmatprep.subr.bf16.mxu0 %v6055
        %6273 = vmatpush2.bf16.msra.mxu0 %v6054
        %6274 = vmatprep.subr.bf16.mxu0 %v6051
        %6275 = vmatpush2.bf16.msra.mxu0 %v6050
        %6276 = vmatprep.subr.bf16.mxu0 %v6047
        %6277 = vmatpush2.bf16.msra.mxu0 %v6046
        %6278 = vmatprep.subr.bf16.mxu0 %v6043
        %6279 = vmatpush2.bf16.msra.mxu0 %v6042
        %6280 = vmatprep.subr.bf16.mxu0 %v6039
        %6281 = vmatpush2.bf16.msra.mxu0 %v6038
        %6282 = vmatprep.subr.bf16.mxu0 %v6035
        %6283 = vmatpush2.bf16.msra.mxu0 %v6034
        %6284 = vmatprep.subr.bf16.mxu0 %v6031
        %6285 = vmatpush2.bf16.msra.mxu0 %v6030
        %6286 = vmatprep.mubr.bf16.mxu0 %v5585
        %6287 = vmatmul.mubr.bf16.gmra.mxu0 %v5573
        %v6288 = vpop.f32.mrf.mxu0
        %v6289 = vadd.f32 0.0, %v6288
        %v6290 = vpop.f32.mrf.mxu0
        %v6291 = vadd.f32 0.0, %v6290
        %v6292 = vpop.f32.mrf.mxu0
        %v6293 = vadd.f32 0.0, %v6292
        %v6294 = vpop.f32.mrf.mxu0
        %v6295 = vadd.f32 0.0, %v6294
        %6296 = vdwg.mxu0
        %6297 = vmatprep.subr.bf16.mxu0 %v6091
        %6298 = vmatpush1.bf16.msra.mxu0 %v6090
        %6299 = vmatprep.subr.bf16.mxu0 %v6087
        %6300 = vmatpush1.bf16.msra.mxu0 %v6086
        %6301 = vmatprep.subr.bf16.mxu0 %v6083
        %6302 = vmatpush1.bf16.msra.mxu0 %v6082
        %6303 = vmatprep.subr.bf16.mxu0 %v6079
        %6304 = vmatpush1.bf16.msra.mxu0 %v6078
        %6305 = vmatprep.subr.bf16.mxu0 %v6075
        %6306 = vmatpush1.bf16.msra.mxu0 %v6074
        %6307 = vmatprep.subr.bf16.mxu0 %v6071
        %6308 = vmatpush1.bf16.msra.mxu0 %v6070
        %6309 = vmatprep.subr.bf16.mxu0 %v6067
        %6310 = vmatpush1.bf16.msra.mxu0 %v6066
        %6311 = vmatprep.subr.bf16.mxu0 %v6063
        %6312 = vmatpush1.bf16.msra.mxu0 %v6062
        %6313 = vmatprep.subr.bf16.mxu0 %v6123
        %6314 = vmatpush2.bf16.msra.mxu0 %v6122
        %6315 = vmatprep.subr.bf16.mxu0 %v6119
        %6316 = vmatpush2.bf16.msra.mxu0 %v6118
        %6317 = vmatprep.subr.bf16.mxu0 %v6115
        %6318 = vmatpush2.bf16.msra.mxu0 %v6114
        %6319 = vmatprep.subr.bf16.mxu0 %v6111
        %6320 = vmatpush2.bf16.msra.mxu0 %v6110
        %6321 = vmatprep.subr.bf16.mxu0 %v6107
        %6322 = vmatpush2.bf16.msra.mxu0 %v6106
        %6323 = vmatprep.subr.bf16.mxu0 %v6103
        %6324 = vmatpush2.bf16.msra.mxu0 %v6102
        %6325 = vmatprep.subr.bf16.mxu0 %v6099
        %6326 = vmatpush2.bf16.msra.mxu0 %v6098
        %6327 = vmatprep.subr.bf16.mxu0 %v6095
        %6328 = vmatpush2.bf16.msra.mxu0 %v6094
        %6329 = vmatprep.mubr.bf16.mxu0 %v5609
        %6330 = vmatmul.mubr.bf16.gmra.mxu0 %v5597
        %v6331 = vpop.f32.mrf.mxu0
        %v6332 = vadd.f32 %v6289, %v6331
        %v6333 = vpop.f32.mrf.mxu0
        %v6334 = vadd.f32 %v6291, %v6333
        %v6335 = vpop.f32.mrf.mxu0
        %v6336 = vadd.f32 %v6293, %v6335
        %v6337 = vpop.f32.mrf.mxu0
        %v6338 = vadd.f32 %v6295, %v6337
        %6339 = vdwg.mxu0
        %6340 = vmatprep.subr.bf16.mxu0 %v6029
        %6341 = vmatpush1.bf16.msra.mxu0 %v6028
        %6342 = vmatprep.subr.bf16.mxu0 %v6025
        %6343 = vmatpush1.bf16.msra.mxu0 %v6024
        %6344 = vmatprep.subr.bf16.mxu0 %v6021
        %6345 = vmatpush1.bf16.msra.mxu0 %v6020
        %6346 = vmatprep.subr.bf16.mxu0 %v6017
        %6347 = vmatpush1.bf16.msra.mxu0 %v6016
        %6348 = vmatprep.subr.bf16.mxu0 %v6013
        %6349 = vmatpush1.bf16.msra.mxu0 %v6012
        %6350 = vmatprep.subr.bf16.mxu0 %v6009
        %6351 = vmatpush1.bf16.msra.mxu0 %v6008
        %6352 = vmatprep.subr.bf16.mxu0 %v6005
        %6353 = vmatpush1.bf16.msra.mxu0 %v6004
        %6354 = vmatprep.subr.bf16.mxu0 %v6001
        %6355 = vmatpush1.bf16.msra.mxu0 %v6000
        %6356 = vmatprep.subr.bf16.mxu0 %v6061
        %6357 = vmatpush2.bf16.msra.mxu0 %v6060
        %6358 = vmatprep.subr.bf16.mxu0 %v6057
        %6359 = vmatpush2.bf16.msra.mxu0 %v6056
        %6360 = vmatprep.subr.bf16.mxu0 %v6053
        %6361 = vmatpush2.bf16.msra.mxu0 %v6052
        %6362 = vmatprep.subr.bf16.mxu0 %v6049
        %6363 = vmatpush2.bf16.msra.mxu0 %v6048
        %6364 = vmatprep.subr.bf16.mxu0 %v6045
        %6365 = vmatpush2.bf16.msra.mxu0 %v6044
        %6366 = vmatprep.subr.bf16.mxu0 %v6041
        %6367 = vmatpush2.bf16.msra.mxu0 %v6040
        %6368 = vmatprep.subr.bf16.mxu0 %v6037
        %6369 = vmatpush2.bf16.msra.mxu0 %v6036
        %6370 = vmatprep.subr.bf16.mxu0 %v6033
        %6371 = vmatpush2.bf16.msra.mxu0 %v6032
        %6372 = vmatprep.mubr.bf16.mxu0 %v5585
        %6373 = vmatmul.mubr.bf16.gmra.mxu0 %v5573
        %v6374 = vpop.f32.mrf.mxu0
        %v6375 = vadd.f32 0.0, %v6374
        %v6376 = vpop.f32.mrf.mxu0
        %v6377 = vadd.f32 0.0, %v6376
        %v6378 = vpop.f32.mrf.mxu0
        %v6379 = vadd.f32 0.0, %v6378
        %v6380 = vpop.f32.mrf.mxu0
        %v6381 = vadd.f32 0.0, %v6380
        %6382 = vdwg.mxu0
        %6383 = vmatprep.subr.bf16.mxu0 %v6093
        %6384 = vmatpush1.bf16.msra.mxu0 %v6092
        %6385 = vmatprep.subr.bf16.mxu0 %v6089
        %6386 = vmatpush1.bf16.msra.mxu0 %v6088
        %6387 = vmatprep.subr.bf16.mxu0 %v6085
        %6388 = vmatpush1.bf16.msra.mxu0 %v6084
        %6389 = vmatprep.subr.bf16.mxu0 %v6081
        %6390 = vmatpush1.bf16.msra.mxu0 %v6080
        %6391 = vmatprep.subr.bf16.mxu0 %v6077
        %6392 = vmatpush1.bf16.msra.mxu0 %v6076
        %6393 = vmatprep.subr.bf16.mxu0 %v6073
        %6394 = vmatpush1.bf16.msra.mxu0 %v6072
        %6395 = vmatprep.subr.bf16.mxu0 %v6069
        %6396 = vmatpush1.bf16.msra.mxu0 %v6068
        %6397 = vmatprep.subr.bf16.mxu0 %v6065
        %6398 = vmatpush1.bf16.msra.mxu0 %v6064
        %6399 = vmatprep.subr.bf16.mxu0 %v6125
        %6400 = vmatpush2.bf16.msra.mxu0 %v6124
        %6401 = vmatprep.subr.bf16.mxu0 %v6121
        %6402 = vmatpush2.bf16.msra.mxu0 %v6120
        %6403 = vmatprep.subr.bf16.mxu0 %v6117
        %6404 = vmatpush2.bf16.msra.mxu0 %v6116
        %6405 = vmatprep.subr.bf16.mxu0 %v6113
        %6406 = vmatpush2.bf16.msra.mxu0 %v6112
        %6407 = vmatprep.subr.bf16.mxu0 %v6109
        %6408 = vmatpush2.bf16.msra.mxu0 %v6108
        %6409 = vmatprep.subr.bf16.mxu0 %v6105
        %6410 = vmatpush2.bf16.msra.mxu0 %v6104
        %6411 = vmatprep.subr.bf16.mxu0 %v6101
        %6412 = vmatpush2.bf16.msra.mxu0 %v6100
        %6413 = vmatprep.subr.bf16.mxu0 %v6097
        %6414 = vmatpush2.bf16.msra.mxu0 %v6096
        %6415 = vmatprep.mubr.bf16.mxu0 %v5609
        %6416 = vmatmul.mubr.bf16.gmra.mxu0 %v5597
        %v6417 = vpop.f32.mrf.mxu0
        %v6418 = vadd.f32 %v6375, %v6417
        %v6419 = vpop.f32.mrf.mxu0
        %v6420 = vadd.f32 %v6377, %v6419
        %v6421 = vpop.f32.mrf.mxu0
        %v6422 = vadd.f32 %v6379, %v6421
        %v6423 = vpop.f32.mrf.mxu0
        %v6424 = vadd.f32 %v6381, %v6423
        %6425 = vdwg.mxu0
        %v6426 = vadd.f32 %v5307, %v6332
        %v6427 = vadd.f32 %v5309, %v6334
        %v6428 = vadd.f32 %v5393, %v6418
        %v6429 = vadd.f32 %v5395, %v6420
        %v6430 = vadd.f32 %v5311, %v6336
        %v6431 = vadd.f32 %v5313, %v6338
        %v6432 = vadd.f32 %v5397, %v6422
        %v6433 = vadd.f32 %v5399, %v6424
        %v6434 = vld [vmem:[#allocation12] sm:$0xf]
        %v6436 = vlaneseq
        %v6437 = vshrl.u32 %v6436, 7
        %v6438 = vsub.s32 0, %v6437
        %v6439 = vrot.slane %v6434, %v6438
        %v6440 = vlaneseq
        %v6441 = vshrl.u32 %v6440, 7
        %v6442 = vsub.s32 1, %v6441
        %v6443 = vrot.slane %v6434, %v6442
        %v6444 = vlaneseq
        %v6445 = vshrl.u32 %v6444, 7
        %v6446 = vsub.s32 2, %v6445
        %v6447 = vrot.slane %v6434, %v6446
        %v6448 = vlaneseq
        %v6449 = vshrl.u32 %v6448, 7
        %v6450 = vsub.s32 3, %v6449
        %v6451 = vrot.slane %v6434, %v6450
        %v6456 = vadd.f32 %v6426, %v6439
        %v6457 = vadd.f32 %v6427, %v6443
        %v6458 = vadd.f32 %v6428, %v6447
        %v6459 = vadd.f32 %v6429, %v6451
        %v6460 = vadd.f32 %v6430, %v6439
        %v6461 = vadd.f32 %v6431, %v6443
        %v6462 = vadd.f32 %v6432, %v6447
        %v6463 = vadd.f32 %v6433, %v6451
        %v6464 = vunpack.c.l.bf16 %v306
        %v6465 = vunpack.c.h.bf16 %v306
        %v6466 = vunpack.c.l.bf16 %v307
        %v6467 = vunpack.c.h.bf16 %v307
        %v6468 = vunpack.c.l.bf16 %v308
        %v6469 = vunpack.c.h.bf16 %v308
        %v6470 = vunpack.c.l.bf16 %v309
        %v6471 = vunpack.c.h.bf16 %v309
        %v6472 = vadd.f32 %v6456, %v6464
        %v6473 = vadd.f32 %v6457, %v6465
        %v6474 = vadd.f32 %v6458, %v6466
        %v6475 = vadd.f32 %v6459, %v6467
        %v6476 = vadd.f32 %v6460, %v6468
        %v6477 = vadd.f32 %v6461, %v6469
        %v6478 = vadd.f32 %v6462, %v6470
        %v6479 = vadd.f32 %v6463, %v6471
        %v6480 = vmax.f32 %v6472, 0.0
        %v6481 = vmax.f32 %v6473, 0.0
        %v6482 = vmax.f32 %v6474, 0.0
        %v6483 = vmax.f32 %v6475, 0.0
        %v6484 = vmax.f32 %v6476, 0.0
        %v6485 = vmax.f32 %v6477, 0.0
        %v6486 = vmax.f32 %v6478, 0.0
        %v6487 = vmax.f32 %v6479, 0.0
        %6488 = vst [vmem:[%s296] sm:$0xff] %v6480
        %6489 = vst [vmem:[%s296 + $0x8] sm:$0xff] %v6481
        %6490 = vst [vmem:[%s296 + $0x10] sm:$0xff] %v6482
        %6491 = vst [vmem:[%s296 + $0x18] sm:$0xff] %v6483
        %6492 = vst [vmem:[%s296 + $0x20] sm:$0xff] %v6484
        %6493 = vst [vmem:[%s296 + $0x28] sm:$0xff] %v6485
        %6494 = vst [vmem:[%s296 + $0x30] sm:$0xff] %v6486
        %6495 = vst [vmem:[%s296 + $0x38] sm:$0xff] %v6487
        %s6496 = sand.u32 %s142, 1
        %s6497 = scalar_lea.sflag [#allocation6], %s6496
        %s6498 = sand.u32 %s142, 1
        %s6499 = smul.addr %s6498, 64
        %s6500 = scalar_lea.vmem [#allocation13], %s6499
        // Predicated region
        $region61: #{tpu_custom_call.1} parent=39 // pred_check
          %p6501 = pneg %p152
        $region62: #{tpu_custom_call.1} parent=39 // pred_check_branch
          %6503 = sbr.rel (%p6501) target = $region64
        $region63: #{tpu_custom_call.1} parent=39 // pred_region
          %s6505 = ssub.s32 1024, 1024
          %6506 = vsyncadd %s6497, %s6505
          %s6507 = smul.addr %s24, 8
          %s6508 = smul.addr %s6507, 128
          %s6509 = scalar_lea.hbm %s5, %s6508
          %s6510 = sshll.u32 %s6500, 4
          %s6511 = int_to_ptr.vmem [resolvable:$true] %s6510
          %6516 = dma.vmem_to_hbm [thread:$0]  %s6511, 1024, %s6509, %s6497, 512, 512, 32
        $region64: #{tpu_custom_call.1} parent=39 // pred_fallthru
          _
      $region40: #{tpu_custom_call.1} parent=5 // pred_fallthru
        _
      %p6517 = scmp.le.s32.totalorder 2, %s19
      // Predicated region
      $region65: #{tpu_custom_call.1} parent=5 // pred_check
        %p6518 = pneg %p6517
      $region66: #{tpu_custom_call.1} parent=5 // pred_check_branch
        %6520 = sbr.rel (%p6518) target = $region68
      $region67: #{tpu_custom_call.1} parent=5 // pred_region
        %s6521 = ssub.s32 %s19, 2
        // Predicated region
        $region69: #{tpu_custom_call.1} parent=67 // pred_check
          %p6522 = pneg %p158
        $region70: #{tpu_custom_call.1} parent=67 // pred_check_branch
          %6524 = sbr.rel (%p6522) target = $region72
        $region71: #{tpu_custom_call.1} parent=67 // pred_region
          %s6525 = sand.u32 %s143, 1
          %s6526 = scalar_lea.sflag [#allocation6], %s6525
          %s6527 = sand.u32 %s143, 1
          %s6528 = smul.addr %s6527, 64
          %s6529 = scalar_lea.vmem [#allocation13], %s6528
          %6530 = dma.done %s6526, 1024
        $region72: #{tpu_custom_call.1} parent=67 // pred_fallthru
          _
      $region68: #{tpu_custom_call.1} parent=5 // pred_fallthru
        _
    $region6: #{tpu_custom_call.1} parent=1 // loop_footer
      %s23 = sadd.s32 1, %s19
    $region7: #{tpu_custom_call.1} parent=1 // loop_footer_branch
      %18 = sbr.rel target = $region3
    $region8: #{tpu_custom_call.1} parent=1 // loop_exit
      _
    %6531 = vsyncpa [#allocation5], 1
    %s6532 = scalar_lea.sflag [#allocation5], 1
    %6533 = vsyncpa %s6532, 1
    %6534 = vsyncpa [#allocation8], 1
    %6535 = vsyncpa [#allocation11], 1
    %6536 = vsyncpa [#allocation6], 1
    %s6537 = scalar_lea.sflag [#allocation6], 1
    %6538 = vsyncpa %s6537, 1

</llo_original>
